<compile_context>
chip_gen: v7x
topology: tpu7x:2x2x1
jax: 0.10.0
libtpu: 0.0.40
codegen_flags: <defaults>
</compile_context>

<pallas_src>
import functools

import jax
import jax.numpy as jnp
from jax import lax
from jax.experimental import pallas as pl
from jax.experimental.pallas import tpu as pltpu


def _block_diag(mat, n):
    """(r, c) -> (n*r, n*c) with `mat` repeated along the diagonal."""
    r, c = mat.shape
    eye = jnp.eye(n, dtype=mat.dtype)
    return (eye[:, None, :, None] * mat[None, :, None, :]).reshape(n * r, n * c)


def _tensorcores_per_chip():
    """Best-effort TC-per-chip count (v7x has 2); fall back to 1."""
    try:
        kind = jax.devices()[0].device_kind.lower()
    except Exception:
        return 1
    return 2 if ("v7" in kind or "7x" in kind) else 1


# --------------------------------------------------------------------------
# Fused Pallas kernel: one grid step == `bb` batch elements, all heads.
# --------------------------------------------------------------------------
def _fused_attn_kernel(num_heads, head_dim, n_tok, bb, has_qkv_bias, *refs):
    if has_qkv_bias:
        (x_ref, wqkv_ref, bqkv_ref, rposT_ref, rowmask_ref, colexp_ref,
         headmask_ref, blockones_ref, wproj_ref, bproj_ref, o_ref) = refs
    else:
        (x_ref, wqkv_ref, rposT_ref, rowmask_ref, colexp_ref,
         headmask_ref, blockones_ref, wproj_ref, bproj_ref, o_ref) = refs

    C = num_heads * head_dim
    N = n_tok

    # One qkv projection for the whole (bb*N, C) slab.  `scale` is pre-folded
    # into the q-columns of Wqkv (and bqkv) in the wrapper.
    x_flat = x_ref[...].reshape(bb * N, C)
    qkv = jnp.dot(x_flat, wqkv_ref[...], preferred_element_type=jnp.float32)
    if has_qkv_bias:
        qkv = qkv + bqkv_ref[...]

    headmask = headmask_ref[...]      # (H*N, C)   0/1 per-head column selector
    rowmask = rowmask_ref[...]        # (N, H*M)   0/1 query-row selector (tiled)

    outs = []
    for b in range(bb):               # static unroll over the folded batch
        rows = qkv[b * N:(b + 1) * N]                      # (N, 3C)
        q_all = rows[:, :C]                                # (N, C), pre-scaled
        k_all = rows[:, C:2 * C]                           # (N, C)
        v_all = rows[:, 2 * C:3 * C]                       # (N, C)

        # Block-diagonal head stacks: row block h holds only head h's columns.
        k_bd = jnp.concatenate([k_all] * num_heads, axis=0) * headmask  # (HN,C)
        v_bd = jnp.concatenate([v_all] * num_heads, axis=0) * headmask  # (HN,C)

        # All heads' scores in one MXU push, contracting the channel dim of
        # both operands directly (no k.T materialization):  (N, H*N).
        s = lax.dot_general(q_all, k_bd, (((1,), (1,)), ((), ())),
                            preferred_element_type=jnp.float32)

        # Decomposed rel-pos bias, all heads fused via the block-diagonal
        # (C, H*M) table and the block-diagonal (H*M, H*N) column expander:
        #   bias[i, h*N+j] = sum_d q_h[i,d]*Rh[i//W, j//KW, d]
        #                  + sum_d q_h[i,d]*Rw[i%W,  j%KW,  d]
        rel = jnp.dot(q_all, rposT_ref[...],
                      preferred_element_type=jnp.float32)          # (N, H*M)
        s = s + jnp.dot(rel * rowmask, colexp_ref[...],
                        preferred_element_type=jnp.float32)        # (N, H*N)

        # Per-head softmax over each head's N-column block.  The row-global
        # max is the same constant within every block, so subtracting it is
        # an exact softmax stabilizer.
        s = s - jnp.max(s, axis=-1, keepdims=True)
        p = jnp.exp(s)
        # Per-block denominators replicated across each block's columns via
        # one matmul against the 0/1 block-diagonal all-ones matrix.
        denom = jnp.dot(p, blockones_ref[...],
                        preferred_element_type=jnp.float32)        # (N, H*N)
        p = p * pl.reciprocal(denom, approx=True)

        # PV against the block-diagonal V stack gives the merged-head (N, C)
        # output directly (column c = h*head_dim + d, matching PyTorch).
        outs.append(jnp.dot(p, v_bd, preferred_element_type=jnp.float32))

    out = outs[0] if bb == 1 else jnp.concatenate(outs, axis=0)   # (bb*N, C)

    # Output projection on the whole slab + lane-dense store.
    proj = (jnp.dot(out, wproj_ref[...], preferred_element_type=jnp.float32)
            + bproj_ref[...])
    o_ref[...] = proj.reshape(bb, N, C).astype(o_ref.dtype)


# --------------------------------------------------------------------------
# Module forward (one pallas_call + small data-independent constant setup)
# --------------------------------------------------------------------------
def attention_forward(x, H, W, params, num_heads, qkv_bias=False):
    Wqkv, bqkv, Wproj, bproj, rel_pos_h, rel_pos_w = params
    B, N, C = x.shape
    head_dim = C // num_heads
    scale = head_dim ** -0.5
    assert N == H * W
    dtype = x.dtype

    # Window attention: q_shape == k_shape, so the calc_rel_pos_spatial ratios
    # are exactly 1.
    KH, KW = H, W
    M = H * KH + W * KW

    # Grid shaping: fold the whole batch into one step on single-TC chips
    # (removes per-step grid overhead and doubles matmul M-occupancy); keep a
    # B-way "parallel" axis on multi-TC chips (v7x).
    bb = B if (_tensorcores_per_chip() == 1 or B == 1) else 1
    n_steps = B // bb

    # Fold the softmax scale into the q-columns of the qkv projection
    # (matches the PyTorch order: q is scaled before the rel-pos bias).
    colscale = jnp.concatenate(
        [jnp.full((C,), scale, dtype), jnp.ones((2 * C,), dtype)])
    Wqkv_s = (Wqkv * colscale[None, :]).astype(dtype)
    bqkv_s = (bqkv * colscale).reshape(1, 3 * C).astype(dtype) if qkv_bias else None

    # Gathered rel-pos tables fused into one (D, M) operand, then made
    # block-diagonal per head: (C, num_heads*M).  M = 2*H*W = 128 here, so the
    # per-head blocks are 128-lane aligned.
    dist_h = jnp.arange(H)[:, None] - jnp.arange(KH)[None, :] + (KH - 1)
    dist_w = jnp.arange(W)[:, None] - jnp.arange(KW)[None, :] + (KW - 1)
    Rh = rel_pos_h[dist_h]                                 # (H, KH, D)
    Rw = rel_pos_w[dist_w]                                 # (W, KW, D)
    rcatT = jnp.concatenate([Rh.reshape(H * KH, head_dim),
                             Rw.reshape(W * KW, head_dim)],
                            axis=0).T.astype(dtype)        # (D, M)
    rposT_bd = _block_diag(rcatT, num_heads)               # (C, H*M)

    # 0/1 selection matrices (data independent).  m-index layout:
    #   m <  H*KH : m = h'*KH + kh      m >= H*KH : m-H*KH = w'*KW + kw
    rows = jnp.arange(N)
    cols = jnp.arange(N)
    mh = jnp.arange(H * KH)
    mw = jnp.arange(W * KW)
    rowmask = jnp.concatenate(
        [(rows[:, None] // W == mh[None, :] // KH),
         (rows[:, None] % W == mw[None, :] // KW)], axis=1).astype(dtype)  # (N, M)
    colexp = jnp.concatenate(
        [(mh[:, None] % KH == cols[None, :] // KW),
         (mw[:, None] % KW == cols[None, :] % KW)], axis=0).astype(dtype)  # (M, N)
    rowmask_t = jnp.tile(rowmask, (1, num_heads))          # (N, H*M)
    colexp_bd = _block_diag(colexp, num_heads)              # (H*M, H*N)

    # Head block-structure masks for the packed score / PV matmuls.
    head_id = jnp.repeat(jnp.arange(num_heads), N)
    headmask = (head_id[:, None] ==
                (jnp.arange(C) // head_dim)[None, :]).astype(dtype)   # (H*N, C)
    blockones = (head_id[:, None] == head_id[None, :]).astype(dtype)  # (H*N, H*N)

    Wproj_c = Wproj.astype(dtype)
    bproj2 = bproj.reshape(1, C).astype(dtype)

    HM = num_heads * M
    HN = num_heads * N

    kernel = functools.partial(_fused_attn_kernel, num_heads, head_dim, N, bb,
                               qkv_bias)

    inputs = [x, Wqkv_s]
    in_specs = [
        pl.BlockSpec((bb, N, C), lambda i: (i, 0, 0)),       # x
        pl.BlockSpec((C, 3 * C), lambda i: (0, 0)),          # Wqkv (scaled)
    ]
    if qkv_bias:
        inputs.append(bqkv_s)
        in_specs.append(pl.BlockSpec((1, 3 * C), lambda i: (0, 0)))
    inputs += [rposT_bd, rowmask_t, colexp_bd, headmask, blockones,
               Wproj_c, bproj2]
    in_specs += [
        pl.BlockSpec((C, HM), lambda i: (0, 0)),             # rel-pos tables
        pl.BlockSpec((N, HM), lambda i: (0, 0)),             # row mask (tiled)
        pl.BlockSpec((HM, HN), lambda i: (0, 0)),            # column expander
        pl.BlockSpec((HN, C), lambda i: (0, 0)),             # head col mask
        pl.BlockSpec((HN, HN), lambda i: (0, 0)),            # block-ones
        pl.BlockSpec((C, C), lambda i: (0, 0)),              # Wproj
        pl.BlockSpec((1, C), lambda i: (0, 0)),              # bproj
    ]

    return pl.pallas_call(
        kernel,
        out_shape=jax.ShapeDtypeStruct((B, N, C), x.dtype),
        grid=(n_steps,),
        in_specs=in_specs,
        out_specs=pl.BlockSpec((bb, N, C), lambda i: (i, 0, 0)),
        compiler_params=pltpu.CompilerParams(
            dimension_semantics=("parallel",)),
    )(*inputs)


# --------------------------------------------------------------------------
# Pure-JAX reference (mirrors the PyTorch forward, for verification)
# --------------------------------------------------------------------------
def reference_forward(x, H, W, params, num_heads):
    Wqkv, bqkv, Wproj, bproj, rel_pos_h, rel_pos_w = params
    B, N, C = x.shape
    head_dim = C // num_heads
    scale = head_dim ** -0.5

    qkv = x @ Wqkv + bqkv
    qkv = qkv.reshape(B, N, 3, num_heads, head_dim).transpose(2, 0, 3, 1, 4)
    q, k, v = qkv[0], qkv[1], qkv[2]
    q = q * scale
    attn = q @ jnp.swapaxes(k, -2, -1)

    dist_h = jnp.arange(H)[:, None] - jnp.arange(H)[None, :] + (H - 1)
    dist_w = jnp.arange(W)[:, None] - jnp.arange(W)[None, :] + (W - 1)
    Rh = rel_pos_h[dist_h]
    Rw = rel_pos_w[dist_w]
    r_q = q.reshape(B, num_heads, H, W, head_dim)
    rel_h = jnp.einsum('byhwc,hkc->byhwk', r_q, Rh)
    rel_w = jnp.einsum('byhwc,wkc->byhwk', r_q, Rw)
    attn = (attn.reshape(B, num_heads, H, W, H, W)
            + rel_h[:, :, :, :, :, None]
            + rel_w[:, :, :, :, None, :]).reshape(B, num_heads, N, N)
    attn = jax.nn.softmax(attn, axis=-1)
    out = (attn @ v).transpose(0, 2, 1, 3).reshape(B, N, -1)
    return out @ Wproj + bproj


# --------------------------------------------------------------------------
if __name__ == "__main__":
    B = 2
    H = W = 8                  # window_size = (8, 8)
    N = H * W                  # 64 tokens
    dim = 32
    num_heads = 4
    head_dim = dim // num_heads
    all_head_dim = head_dim * num_heads
    rel_sp_dim = 2 * H - 1

    key = jax.random.PRNGKey(0)
    kx, kqkv, kproj, kbp, krh, krw = jax.random.split(key, 6)

    x = jax.random.normal(kx, (B, N, dim), jnp.float32)

    # deterministic synthetic parameters (weights stored as (in, out))
    Wqkv = 0.05 * jax.random.normal(kqkv, (dim, 3 * all_head_dim), jnp.float32)
    bqkv = jnp.zeros((3 * all_head_dim,), jnp.float32)     # qkv_bias=False
    Wproj = 0.05 * jax.random.normal(kproj, (all_head_dim, dim), jnp.float32)
    bproj = 0.05 * jax.random.normal(kbp, (dim,), jnp.float32)
    rel_pos_h = 0.05 * jax.random.normal(krh, (rel_sp_dim, head_dim), jnp.float32)
    rel_pos_w = 0.05 * jax.random.normal(krw, (rel_sp_dim, head_dim), jnp.float32)
    params = (Wqkv, bqkv, Wproj, bproj, rel_pos_h, rel_pos_w)

    out = attention_forward(x, H, W, params, num_heads, qkv_bias=False)
    out = jax.block_until_ready(out)

    ref = reference_forward(x, H, W, params, num_heads)
    assert out.shape == (B, N, dim)
    max_err = float(jnp.max(jnp.abs(out - ref)))
    assert jnp.allclose(out, ref, atol=2e-3, rtol=2e-3), max_err

    print("KERNEL_OK")
</pallas_src>

<mosaic_0001>
module attributes {stable_mosaic.version = 11 : i64} {
  func.func @_fused_attn_kernel(%arg0: i32, %arg1: memref<2x64x32xf32, #tpu.memory_space<vmem>>, %arg2: memref<32x96xf32, #tpu.memory_space<vmem>>, %arg3: memref<32x512xf32, #tpu.memory_space<vmem>>, %arg4: memref<64x512xf32, #tpu.memory_space<vmem>>, %arg5: memref<512x256xf32, #tpu.memory_space<vmem>>, %arg6: memref<256x32xf32, #tpu.memory_space<vmem>>, %arg7: memref<256x256xf32, #tpu.memory_space<vmem>>, %arg8: memref<32x32xf32, #tpu.memory_space<vmem>>, %arg9: memref<1x32xf32, #tpu.memory_space<vmem>>, %arg10: memref<2x64x32xf32, #tpu.memory_space<vmem>>) attributes {dimension_semantics = [#tpu.dimension_semantics<parallel>], iteration_bounds = array<i64: 1>, scalar_prefetch = 0 : i64, scratch_operands = 0 : i64, tpu.core_type = #tpu.core_type<tc>, window_params = [{transform_indices = @transform_0, window_bounds = array<i64: 2, 64, 32>}, {pipeline_mode = #tpu.pipeline_mode<synchronous>, transform_indices = @transform_1, window_bounds = array<i64: 32, 96>}, {pipeline_mode = #tpu.pipeline_mode<synchronous>, transform_indices = @transform_2, window_bounds = array<i64: 32, 512>}, {pipeline_mode = #tpu.pipeline_mode<synchronous>, transform_indices = @transform_3, window_bounds = array<i64: 64, 512>}, {pipeline_mode = #tpu.pipeline_mode<synchronous>, transform_indices = @transform_4, window_bounds = array<i64: 512, 256>}, {pipeline_mode = #tpu.pipeline_mode<synchronous>, transform_indices = @transform_5, window_bounds = array<i64: 256, 32>}, {pipeline_mode = #tpu.pipeline_mode<synchronous>, transform_indices = @transform_6, window_bounds = array<i64: 256, 256>}, {pipeline_mode = #tpu.pipeline_mode<synchronous>, transform_indices = @transform_7, window_bounds = array<i64: 32, 32>}, {pipeline_mode = #tpu.pipeline_mode<synchronous>, transform_indices = @transform_8, window_bounds = array<i64: 1, 32>}, {transform_indices = @transform_9, window_bounds = array<i64: 2, 64, 32>}]} {
    %c0 = arith.constant 0 : index
    %c0_0 = arith.constant 0 : index
    %c0_1 = arith.constant 0 : index
    %0 = vector.load %arg1[%c0, %c0_0, %c0_1] : memref<2x64x32xf32, #tpu.memory_space<vmem>>, vector<2x64x32xf32>
    %1 = vector.shape_cast %0 : vector<2x64x32xf32> to vector<128x32xf32>
    %c0_2 = arith.constant 0 : index
    %c0_3 = arith.constant 0 : index
    %2 = vector.load %arg2[%c0_2, %c0_3] : memref<32x96xf32, #tpu.memory_space<vmem>>, vector<32x96xf32>
    %cst = arith.constant dense<0.000000e+00> : vector<128x96xf32>
    %3 = tpu.matmul %1, %2, %cst {dimension_numbers = #tpu.dot_dimension_numbers<[1], [0], [0], [1], [0, 0, 1, 1], [], []>} : vector<128x32xf32>, vector<32x96xf32>, vector<128x96xf32> -> vector<128x96xf32>
    %c0_4 = arith.constant 0 : index
    %c0_5 = arith.constant 0 : index
    %4 = vector.load %arg6[%c0_4, %c0_5] : memref<256x32xf32, #tpu.memory_space<vmem>>, vector<256x32xf32>
    %c0_6 = arith.constant 0 : index
    %c0_7 = arith.constant 0 : index
    %5 = vector.load %arg4[%c0_6, %c0_7] : memref<64x512xf32, #tpu.memory_space<vmem>>, vector<64x512xf32>
    %6 = vector.extract_strided_slice %3 {offsets = [0, 0], sizes = [64, 96], strides = [1, 1]} : vector<128x96xf32> to vector<64x96xf32>
    %7 = vector.extract_strided_slice %6 {offsets = [0, 0], sizes = [64, 32], strides = [1, 1]} : vector<64x96xf32> to vector<64x32xf32>
    %8 = vector.extract_strided_slice %6 {offsets = [0, 32], sizes = [64, 32], strides = [1, 1]} : vector<64x96xf32> to vector<64x32xf32>
    %9 = vector.extract_strided_slice %6 {offsets = [0, 64], sizes = [64, 32], strides = [1, 1]} : vector<64x96xf32> to vector<64x32xf32>
    %10 = tpu.concatenate %8, %8, %8, %8 in 0 : vector<64x32xf32>, vector<64x32xf32>, vector<64x32xf32>, vector<64x32xf32> -> vector<256x32xf32>
    %11 = arith.mulf %10, %4 : vector<256x32xf32>
    %12 = tpu.concatenate %9, %9, %9, %9 in 0 : vector<64x32xf32>, vector<64x32xf32>, vector<64x32xf32>, vector<64x32xf32> -> vector<256x32xf32>
    %13 = arith.mulf %12, %4 : vector<256x32xf32>
    %cst_8 = arith.constant dense<0.000000e+00> : vector<64x256xf32>
    %14 = tpu.matmul %7, %11, %cst_8 {dimension_numbers = #tpu.dot_dimension_numbers<[1], [1], [0], [0], [0, 0, 1, 0], [], []>} : vector<64x32xf32>, vector<256x32xf32>, vector<64x256xf32> -> vector<64x256xf32>
    %c0_9 = arith.constant 0 : index
    %c0_10 = arith.constant 0 : index
    %15 = vector.load %arg3[%c0_9, %c0_10] : memref<32x512xf32, #tpu.memory_space<vmem>>, vector<32x512xf32>
    %cst_11 = arith.constant dense<0.000000e+00> : vector<64x512xf32>
    %16 = tpu.matmul %7, %15, %cst_11 {dimension_numbers = #tpu.dot_dimension_numbers<[1], [0], [0], [1], [0, 0, 1, 1], [], []>} : vector<64x32xf32>, vector<32x512xf32>, vector<64x512xf32> -> vector<64x512xf32>
    %17 = arith.mulf %16, %5 : vector<64x512xf32>
    %c0_12 = arith.constant 0 : index
    %c0_13 = arith.constant 0 : index
    %18 = vector.load %arg5[%c0_12, %c0_13] : memref<512x256xf32, #tpu.memory_space<vmem>>, vector<512x256xf32>
    %cst_14 = arith.constant dense<0.000000e+00> : vector<64x256xf32>
    %19 = tpu.matmul %17, %18, %cst_14 {dimension_numbers = #tpu.dot_dimension_numbers<[1], [0], [0], [1], [0, 0, 1, 1], [], []>} : vector<64x512xf32>, vector<512x256xf32>, vector<64x256xf32> -> vector<64x256xf32>
    %20 = arith.addf %14, %19 : vector<64x256xf32>
    %cst_15 = arith.constant dense<0xFF800000> : vector<64xf32>
    %21 = vector.multi_reduction <maximumf>, %20, %cst_15 [1] : vector<64x256xf32> to vector<64xf32>
    %22 = vector.shape_cast %21 : vector<64xf32> to vector<64x1xf32>
    %23 = vector.broadcast %22 : vector<64x1xf32> to vector<64x256xf32>
    %24 = arith.subf %20, %23 : vector<64x256xf32>
    %25 = math.exp %24 : vector<64x256xf32>
    %c0_16 = arith.constant 0 : index
    %c0_17 = arith.constant 0 : index
    %26 = vector.load %arg7[%c0_16, %c0_17] : memref<256x256xf32, #tpu.memory_space<vmem>>, vector<256x256xf32>
    %cst_18 = arith.constant dense<0.000000e+00> : vector<64x256xf32>
    %27 = tpu.matmul %25, %26, %cst_18 {dimension_numbers = #tpu.dot_dimension_numbers<[1], [0], [0], [1], [0, 0, 1, 1], [], []>} : vector<64x256xf32>, vector<256x256xf32>, vector<64x256xf32> -> vector<64x256xf32>
    %28 = tpu.reciprocal %27 {approx = true} : vector<64x256xf32> -> vector<64x256xf32>
    %29 = arith.mulf %25, %28 : vector<64x256xf32>
    %cst_19 = arith.constant dense<0.000000e+00> : vector<64x32xf32>
    %30 = tpu.matmul %29, %13, %cst_19 {dimension_numbers = #tpu.dot_dimension_numbers<[1], [0], [0], [1], [0, 0, 1, 1], [], []>} : vector<64x256xf32>, vector<256x32xf32>, vector<64x32xf32> -> vector<64x32xf32>
    %31 = vector.extract_strided_slice %3 {offsets = [64, 0], sizes = [64, 96], strides = [1, 1]} : vector<128x96xf32> to vector<64x96xf32>
    %32 = vector.extract_strided_slice %31 {offsets = [0, 0], sizes = [64, 32], strides = [1, 1]} : vector<64x96xf32> to vector<64x32xf32>
    %33 = vector.extract_strided_slice %31 {offsets = [0, 32], sizes = [64, 32], strides = [1, 1]} : vector<64x96xf32> to vector<64x32xf32>
    %34 = vector.extract_strided_slice %31 {offsets = [0, 64], sizes = [64, 32], strides = [1, 1]} : vector<64x96xf32> to vector<64x32xf32>
    %35 = tpu.concatenate %33, %33, %33, %33 in 0 : vector<64x32xf32>, vector<64x32xf32>, vector<64x32xf32>, vector<64x32xf32> -> vector<256x32xf32>
    %36 = arith.mulf %35, %4 : vector<256x32xf32>
    %37 = tpu.concatenate %34, %34, %34, %34 in 0 : vector<64x32xf32>, vector<64x32xf32>, vector<64x32xf32>, vector<64x32xf32> -> vector<256x32xf32>
    %38 = arith.mulf %37, %4 : vector<256x32xf32>
    %cst_20 = arith.constant dense<0.000000e+00> : vector<64x256xf32>
    %39 = tpu.matmul %32, %36, %cst_20 {dimension_numbers = #tpu.dot_dimension_numbers<[1], [1], [0], [0], [0, 0, 1, 0], [], []>} : vector<64x32xf32>, vector<256x32xf32>, vector<64x256xf32> -> vector<64x256xf32>
    %c0_21 = arith.constant 0 : index
    %c0_22 = arith.constant 0 : index
    %40 = vector.load %arg3[%c0_21, %c0_22] : memref<32x512xf32, #tpu.memory_space<vmem>>, vector<32x512xf32>
    %cst_23 = arith.constant dense<0.000000e+00> : vector<64x512xf32>
    %41 = tpu.matmul %32, %40, %cst_23 {dimension_numbers = #tpu.dot_dimension_numbers<[1], [0], [0], [1], [0, 0, 1, 1], [], []>} : vector<64x32xf32>, vector<32x512xf32>, vector<64x512xf32> -> vector<64x512xf32>
    %42 = arith.mulf %41, %5 : vector<64x512xf32>
    %c0_24 = arith.constant 0 : index
    %c0_25 = arith.constant 0 : index
    %43 = vector.load %arg5[%c0_24, %c0_25] : memref<512x256xf32, #tpu.memory_space<vmem>>, vector<512x256xf32>
    %cst_26 = arith.constant dense<0.000000e+00> : vector<64x256xf32>
    %44 = tpu.matmul %42, %43, %cst_26 {dimension_numbers = #tpu.dot_dimension_numbers<[1], [0], [0], [1], [0, 0, 1, 1], [], []>} : vector<64x512xf32>, vector<512x256xf32>, vector<64x256xf32> -> vector<64x256xf32>
    %45 = arith.addf %39, %44 : vector<64x256xf32>
    %cst_27 = arith.constant dense<0xFF800000> : vector<64xf32>
    %46 = vector.multi_reduction <maximumf>, %45, %cst_27 [1] : vector<64x256xf32> to vector<64xf32>
    %47 = vector.shape_cast %46 : vector<64xf32> to vector<64x1xf32>
    %48 = vector.broadcast %47 : vector<64x1xf32> to vector<64x256xf32>
    %49 = arith.subf %45, %48 : vector<64x256xf32>
    %50 = math.exp %49 : vector<64x256xf32>
    %c0_28 = arith.constant 0 : index
    %c0_29 = arith.constant 0 : index
    %51 = vector.load %arg7[%c0_28, %c0_29] : memref<256x256xf32, #tpu.memory_space<vmem>>, vector<256x256xf32>
    %cst_30 = arith.constant dense<0.000000e+00> : vector<64x256xf32>
    %52 = tpu.matmul %50, %51, %cst_30 {dimension_numbers = #tpu.dot_dimension_numbers<[1], [0], [0], [1], [0, 0, 1, 1], [], []>} : vector<64x256xf32>, vector<256x256xf32>, vector<64x256xf32> -> vector<64x256xf32>
    %53 = tpu.reciprocal %52 {approx = true} : vector<64x256xf32> -> vector<64x256xf32>
    %54 = arith.mulf %50, %53 : vector<64x256xf32>
    %cst_31 = arith.constant dense<0.000000e+00> : vector<64x32xf32>
    %55 = tpu.matmul %54, %38, %cst_31 {dimension_numbers = #tpu.dot_dimension_numbers<[1], [0], [0], [1], [0, 0, 1, 1], [], []>} : vector<64x256xf32>, vector<256x32xf32>, vector<64x32xf32> -> vector<64x32xf32>
    %56 = tpu.concatenate %30, %55 in 0 : vector<64x32xf32>, vector<64x32xf32> -> vector<128x32xf32>
    %c0_32 = arith.constant 0 : index
    %c0_33 = arith.constant 0 : index
    %57 = vector.load %arg8[%c0_32, %c0_33] : memref<32x32xf32, #tpu.memory_space<vmem>>, vector<32x32xf32>
    %cst_34 = arith.constant dense<0.000000e+00> : vector<128x32xf32>
    %58 = tpu.matmul %56, %57, %cst_34 {dimension_numbers = #tpu.dot_dimension_numbers<[1], [0], [0], [1], [0, 0, 1, 1], [], []>} : vector<128x32xf32>, vector<32x32xf32>, vector<128x32xf32> -> vector<128x32xf32>
    %c0_35 = arith.constant 0 : index
    %c0_36 = arith.constant 0 : index
    %59 = vector.load %arg9[%c0_35, %c0_36] : memref<1x32xf32, #tpu.memory_space<vmem>>, vector<1x32xf32>
    %60 = vector.broadcast %59 : vector<1x32xf32> to vector<128x32xf32>
    %61 = arith.addf %58, %60 : vector<128x32xf32>
    %62 = vector.shape_cast %61 : vector<128x32xf32> to vector<2x64x32xf32>
    %c0_37 = arith.constant 0 : index
    %c0_38 = arith.constant 0 : index
    %c0_39 = arith.constant 0 : index
    %63 = vector.load %arg10[%c0_37, %c0_38, %c0_39] : memref<2x64x32xf32, #tpu.memory_space<vmem>>, vector<2x64x32xf32>
    tpu.vector_store %arg10[%c0_37, %c0_38, %c0_39], %62 {strides = array<i32>} : memref<2x64x32xf32, #tpu.memory_space<vmem>>, vector<2x64x32xf32>,
    return
  }
  func.func @transform_0(%arg0: i32) -> (i32, i32, i32) {
    %c0_i32 = arith.constant 0 : i32
    %c0_i32_0 = arith.constant 0 : i32
    %c0_i32_1 = arith.constant 0 : i32
    return %arg0, %c0_i32, %c0_i32_0 : i32, i32, i32
  }
  func.func @transform_1(%arg0: i32) -> (i32, i32) {
    %c0_i32 = arith.constant 0 : i32
    %c0_i32_0 = arith.constant 0 : i32
    %c0_i32_1 = arith.constant 0 : i32
    return %c0_i32, %c0_i32_0 : i32, i32
  }
  func.func @transform_2(%arg0: i32) -> (i32, i32) {
    %c0_i32 = arith.constant 0 : i32
    %c0_i32_0 = arith.constant 0 : i32
    %c0_i32_1 = arith.constant 0 : i32
    return %c0_i32, %c0_i32_0 : i32, i32
  }
  func.func @transform_3(%arg0: i32) -> (i32, i32) {
    %c0_i32 = arith.constant 0 : i32
    %c0_i32_0 = arith.constant 0 : i32
    %c0_i32_1 = arith.constant 0 : i32
    return %c0_i32, %c0_i32_0 : i32, i32
  }
  func.func @transform_4(%arg0: i32) -> (i32, i32) {
    %c0_i32 = arith.constant 0 : i32
    %c0_i32_0 = arith.constant 0 : i32
    %c0_i32_1 = arith.constant 0 : i32
    return %c0_i32, %c0_i32_0 : i32, i32
  }
  func.func @transform_5(%arg0: i32) -> (i32, i32) {
    %c0_i32 = arith.constant 0 : i32
    %c0_i32_0 = arith.constant 0 : i32
    %c0_i32_1 = arith.constant 0 : i32
    return %c0_i32, %c0_i32_0 : i32, i32
  }
  func.func @transform_6(%arg0: i32) -> (i32, i32) {
    %c0_i32 = arith.constant 0 : i32
    %c0_i32_0 = arith.constant 0 : i32
    %c0_i32_1 = arith.constant 0 : i32
    return %c0_i32, %c0_i32_0 : i32, i32
  }
  func.func @transform_7(%arg0: i32) -> (i32, i32) {
    %c0_i32 = arith.constant 0 : i32
    %c0_i32_0 = arith.constant 0 : i32
    %c0_i32_1 = arith.constant 0 : i32
    return %c0_i32, %c0_i32_0 : i32, i32
  }
  func.func @transform_8(%arg0: i32) -> (i32, i32) {
    %c0_i32 = arith.constant 0 : i32
    %c0_i32_0 = arith.constant 0 : i32
    %c0_i32_1 = arith.constant 0 : i32
    return %c0_i32, %c0_i32_0 : i32, i32
  }
  func.func @transform_9(%arg0: i32) -> (i32, i32, i32) {
    %c0_i32 = arith.constant 0 : i32
    %c0_i32_0 = arith.constant 0 : i32
    %c0_i32_1 = arith.constant 0 : i32
    return %arg0, %c0_i32, %c0_i32_0 : i32, i32, i32
  }
}

</mosaic_0001>

<llo_original>
// kernel: tpu_custom_call.1
$region0: #{tpu_custom_call.1}
  #allocation0 [shape = 'u32[]', space=smem, size = 0x4, offset = 0x4, fixed_abs, tag = 'smem constant byte address 0x4 - core index']
  #allocation1 [shape = 'u32[144,128]{1,0:T(1,128)}', space=vmem, size = 0x12000, scoped, tag = 'internal scratch']
  %s0 = inlined_call_operand.vmem [shape: f32[2,64,32], index: 0, kind: input, shape index: {}]
  %s1 = inlined_call_operand.hbm [shape: f32[32,96], index: 1, kind: input, shape index: {}]
  %s2 = inlined_call_operand.hbm [shape: f32[32,512], index: 2, kind: input, shape index: {}]
  %s3 = inlined_call_operand.hbm [shape: f32[64,512], index: 3, kind: input, shape index: {}]
  %s4 = inlined_call_operand.hbm [shape: f32[512,256], index: 4, kind: input, shape index: {}]
  %s5 = inlined_call_operand.vmem [shape: f32[256,32], index: 5, kind: input, shape index: {}]
  %s6 = inlined_call_operand.vmem [shape: f32[256,256], index: 6, kind: input, shape index: {}]
  %s7 = inlined_call_operand.hbm [shape: f32[32,32], index: 7, kind: input, shape index: {}]
  %s8 = inlined_call_operand.vmem [shape: f32[1,32], index: 8, kind: input, shape index: {}]
  %s9 = inlined_call_operand.vmem [shape: f32[2,64,32], index: 9, kind: output, shape index: {}]
  %s10 = sld [smem:[#allocation0]]
  $region66: #{tpu_custom_call.1} parent=0
    _
  %s12 = ssub.s32 1, %s10
  %s13 = scalar_select 0, %s12, %s10
  $region1: #{tpu_custom_call.1} parent=0
    #allocation2 [shape = 'u8[16384]{0}', space=vmem, size = 0x4000, scoped, tag = 'input window, operand 1, single buffered']
    #allocation3 [shape = 's32[1]{0}', space=sflag, size = 0x4, scoped, tag = 'scoped memory for tpu_custom_call.1']
    #allocation4 [shape = 'u8[65536]{0}', space=vmem, size = 0x10000, scoped, tag = 'input window, operand 2, single buffered']
    #allocation5 [shape = 's32[1]{0}', space=sflag, size = 0x4, scoped, tag = 'scoped memory for tpu_custom_call.1']
    #allocation6 [shape = 'u8[131072]{0}', space=vmem, size = 0x20000, scoped, tag = 'input window, operand 3, single buffered']
    #allocation7 [shape = 'u8[524288]{0}', space=vmem, size = 0x80000, scoped, tag = 'input window, operand 4, single buffered']
    #allocation8 [shape = 's32[1]{0}', space=sflag, size = 0x4, scoped, tag = 'scoped memory for tpu_custom_call.1']
    #allocation9 [shape = 'u8[16384]{0}', space=vmem, size = 0x4000, scoped, tag = 'input window, operand 7, single buffered']
    %14 = vsyncpa [#allocation3], 0
    %15 = vsyncpa [#allocation5], 0
    %16 = vsyncpa [#allocation8], 0
    // Predicated region
    $region2: #{tpu_custom_call.1} parent=1 // pred_check
      _
    $region3: #{tpu_custom_call.1} parent=1 // pred_check_branch
      %18 = sbr.rel (0) target = $region5
    $region4: #{tpu_custom_call.1} parent=1 // pred_region
      _
    $region5: #{tpu_custom_call.1} parent=1 // pred_fallthru
      _
    // Predicated region
    $region6: #{tpu_custom_call.1} parent=1 // pred_check
      _
    $region7: #{tpu_custom_call.1} parent=1 // pred_check_branch
      %20 = sbr.rel (0) target = $region9
    $region8: #{tpu_custom_call.1} parent=1 // pred_region
      %s22 = ssub.s32 512, 512
      %23 = vsyncadd [#allocation3], %s22
      %s24 = sshll.u32 [#allocation2], 4
      %s25 = int_to_ptr.vmem [resolvable:$true] %s24
      %30 = dma.hbm_to_vmem [thread:$0]  %s1, 512, %s25, [#allocation3], 128, 128, 8
    $region9: #{tpu_custom_call.1} parent=1 // pred_fallthru
      _
    // Predicated region
    $region10: #{tpu_custom_call.1} parent=1 // pred_check
      _
    $region11: #{tpu_custom_call.1} parent=1 // pred_check_branch
      %32 = sbr.rel (0) target = $region13
    $region12: #{tpu_custom_call.1} parent=1 // pred_region
      %s34 = ssub.s32 2048, 2048
      %35 = vsyncadd [#allocation5], %s34
      %s36 = sshll.u32 [#allocation4], 4
      %s37 = int_to_ptr.vmem [resolvable:$true] %s36
      %42 = dma.hbm_to_vmem [thread:$0]  %s2, 2048, %s37, [#allocation5], 512, 512, 32
    $region13: #{tpu_custom_call.1} parent=1 // pred_fallthru
      _
    // Predicated region
    $region14: #{tpu_custom_call.1} parent=1 // pred_check
      _
    $region15: #{tpu_custom_call.1} parent=1 // pred_check_branch
      %44 = sbr.rel (0) target = $region17
    $region16: #{tpu_custom_call.1} parent=1 // pred_region
      %s46 = ssub.s32 4096, 4096
      %47 = vsyncadd [#allocation5], %s46
      %s48 = sshll.u32 [#allocation6], 4
      %s49 = int_to_ptr.vmem [resolvable:$true] %s48
      %54 = dma.hbm_to_vmem [thread:$0]  %s3, 4096, %s49, [#allocation5], 512, 512, 32
    $region17: #{tpu_custom_call.1} parent=1 // pred_fallthru
      _
    // Predicated region
    $region18: #{tpu_custom_call.1} parent=1 // pred_check
      _
    $region19: #{tpu_custom_call.1} parent=1 // pred_check_branch
      %56 = sbr.rel (0) target = $region21
    $region20: #{tpu_custom_call.1} parent=1 // pred_region
      %s58 = ssub.s32 16384, 16384
      %59 = vsyncadd [#allocation8], %s58
      %s60 = sshll.u32 [#allocation7], 4
      %s61 = int_to_ptr.vmem [resolvable:$true] %s60
      %66 = dma.hbm_to_vmem [thread:$0]  %s4, 16384, %s61, [#allocation8], 256, 256, 16
    $region21: #{tpu_custom_call.1} parent=1 // pred_fallthru
      _
    // Predicated region
    $region22: #{tpu_custom_call.1} parent=1 // pred_check
      _
    $region23: #{tpu_custom_call.1} parent=1 // pred_check_branch
      %68 = sbr.rel (0) target = $region25
    $region24: #{tpu_custom_call.1} parent=1 // pred_region
      _
    $region25: #{tpu_custom_call.1} parent=1 // pred_fallthru
      _
    // Predicated region
    $region26: #{tpu_custom_call.1} parent=1 // pred_check
      _
    $region27: #{tpu_custom_call.1} parent=1 // pred_check_branch
      %70 = sbr.rel (0) target = $region29
    $region28: #{tpu_custom_call.1} parent=1 // pred_region
      _
    $region29: #{tpu_custom_call.1} parent=1 // pred_fallthru
      _
    // Predicated region
    $region30: #{tpu_custom_call.1} parent=1 // pred_check
      _
    $region31: #{tpu_custom_call.1} parent=1 // pred_check_branch
      %72 = sbr.rel (0) target = $region33
    $region32: #{tpu_custom_call.1} parent=1 // pred_region
      %s74 = ssub.s32 512, 512
      %75 = vsyncadd [#allocation8], %s74
      %s76 = sshll.u32 [#allocation9], 4
      %s77 = int_to_ptr.vmem [resolvable:$true] %s76
      %82 = dma.hbm_to_vmem [thread:$0]  %s7, 512, %s77, [#allocation8], 128, 128, 8
    $region33: #{tpu_custom_call.1} parent=1 // pred_fallthru
      _
    // Predicated region
    $region34: #{tpu_custom_call.1} parent=1 // pred_check
      _
    $region35: #{tpu_custom_call.1} parent=1 // pred_check_branch
      %84 = sbr.rel (0) target = $region37
    $region36: #{tpu_custom_call.1} parent=1 // pred_region
      _
    $region37: #{tpu_custom_call.1} parent=1 // pred_fallthru
      _
    // Predicated region
    $region38: #{tpu_custom_call.1} parent=1 // pred_check
      _
    $region39: #{tpu_custom_call.1} parent=1 // pred_check_branch
      %86 = sbr.rel (0) target = $region41
    $region40: #{tpu_custom_call.1} parent=1 // pred_region
      %87 = dma.done [#allocation3], 512
    $region41: #{tpu_custom_call.1} parent=1 // pred_fallthru
      _
    // Predicated region
    $region42: #{tpu_custom_call.1} parent=1 // pred_check
      _
    $region43: #{tpu_custom_call.1} parent=1 // pred_check_branch
      %89 = sbr.rel (0) target = $region45
    $region44: #{tpu_custom_call.1} parent=1 // pred_region
      %90 = dma.done [#allocation5], 2048
    $region45: #{tpu_custom_call.1} parent=1 // pred_fallthru
      _
    // Predicated region
    $region46: #{tpu_custom_call.1} parent=1 // pred_check
      _
    $region47: #{tpu_custom_call.1} parent=1 // pred_check_branch
      %92 = sbr.rel (0) target = $region49
    $region48: #{tpu_custom_call.1} parent=1 // pred_region
      %93 = dma.done [#allocation5], 4096
    $region49: #{tpu_custom_call.1} parent=1 // pred_fallthru
      _
    // Predicated region
    $region50: #{tpu_custom_call.1} parent=1 // pred_check
      _
    $region51: #{tpu_custom_call.1} parent=1 // pred_check_branch
      %95 = sbr.rel (0) target = $region53
    $region52: #{tpu_custom_call.1} parent=1 // pred_region
      %96 = dma.done [#allocation8], 16384
    $region53: #{tpu_custom_call.1} parent=1 // pred_fallthru
      _
    // Predicated region
    $region54: #{tpu_custom_call.1} parent=1 // pred_check
      _
    $region55: #{tpu_custom_call.1} parent=1 // pred_check_branch
      %98 = sbr.rel (0) target = $region57
    $region56: #{tpu_custom_call.1} parent=1 // pred_region
      %99 = dma.done [#allocation8], 512
    $region57: #{tpu_custom_call.1} parent=1 // pred_fallthru
      _
    %v100 = vld [vmem:[%s0] sm:$0xff]
    %v101 = vld [vmem:[%s0 + $0x8] sm:$0xff]
    %v102 = vld [vmem:[%s0 + $0x10] sm:$0xff]
    %v103 = vld [vmem:[%s0 + $0x18] sm:$0xff]
    %v104 = vld [vmem:[%s0 + $0x20] sm:$0xff]
    %v105 = vld [vmem:[%s0 + $0x28] sm:$0xff]
    %v106 = vld [vmem:[%s0 + $0x30] sm:$0xff]
    %v107 = vld [vmem:[%s0 + $0x38] sm:$0xff]
    %v108 = vld [vmem:[%s0 + $0x40] sm:$0xff]
    %v109 = vld [vmem:[%s0 + $0x48] sm:$0xff]
    %v110 = vld [vmem:[%s0 + $0x50] sm:$0xff]
    %v111 = vld [vmem:[%s0 + $0x58] sm:$0xff]
    %v112 = vld [vmem:[%s0 + $0x60] sm:$0xff]
    %v113 = vld [vmem:[%s0 + $0x68] sm:$0xff]
    %v114 = vld [vmem:[%s0 + $0x70] sm:$0xff]
    %v115 = vld [vmem:[%s0 + $0x78] sm:$0xff]
    %v116 = vld [vmem:[#allocation2] sm:$0xff]
    %v117 = vld [vmem:[#allocation2 + $0x8] sm:$0xff]
    %v118 = vld [vmem:[#allocation2 + $0x10] sm:$0xff]
    %v119 = vld [vmem:[#allocation2 + $0x18] sm:$0xff]
    %vm120 = vcmask 261120
    %v122 = vsel %vm120, %v100, 0
    %v125 = vsel %vm120, %v101, 0
    %v128 = vsel %vm120, %v102, 0
    %v131 = vsel %vm120, %v103, 0
    %v134 = vsel %vm120, %v104, 0
    %v137 = vsel %vm120, %v105, 0
    %v140 = vsel %vm120, %v106, 0
    %v143 = vsel %vm120, %v107, 0
    %v146 = vsel %vm120, %v108, 0
    %v149 = vsel %vm120, %v109, 0
    %v152 = vsel %vm120, %v110, 0
    %v155 = vsel %vm120, %v111, 0
    %v158 = vsel %vm120, %v112, 0
    %v161 = vsel %vm120, %v113, 0
    %v164 = vsel %vm120, %v114, 0
    %v167 = vsel %vm120, %v115, 0
    %169 = vmatprep.subr.mxu0 0.0
    %170 = vmatpush1.msra.mxu0 %v116
    %171 = vmatprep.subr.mxu0 0.0
    %172 = vmatpush1.msra.mxu0 %v117
    %173 = vmatprep.subr.mxu0 0.0
    %174 = vmatpush1.msra.mxu0 %v118
    %175 = vmatprep.subr.mxu0 0.0
    %176 = vmatpush1.msra.mxu0 %v119
    %177 = vmatprep.subr.mxu0 0.0
    %178 = vmatpush1.msra.mxu0 0.0
    %179 = vmatprep.subr.mxu0 0.0
    %180 = vmatpush1.msra.mxu0 0.0
    %181 = vmatprep.subr.mxu0 0.0
    %182 = vmatpush1.msra.mxu0 0.0
    %183 = vmatprep.subr.mxu0 0.0
    %184 = vmatpush1.msra.mxu0 0.0
    %185 = vmatprep.subr.mxu0 0.0
    %186 = vmatpush1.msra.mxu0 0.0
    %187 = vmatprep.subr.mxu0 0.0
    %188 = vmatpush1.msra.mxu0 0.0
    %189 = vmatprep.subr.mxu0 0.0
    %190 = vmatpush1.msra.mxu0 0.0
    %191 = vmatprep.subr.mxu0 0.0
    %192 = vmatpush1.msra.mxu0 0.0
    %193 = vmatprep.subr.mxu0 0.0
    %194 = vmatpush1.msra.mxu0 0.0
    %195 = vmatprep.subr.mxu0 0.0
    %196 = vmatpush1.msra.mxu0 0.0
    %197 = vmatprep.subr.mxu0 0.0
    %198 = vmatpush1.msra.mxu0 0.0
    %199 = vmatprep.subr.mxu0 0.0
    %200 = vmatpush1.msra.mxu0 0.0
    %201 = vmatprep.subr.mxu0 0.0
    %202 = vmatpush1.msra.mxu0 0.0
    %203 = vmatprep.subr.mxu0 0.0
    %204 = vmatpush1.msra.mxu0 0.0
    %205 = vmatprep.subr.mxu0 0.0
    %206 = vmatpush1.msra.mxu0 0.0
    %207 = vmatprep.subr.mxu0 0.0
    %208 = vmatpush1.msra.mxu0 0.0
    %209 = vmatprep.subr.mxu0 0.0
    %210 = vmatpush1.msra.mxu0 0.0
    %211 = vmatprep.subr.mxu0 0.0
    %212 = vmatpush1.msra.mxu0 0.0
    %213 = vmatprep.subr.mxu0 0.0
    %214 = vmatpush1.msra.mxu0 0.0
    %215 = vmatprep.subr.mxu0 0.0
    %216 = vmatpush1.msra.mxu0 0.0
    %217 = vmatprep.subr.mxu0 0.0
    %218 = vmatpush1.msra.mxu0 0.0
    %219 = vmatprep.subr.mxu0 0.0
    %220 = vmatpush1.msra.mxu0 0.0
    %221 = vmatprep.subr.mxu0 0.0
    %222 = vmatpush1.msra.mxu0 0.0
    %223 = vmatprep.subr.mxu0 0.0
    %224 = vmatpush1.msra.mxu0 0.0
    %225 = vmatprep.subr.mxu0 0.0
    %226 = vmatpush1.msra.mxu0 0.0
    %227 = vmatprep.subr.mxu0 0.0
    %228 = vmatpush1.msra.mxu0 0.0
    %229 = vmatprep.subr.mxu0 0.0
    %230 = vmatpush1.msra.mxu0 0.0
    %231 = vmatprep.subr.mxu0 0.0
    %232 = vmatpush1.msra.mxu0 0.0
    %233 = vmatprep.mubr.f32.mxu0 0.0
    %234 = vmatmul.mubr.f32.gmra.mrb[0].mxu0 %v122
    %v235 = vpop.f32.mrb[0].mxu0
    %v236 = vadd.f32 0.0, %v235
    %v237 = vpop.f32.mrb[0].mxu0
    %238 = vmatprep.mubr.f32.mxu0 0.0
    %239 = vmatmul.mubr.f32.gmra.mrb[0].mxu0 %v125
    %v240 = vpop.f32.mrb[0].mxu0
    %v241 = vadd.f32 0.0, %v240
    %v242 = vpop.f32.mrb[0].mxu0
    %243 = vmatprep.mubr.f32.mxu0 0.0
    %244 = vmatmul.mubr.f32.gmra.mrb[0].mxu0 %v128
    %v245 = vpop.f32.mrb[0].mxu0
    %v246 = vadd.f32 0.0, %v245
    %v247 = vpop.f32.mrb[0].mxu0
    %248 = vmatprep.mubr.f32.mxu0 0.0
    %249 = vmatmul.mubr.f32.gmra.mrb[0].mxu0 %v131
    %v250 = vpop.f32.mrb[0].mxu0
    %v251 = vadd.f32 0.0, %v250
    %v252 = vpop.f32.mrb[0].mxu0
    %253 = vmatprep.mubr.f32.mxu0 0.0
    %254 = vmatmul.mubr.f32.gmra.mrb[0].mxu0 %v134
    %v255 = vpop.f32.mrb[0].mxu0
    %v256 = vadd.f32 0.0, %v255
    %v257 = vpop.f32.mrb[0].mxu0
    %258 = vmatprep.mubr.f32.mxu0 0.0
    %259 = vmatmul.mubr.f32.gmra.mrb[0].mxu0 %v137
    %v260 = vpop.f32.mrb[0].mxu0
    %v261 = vadd.f32 0.0, %v260
    %v262 = vpop.f32.mrb[0].mxu0
    %263 = vmatprep.mubr.f32.mxu0 0.0
    %264 = vmatmul.mubr.f32.gmra.mrb[0].mxu0 %v140
    %v265 = vpop.f32.mrb[0].mxu0
    %v266 = vadd.f32 0.0, %v265
    %v267 = vpop.f32.mrb[0].mxu0
    %268 = vmatprep.mubr.f32.mxu0 0.0
    %269 = vmatmul.mubr.f32.gmra.mrb[0].mxu0 %v143
    %v270 = vpop.f32.mrb[0].mxu0
    %v271 = vadd.f32 0.0, %v270
    %v272 = vpop.f32.mrb[0].mxu0
    %273 = vmatprep.mubr.f32.mxu0 0.0
    %274 = vmatmul.mubr.f32.gmra.mrb[0].mxu0 %v146
    %v275 = vpop.f32.mrb[0].mxu0
    %v276 = vadd.f32 0.0, %v275
    %v277 = vpop.f32.mrb[0].mxu0
    %278 = vmatprep.mubr.f32.mxu0 0.0
    %279 = vmatmul.mubr.f32.gmra.mrb[0].mxu0 %v149
    %v280 = vpop.f32.mrb[0].mxu0
    %v281 = vadd.f32 0.0, %v280
    %v282 = vpop.f32.mrb[0].mxu0
    %283 = vmatprep.mubr.f32.mxu0 0.0
    %284 = vmatmul.mubr.f32.gmra.mrb[0].mxu0 %v152
    %v285 = vpop.f32.mrb[0].mxu0
    %v286 = vadd.f32 0.0, %v285
    %v287 = vpop.f32.mrb[0].mxu0
    %288 = vmatprep.mubr.f32.mxu0 0.0
    %289 = vmatmul.mubr.f32.gmra.mrb[0].mxu0 %v155
    %v290 = vpop.f32.mrb[0].mxu0
    %v291 = vadd.f32 0.0, %v290
    %v292 = vpop.f32.mrb[0].mxu0
    %293 = vmatprep.mubr.f32.mxu0 0.0
    %294 = vmatmul.mubr.f32.gmra.mrb[0].mxu0 %v158
    %v295 = vpop.f32.mrb[0].mxu0
    %v296 = vadd.f32 0.0, %v295
    %v297 = vpop.f32.mrb[0].mxu0
    %298 = vmatprep.mubr.f32.mxu0 0.0
    %299 = vmatmul.mubr.f32.gmra.mrb[0].mxu0 %v161
    %v300 = vpop.f32.mrb[0].mxu0
    %v301 = vadd.f32 0.0, %v300
    %v302 = vpop.f32.mrb[0].mxu0
    %303 = vmatprep.mubr.f32.mxu0 0.0
    %304 = vmatmul.mubr.f32.gmra.mrb[0].mxu0 %v164
    %v305 = vpop.f32.mrb[0].mxu0
    %v306 = vadd.f32 0.0, %v305
    %v307 = vpop.f32.mrb[0].mxu0
    %308 = vmatprep.mubr.f32.mxu0 0.0
    %309 = vmatmul.mubr.f32.gmra.mrb[0].mxu0 %v167
    %v310 = vpop.f32.mrb[0].mxu0
    %v311 = vadd.f32 0.0, %v310
    %v312 = vpop.f32.mrb[0].mxu0
    %313 = vdwg.mxu0
    %v314 = vld [vmem:[%s5] sm:$0xff]
    %v315 = vld [vmem:[%s5 + $0x8] sm:$0xff]
    %v316 = vld [vmem:[%s5 + $0x10] sm:$0xff]
    %v317 = vld [vmem:[%s5 + $0x18] sm:$0xff]
    %v318 = vld [vmem:[%s5 + $0x20] sm:$0xff]
    %v319 = vld [vmem:[%s5 + $0x28] sm:$0xff]
    %v320 = vld [vmem:[%s5 + $0x30] sm:$0xff]
    %v321 = vld [vmem:[%s5 + $0x38] sm:$0xff]
    %v322 = vld [vmem:[%s5 + $0x40] sm:$0xff]
    %v323 = vld [vmem:[%s5 + $0x48] sm:$0xff]
    %v324 = vld [vmem:[%s5 + $0x50] sm:$0xff]
    %v325 = vld [vmem:[%s5 + $0x58] sm:$0xff]
    %v326 = vld [vmem:[%s5 + $0x60] sm:$0xff]
    %v327 = vld [vmem:[%s5 + $0x68] sm:$0xff]
    %v328 = vld [vmem:[%s5 + $0x70] sm:$0xff]
    %v329 = vld [vmem:[%s5 + $0x78] sm:$0xff]
    %v330 = vld [vmem:[%s5 + $0x80] sm:$0xff]
    %v331 = vld [vmem:[%s5 + $0x88] sm:$0xff]
    %v332 = vld [vmem:[%s5 + $0x90] sm:$0xff]
    %v333 = vld [vmem:[%s5 + $0x98] sm:$0xff]
    %v334 = vld [vmem:[%s5 + $0xa0] sm:$0xff]
    %v335 = vld [vmem:[%s5 + $0xa8] sm:$0xff]
    %v336 = vld [vmem:[%s5 + $0xb0] sm:$0xff]
    %v337 = vld [vmem:[%s5 + $0xb8] sm:$0xff]
    %v338 = vld [vmem:[%s5 + $0xc0] sm:$0xff]
    %v339 = vld [vmem:[%s5 + $0xc8] sm:$0xff]
    %v340 = vld [vmem:[%s5 + $0xd0] sm:$0xff]
    %v341 = vld [vmem:[%s5 + $0xd8] sm:$0xff]
    %v342 = vld [vmem:[%s5 + $0xe0] sm:$0xff]
    %v343 = vld [vmem:[%s5 + $0xe8] sm:$0xff]
    %v344 = vld [vmem:[%s5 + $0xf0] sm:$0xff]
    %v345 = vld [vmem:[%s5 + $0xf8] sm:$0xff]
    %v346 = vld [vmem:[#allocation6] sm:$0xff]
    %v347 = vld [vmem:[#allocation6 + $0x8] sm:$0xff]
    %v348 = vld [vmem:[#allocation6 + $0x10] sm:$0xff]
    %v349 = vld [vmem:[#allocation6 + $0x18] sm:$0xff]
    %v350 = vld [vmem:[#allocation6 + $0x20] sm:$0xff]
    %v351 = vld [vmem:[#allocation6 + $0x28] sm:$0xff]
    %v352 = vld [vmem:[#allocation6 + $0x30] sm:$0xff]
    %v353 = vld [vmem:[#allocation6 + $0x38] sm:$0xff]
    %v354 = vld [vmem:[#allocation6 + $0x40] sm:$0xff]
    %v355 = vld [vmem:[#allocation6 + $0x48] sm:$0xff]
    %v356 = vld [vmem:[#allocation6 + $0x50] sm:$0xff]
    %v357 = vld [vmem:[#allocation6 + $0x58] sm:$0xff]
    %v358 = vld [vmem:[#allocation6 + $0x60] sm:$0xff]
    %v359 = vld [vmem:[#allocation6 + $0x68] sm:$0xff]
    %v360 = vld [vmem:[#allocation6 + $0x70] sm:$0xff]
    %v361 = vld [vmem:[#allocation6 + $0x78] sm:$0xff]
    %v362 = vld [vmem:[#allocation6 + $0x80] sm:$0xff]
    %v363 = vld [vmem:[#allocation6 + $0x88] sm:$0xff]
    %v364 = vld [vmem:[#allocation6 + $0x90] sm:$0xff]
    %v365 = vld [vmem:[#allocation6 + $0x98] sm:$0xff]
    %v366 = vld [vmem:[#allocation6 + $0xa0] sm:$0xff]
    %v367 = vld [vmem:[#allocation6 + $0xa8] sm:$0xff]
    %v368 = vld [vmem:[#allocation6 + $0xb0] sm:$0xff]
    %v369 = vld [vmem:[#allocation6 + $0xb8] sm:$0xff]
    %v370 = vld [vmem:[#allocation6 + $0xc0] sm:$0xff]
    %v371 = vld [vmem:[#allocation6 + $0xc8] sm:$0xff]
    %v372 = vld [vmem:[#allocation6 + $0xd0] sm:$0xff]
    %v373 = vld [vmem:[#allocation6 + $0xd8] sm:$0xff]
    %v374 = vld [vmem:[#allocation6 + $0xe0] sm:$0xff]
    %v375 = vld [vmem:[#allocation6 + $0xe8] sm:$0xff]
    %v376 = vld [vmem:[#allocation6 + $0xf0] sm:$0xff]
    %v377 = vld [vmem:[#allocation6 + $0xf8] sm:$0xff]
    %410 = vrot.lane.b32.xlu0 %v314, 32
    %v411 = vpop.permute.xlu0 %410
    %412 = vrot.lane.b32.xlu0 %v315, 32
    %v413 = vpop.permute.xlu0 %412
    %414 = vrot.lane.b32.xlu0 %v316, 32
    %v415 = vpop.permute.xlu0 %414
    %416 = vrot.lane.b32.xlu0 %v317, 32
    %v417 = vpop.permute.xlu0 %416
    %418 = vrot.lane.b32.xlu0 %v318, 32
    %v419 = vpop.permute.xlu0 %418
    %420 = vrot.lane.b32.xlu0 %v319, 32
    %v421 = vpop.permute.xlu0 %420
    %422 = vrot.lane.b32.xlu0 %v320, 32
    %v423 = vpop.permute.xlu0 %422
    %424 = vrot.lane.b32.xlu0 %v321, 32
    %v425 = vpop.permute.xlu0 %424
    %426 = vrot.lane.b32.xlu0 %v322, 32
    %v427 = vpop.permute.xlu0 %426
    %428 = vrot.lane.b32.xlu0 %v323, 32
    %v429 = vpop.permute.xlu0 %428
    %430 = vrot.lane.b32.xlu0 %v324, 32
    %v431 = vpop.permute.xlu0 %430
    %432 = vrot.lane.b32.xlu0 %v325, 32
    %v433 = vpop.permute.xlu0 %432
    %434 = vrot.lane.b32.xlu0 %v326, 32
    %v435 = vpop.permute.xlu0 %434
    %436 = vrot.lane.b32.xlu0 %v327, 32
    %v437 = vpop.permute.xlu0 %436
    %438 = vrot.lane.b32.xlu0 %v328, 32
    %v439 = vpop.permute.xlu0 %438
    %440 = vrot.lane.b32.xlu0 %v329, 32
    %v441 = vpop.permute.xlu0 %440
    %442 = vrot.lane.b32.xlu0 %v330, 32
    %v443 = vpop.permute.xlu0 %442
    %444 = vrot.lane.b32.xlu0 %v331, 32
    %v445 = vpop.permute.xlu0 %444
    %446 = vrot.lane.b32.xlu0 %v332, 32
    %v447 = vpop.permute.xlu0 %446
    %448 = vrot.lane.b32.xlu0 %v333, 32
    %v449 = vpop.permute.xlu0 %448
    %450 = vrot.lane.b32.xlu0 %v334, 32
    %v451 = vpop.permute.xlu0 %450
    %452 = vrot.lane.b32.xlu0 %v335, 32
    %v453 = vpop.permute.xlu0 %452
    %454 = vrot.lane.b32.xlu0 %v336, 32
    %v455 = vpop.permute.xlu0 %454
    %456 = vrot.lane.b32.xlu0 %v337, 32
    %v457 = vpop.permute.xlu0 %456
    %458 = vrot.lane.b32.xlu0 %v338, 32
    %v459 = vpop.permute.xlu0 %458
    %460 = vrot.lane.b32.xlu0 %v339, 32
    %v461 = vpop.permute.xlu0 %460
    %462 = vrot.lane.b32.xlu0 %v340, 32
    %v463 = vpop.permute.xlu0 %462
    %464 = vrot.lane.b32.xlu0 %v341, 32
    %v465 = vpop.permute.xlu0 %464
    %466 = vrot.lane.b32.xlu0 %v342, 32
    %v467 = vpop.permute.xlu0 %466
    %468 = vrot.lane.b32.xlu0 %v343, 32
    %v469 = vpop.permute.xlu0 %468
    %470 = vrot.lane.b32.xlu0 %v344, 32
    %v471 = vpop.permute.xlu0 %470
    %472 = vrot.lane.b32.xlu0 %v345, 32
    %v473 = vpop.permute.xlu0 %472
    %v506 = vmul.f32 %v236, %v411
    %v507 = vmul.f32 %v241, %v413
    %v508 = vmul.f32 %v246, %v415
    %v509 = vmul.f32 %v251, %v417
    %v510 = vmul.f32 %v256, %v419
    %v511 = vmul.f32 %v261, %v421
    %v512 = vmul.f32 %v266, %v423
    %v513 = vmul.f32 %v271, %v425
    %v514 = vmul.f32 %v236, %v427
    %v515 = vmul.f32 %v241, %v429
    %v516 = vmul.f32 %v246, %v431
    %v517 = vmul.f32 %v251, %v433
    %v518 = vmul.f32 %v256, %v435
    %v519 = vmul.f32 %v261, %v437
    %v520 = vmul.f32 %v266, %v439
    %v521 = vmul.f32 %v271, %v441
    %v522 = vmul.f32 %v236, %v443
    %v523 = vmul.f32 %v241, %v445
    %v524 = vmul.f32 %v246, %v447
    %v525 = vmul.f32 %v251, %v449
    %v526 = vmul.f32 %v256, %v451
    %v527 = vmul.f32 %v261, %v453
    %v528 = vmul.f32 %v266, %v455
    %v529 = vmul.f32 %v271, %v457
    %v530 = vmul.f32 %v236, %v459
    %v531 = vmul.f32 %v241, %v461
    %v532 = vmul.f32 %v246, %v463
    %v533 = vmul.f32 %v251, %v465
    %v534 = vmul.f32 %v256, %v467
    %v535 = vmul.f32 %v261, %v469
    %v536 = vmul.f32 %v266, %v471
    %v537 = vmul.f32 %v271, %v473
    %538 = vrot.lane.b32.xlu0 %v314, 64
    %v539 = vpop.permute.xlu0 %538
    %540 = vrot.lane.b32.xlu0 %v315, 64
    %v541 = vpop.permute.xlu0 %540
    %542 = vrot.lane.b32.xlu0 %v316, 64
    %v543 = vpop.permute.xlu0 %542
    %544 = vrot.lane.b32.xlu0 %v317, 64
    %v545 = vpop.permute.xlu0 %544
    %546 = vrot.lane.b32.xlu0 %v318, 64
    %v547 = vpop.permute.xlu0 %546
    %548 = vrot.lane.b32.xlu0 %v319, 64
    %v549 = vpop.permute.xlu0 %548
    %550 = vrot.lane.b32.xlu0 %v320, 64
    %v551 = vpop.permute.xlu0 %550
    %552 = vrot.lane.b32.xlu0 %v321, 64
    %v553 = vpop.permute.xlu0 %552
    %554 = vrot.lane.b32.xlu0 %v322, 64
    %v555 = vpop.permute.xlu0 %554
    %556 = vrot.lane.b32.xlu0 %v323, 64
    %v557 = vpop.permute.xlu0 %556
    %558 = vrot.lane.b32.xlu0 %v324, 64
    %v559 = vpop.permute.xlu0 %558
    %560 = vrot.lane.b32.xlu0 %v325, 64
    %v561 = vpop.permute.xlu0 %560
    %562 = vrot.lane.b32.xlu0 %v326, 64
    %v563 = vpop.permute.xlu0 %562
    %564 = vrot.lane.b32.xlu0 %v327, 64
    %v565 = vpop.permute.xlu0 %564
    %566 = vrot.lane.b32.xlu0 %v328, 64
    %v567 = vpop.permute.xlu0 %566
    %568 = vrot.lane.b32.xlu0 %v329, 64
    %v569 = vpop.permute.xlu0 %568
    %570 = vrot.lane.b32.xlu0 %v330, 64
    %v571 = vpop.permute.xlu0 %570
    %572 = vrot.lane.b32.xlu0 %v331, 64
    %v573 = vpop.permute.xlu0 %572
    %574 = vrot.lane.b32.xlu0 %v332, 64
    %v575 = vpop.permute.xlu0 %574
    %576 = vrot.lane.b32.xlu0 %v333, 64
    %v577 = vpop.permute.xlu0 %576
    %578 = vrot.lane.b32.xlu0 %v334, 64
    %v579 = vpop.permute.xlu0 %578
    %580 = vrot.lane.b32.xlu0 %v335, 64
    %v581 = vpop.permute.xlu0 %580
    %582 = vrot.lane.b32.xlu0 %v336, 64
    %v583 = vpop.permute.xlu0 %582
    %584 = vrot.lane.b32.xlu0 %v337, 64
    %v585 = vpop.permute.xlu0 %584
    %586 = vrot.lane.b32.xlu0 %v338, 64
    %v587 = vpop.permute.xlu0 %586
    %588 = vrot.lane.b32.xlu0 %v339, 64
    %v589 = vpop.permute.xlu0 %588
    %590 = vrot.lane.b32.xlu0 %v340, 64
    %v591 = vpop.permute.xlu0 %590
    %592 = vrot.lane.b32.xlu0 %v341, 64
    %v593 = vpop.permute.xlu0 %592
    %594 = vrot.lane.b32.xlu0 %v342, 64
    %v595 = vpop.permute.xlu0 %594
    %596 = vrot.lane.b32.xlu0 %v343, 64
    %v597 = vpop.permute.xlu0 %596
    %598 = vrot.lane.b32.xlu0 %v344, 64
    %v599 = vpop.permute.xlu0 %598
    %600 = vrot.lane.b32.xlu0 %v345, 64
    %v601 = vpop.permute.xlu0 %600
    %v634 = vmul.f32 %v236, %v539
    %v635 = vmul.f32 %v241, %v541
    %v636 = vmul.f32 %v246, %v543
    %v637 = vmul.f32 %v251, %v545
    %v638 = vmul.f32 %v256, %v547
    %v639 = vmul.f32 %v261, %v549
    %v640 = vmul.f32 %v266, %v551
    %v641 = vmul.f32 %v271, %v553
    %v642 = vmul.f32 %v236, %v555
    %v643 = vmul.f32 %v241, %v557
    %v644 = vmul.f32 %v246, %v559
    %v645 = vmul.f32 %v251, %v561
    %v646 = vmul.f32 %v256, %v563
    %v647 = vmul.f32 %v261, %v565
    %v648 = vmul.f32 %v266, %v567
    %v649 = vmul.f32 %v271, %v569
    %v650 = vmul.f32 %v236, %v571
    %v651 = vmul.f32 %v241, %v573
    %v652 = vmul.f32 %v246, %v575
    %v653 = vmul.f32 %v251, %v577
    %v654 = vmul.f32 %v256, %v579
    %v655 = vmul.f32 %v261, %v581
    %v656 = vmul.f32 %v266, %v583
    %v657 = vmul.f32 %v271, %v585
    %v658 = vmul.f32 %v236, %v587
    %v659 = vmul.f32 %v241, %v589
    %v660 = vmul.f32 %v246, %v591
    %v661 = vmul.f32 %v251, %v593
    %v662 = vmul.f32 %v256, %v595
    %v663 = vmul.f32 %v261, %v597
    %v664 = vmul.f32 %v266, %v599
    %v665 = vmul.f32 %v271, %v601
    %v666 = vld [vmem:[#allocation4] sm:$0xff]
    %v667 = vld [vmem:[#allocation4 + $0x8] sm:$0xff]
    %v668 = vld [vmem:[#allocation4 + $0x10] sm:$0xff]
    %v669 = vld [vmem:[#allocation4 + $0x18] sm:$0xff]
    %v670 = vld [vmem:[#allocation4 + $0x20] sm:$0xff]
    %v671 = vld [vmem:[#allocation4 + $0x28] sm:$0xff]
    %v672 = vld [vmem:[#allocation4 + $0x30] sm:$0xff]
    %v673 = vld [vmem:[#allocation4 + $0x38] sm:$0xff]
    %v674 = vld [vmem:[#allocation4 + $0x40] sm:$0xff]
    %v675 = vld [vmem:[#allocation4 + $0x48] sm:$0xff]
    %v676 = vld [vmem:[#allocation4 + $0x50] sm:$0xff]
    %v677 = vld [vmem:[#allocation4 + $0x58] sm:$0xff]
    %v678 = vld [vmem:[#allocation4 + $0x60] sm:$0xff]
    %v679 = vld [vmem:[#allocation4 + $0x68] sm:$0xff]
    %v680 = vld [vmem:[#allocation4 + $0x70] sm:$0xff]
    %v681 = vld [vmem:[#allocation4 + $0x78] sm:$0xff]
    %v683 = vsel %vm120, %v236, 0
    %v686 = vsel %vm120, %v241, 0
    %v689 = vsel %vm120, %v246, 0
    %v692 = vsel %vm120, %v251, 0
    %v695 = vsel %vm120, %v256, 0
    %v698 = vsel %vm120, %v261, 0
    %v701 = vsel %vm120, %v266, 0
    %v704 = vsel %vm120, %v271, 0
    %706 = vmatprep.subr.mxu0 %v667
    %707 = vmatpush1.msra.mxu0 %v666
    %708 = vmatprep.subr.mxu0 %v671
    %709 = vmatpush1.msra.mxu0 %v670
    %710 = vmatprep.subr.mxu0 %v675
    %711 = vmatpush1.msra.mxu0 %v674
    %712 = vmatprep.subr.mxu0 %v679
    %713 = vmatpush1.msra.mxu0 %v678
    %714 = vmatprep.subr.mxu0 0.0
    %715 = vmatpush1.msra.mxu0 0.0
    %716 = vmatprep.subr.mxu0 0.0
    %717 = vmatpush1.msra.mxu0 0.0
    %718 = vmatprep.subr.mxu0 0.0
    %719 = vmatpush1.msra.mxu0 0.0
    %720 = vmatprep.subr.mxu0 0.0
    %721 = vmatpush1.msra.mxu0 0.0
    %722 = vmatprep.subr.mxu0 0.0
    %723 = vmatpush1.msra.mxu0 0.0
    %724 = vmatprep.subr.mxu0 0.0
    %725 = vmatpush1.msra.mxu0 0.0
    %726 = vmatprep.subr.mxu0 0.0
    %727 = vmatpush1.msra.mxu0 0.0
    %728 = vmatprep.subr.mxu0 0.0
    %729 = vmatpush1.msra.mxu0 0.0
    %730 = vmatprep.subr.mxu0 0.0
    %731 = vmatpush1.msra.mxu0 0.0
    %732 = vmatprep.subr.mxu0 0.0
    %733 = vmatpush1.msra.mxu0 0.0
    %734 = vmatprep.subr.mxu0 0.0
    %735 = vmatpush1.msra.mxu0 0.0
    %736 = vmatprep.subr.mxu0 0.0
    %737 = vmatpush1.msra.mxu0 0.0
    %738 = vmatprep.subr.mxu0 0.0
    %739 = vmatpush1.msra.mxu0 0.0
    %740 = vmatprep.subr.mxu0 0.0
    %741 = vmatpush1.msra.mxu0 0.0
    %742 = vmatprep.subr.mxu0 0.0
    %743 = vmatpush1.msra.mxu0 0.0
    %744 = vmatprep.subr.mxu0 0.0
    %745 = vmatpush1.msra.mxu0 0.0
    %746 = vmatprep.subr.mxu0 0.0
    %747 = vmatpush1.msra.mxu0 0.0
    %748 = vmatprep.subr.mxu0 0.0
    %749 = vmatpush1.msra.mxu0 0.0
    %750 = vmatprep.subr.mxu0 0.0
    %751 = vmatpush1.msra.mxu0 0.0
    %752 = vmatprep.subr.mxu0 0.0
    %753 = vmatpush1.msra.mxu0 0.0
    %754 = vmatprep.subr.mxu0 0.0
    %755 = vmatpush1.msra.mxu0 0.0
    %756 = vmatprep.subr.mxu0 0.0
    %757 = vmatpush1.msra.mxu0 0.0
    %758 = vmatprep.subr.mxu0 0.0
    %759 = vmatpush1.msra.mxu0 0.0
    %760 = vmatprep.subr.mxu0 0.0
    %761 = vmatpush1.msra.mxu0 0.0
    %762 = vmatprep.subr.mxu0 0.0
    %763 = vmatpush1.msra.mxu0 0.0
    %764 = vmatprep.subr.mxu0 0.0
    %765 = vmatpush1.msra.mxu0 0.0
    %766 = vmatprep.subr.mxu0 0.0
    %767 = vmatpush1.msra.mxu0 0.0
    %768 = vmatprep.subr.mxu0 0.0
    %769 = vmatpush1.msra.mxu0 0.0
    %770 = vmatprep.mubr.f32.mxu0 0.0
    %771 = vmatmul.mubr.f32.gmra.mrb[0].mxu0 %v683
    %v772 = vpop.f32.mrb[0].mxu0
    %v773 = vadd.f32 0.0, %v772
    %v774 = vpop.f32.mrb[0].mxu0
    %v775 = vadd.f32 0.0, %v774
    %776 = vmatprep.mubr.f32.mxu0 0.0
    %777 = vmatmul.mubr.f32.gmra.mrb[0].mxu0 %v686
    %v778 = vpop.f32.mrb[0].mxu0
    %v779 = vadd.f32 0.0, %v778
    %v780 = vpop.f32.mrb[0].mxu0
    %v781 = vadd.f32 0.0, %v780
    %782 = vmatprep.mubr.f32.mxu0 0.0
    %783 = vmatmul.mubr.f32.gmra.mrb[0].mxu0 %v689
    %v784 = vpop.f32.mrb[0].mxu0
    %v785 = vadd.f32 0.0, %v784
    %v786 = vpop.f32.mrb[0].mxu0
    %v787 = vadd.f32 0.0, %v786
    %788 = vmatprep.mubr.f32.mxu0 0.0
    %789 = vmatmul.mubr.f32.gmra.mrb[0].mxu0 %v692
    %v790 = vpop.f32.mrb[0].mxu0
    %v791 = vadd.f32 0.0, %v790
    %v792 = vpop.f32.mrb[0].mxu0
    %v793 = vadd.f32 0.0, %v792
    %794 = vmatprep.mubr.f32.mxu0 0.0
    %795 = vmatmul.mubr.f32.gmra.mrb[0].mxu0 %v695
    %v796 = vpop.f32.mrb[0].mxu0
    %v797 = vadd.f32 0.0, %v796
    %v798 = vpop.f32.mrb[0].mxu0
    %v799 = vadd.f32 0.0, %v798
    %800 = vmatprep.mubr.f32.mxu0 0.0
    %801 = vmatmul.mubr.f32.gmra.mrb[0].mxu0 %v698
    %v802 = vpop.f32.mrb[0].mxu0
    %v803 = vadd.f32 0.0, %v802
    %v804 = vpop.f32.mrb[0].mxu0
    %v805 = vadd.f32 0.0, %v804
    %806 = vmatprep.mubr.f32.mxu0 0.0
    %807 = vmatmul.mubr.f32.gmra.mrb[0].mxu0 %v701
    %v808 = vpop.f32.mrb[0].mxu0
    %v809 = vadd.f32 0.0, %v808
    %v810 = vpop.f32.mrb[0].mxu0
    %v811 = vadd.f32 0.0, %v810
    %812 = vmatprep.mubr.f32.mxu0 0.0
    %813 = vmatmul.mubr.f32.gmra.mrb[0].mxu0 %v704
    %v814 = vpop.f32.mrb[0].mxu0
    %v815 = vadd.f32 0.0, %v814
    %v816 = vpop.f32.mrb[0].mxu0
    %v817 = vadd.f32 0.0, %v816
    %818 = vdwg.mxu0
    %819 = vmatprep.subr.mxu0 %v669
    %820 = vmatpush1.msra.mxu0 %v668
    %821 = vmatprep.subr.mxu0 %v673
    %822 = vmatpush1.msra.mxu0 %v672
    %823 = vmatprep.subr.mxu0 %v677
    %824 = vmatpush1.msra.mxu0 %v676
    %825 = vmatprep.subr.mxu0 %v681
    %826 = vmatpush1.msra.mxu0 %v680
    %827 = vmatprep.subr.mxu0 0.0
    %828 = vmatpush1.msra.mxu0 0.0
    %829 = vmatprep.subr.mxu0 0.0
    %830 = vmatpush1.msra.mxu0 0.0
    %831 = vmatprep.subr.mxu0 0.0
    %832 = vmatpush1.msra.mxu0 0.0
    %833 = vmatprep.subr.mxu0 0.0
    %834 = vmatpush1.msra.mxu0 0.0
    %835 = vmatprep.subr.mxu0 0.0
    %836 = vmatpush1.msra.mxu0 0.0
    %837 = vmatprep.subr.mxu0 0.0
    %838 = vmatpush1.msra.mxu0 0.0
    %839 = vmatprep.subr.mxu0 0.0
    %840 = vmatpush1.msra.mxu0 0.0
    %841 = vmatprep.subr.mxu0 0.0
    %842 = vmatpush1.msra.mxu0 0.0
    %843 = vmatprep.subr.mxu0 0.0
    %844 = vmatpush1.msra.mxu0 0.0
    %845 = vmatprep.subr.mxu0 0.0
    %846 = vmatpush1.msra.mxu0 0.0
    %847 = vmatprep.subr.mxu0 0.0
    %848 = vmatpush1.msra.mxu0 0.0
    %849 = vmatprep.subr.mxu0 0.0
    %850 = vmatpush1.msra.mxu0 0.0
    %851 = vmatprep.subr.mxu0 0.0
    %852 = vmatpush1.msra.mxu0 0.0
    %853 = vmatprep.subr.mxu0 0.0
    %854 = vmatpush1.msra.mxu0 0.0
    %855 = vmatprep.subr.mxu0 0.0
    %856 = vmatpush1.msra.mxu0 0.0
    %857 = vmatprep.subr.mxu0 0.0
    %858 = vmatpush1.msra.mxu0 0.0
    %859 = vmatprep.subr.mxu0 0.0
    %860 = vmatpush1.msra.mxu0 0.0
    %861 = vmatprep.subr.mxu0 0.0
    %862 = vmatpush1.msra.mxu0 0.0
    %863 = vmatprep.subr.mxu0 0.0
    %864 = vmatpush1.msra.mxu0 0.0
    %865 = vmatprep.subr.mxu0 0.0
    %866 = vmatpush1.msra.mxu0 0.0
    %867 = vmatprep.subr.mxu0 0.0
    %868 = vmatpush1.msra.mxu0 0.0
    %869 = vmatprep.subr.mxu0 0.0
    %870 = vmatpush1.msra.mxu0 0.0
    %871 = vmatprep.subr.mxu0 0.0
    %872 = vmatpush1.msra.mxu0 0.0
    %873 = vmatprep.subr.mxu0 0.0
    %874 = vmatpush1.msra.mxu0 0.0
    %875 = vmatprep.subr.mxu0 0.0
    %876 = vmatpush1.msra.mxu0 0.0
    %877 = vmatprep.subr.mxu0 0.0
    %878 = vmatpush1.msra.mxu0 0.0
    %879 = vmatprep.subr.mxu0 0.0
    %880 = vmatpush1.msra.mxu0 0.0
    %881 = vmatprep.subr.mxu0 0.0
    %882 = vmatpush1.msra.mxu0 0.0
    %883 = vmatprep.mubr.f32.mxu0 0.0
    %884 = vmatmul.mubr.f32.gmra.mrb[0].mxu0 %v683
    %v885 = vpop.f32.mrb[0].mxu0
    %v886 = vadd.f32 0.0, %v885
    %v887 = vpop.f32.mrb[0].mxu0
    %v888 = vadd.f32 0.0, %v887
    %889 = vmatprep.mubr.f32.mxu0 0.0
    %890 = vmatmul.mubr.f32.gmra.mrb[0].mxu0 %v686
    %v891 = vpop.f32.mrb[0].mxu0
    %v892 = vadd.f32 0.0, %v891
    %v893 = vpop.f32.mrb[0].mxu0
    %v894 = vadd.f32 0.0, %v893
    %895 = vmatprep.mubr.f32.mxu0 0.0
    %896 = vmatmul.mubr.f32.gmra.mrb[0].mxu0 %v689
    %v897 = vpop.f32.mrb[0].mxu0
    %v898 = vadd.f32 0.0, %v897
    %v899 = vpop.f32.mrb[0].mxu0
    %v900 = vadd.f32 0.0, %v899
    %901 = vmatprep.mubr.f32.mxu0 0.0
    %902 = vmatmul.mubr.f32.gmra.mrb[0].mxu0 %v692
    %v903 = vpop.f32.mrb[0].mxu0
    %v904 = vadd.f32 0.0, %v903
    %v905 = vpop.f32.mrb[0].mxu0
    %v906 = vadd.f32 0.0, %v905
    %907 = vmatprep.mubr.f32.mxu0 0.0
    %908 = vmatmul.mubr.f32.gmra.mrb[0].mxu0 %v695
    %v909 = vpop.f32.mrb[0].mxu0
    %v910 = vadd.f32 0.0, %v909
    %v911 = vpop.f32.mrb[0].mxu0
    %v912 = vadd.f32 0.0, %v911
    %913 = vmatprep.mubr.f32.mxu0 0.0
    %914 = vmatmul.mubr.f32.gmra.mrb[0].mxu0 %v698
    %v915 = vpop.f32.mrb[0].mxu0
    %v916 = vadd.f32 0.0, %v915
    %v917 = vpop.f32.mrb[0].mxu0
    %v918 = vadd.f32 0.0, %v917
    %919 = vmatprep.mubr.f32.mxu0 0.0
    %920 = vmatmul.mubr.f32.gmra.mrb[0].mxu0 %v701
    %v921 = vpop.f32.mrb[0].mxu0
    %v922 = vadd.f32 0.0, %v921
    %v923 = vpop.f32.mrb[0].mxu0
    %v924 = vadd.f32 0.0, %v923
    %925 = vmatprep.mubr.f32.mxu0 0.0
    %926 = vmatmul.mubr.f32.gmra.mrb[0].mxu0 %v704
    %v927 = vpop.f32.mrb[0].mxu0
    %v928 = vadd.f32 0.0, %v927
    %v929 = vpop.f32.mrb[0].mxu0
    %v930 = vadd.f32 0.0, %v929
    %931 = vdwg.mxu0
    %v932 = vmul.f32 %v773, %v346
    %v933 = vmul.f32 %v775, %v347
    %v934 = vmul.f32 %v886, %v348
    %v935 = vmul.f32 %v888, %v349
    %v936 = vmul.f32 %v779, %v350
    %v937 = vmul.f32 %v781, %v351
    %v938 = vmul.f32 %v892, %v352
    %v939 = vmul.f32 %v894, %v353
    %v940 = vmul.f32 %v785, %v354
    %v941 = vmul.f32 %v787, %v355
    %v942 = vmul.f32 %v898, %v356
    %v943 = vmul.f32 %v900, %v357
    %v944 = vmul.f32 %v791, %v358
    %v945 = vmul.f32 %v793, %v359
    %v946 = vmul.f32 %v904, %v360
    %v947 = vmul.f32 %v906, %v361
    %v948 = vmul.f32 %v797, %v362
    %v949 = vmul.f32 %v799, %v363
    %v950 = vmul.f32 %v910, %v364
    %v951 = vmul.f32 %v912, %v365
    %v952 = vmul.f32 %v803, %v366
    %v953 = vmul.f32 %v805, %v367
    %v954 = vmul.f32 %v916, %v368
    %v955 = vmul.f32 %v918, %v369
    %v956 = vmul.f32 %v809, %v370
    %v957 = vmul.f32 %v811, %v371
    %v958 = vmul.f32 %v922, %v372
    %v959 = vmul.f32 %v924, %v373
    %v960 = vmul.f32 %v815, %v374
    %v961 = vmul.f32 %v817, %v375
    %v962 = vmul.f32 %v928, %v376
    %v963 = vmul.f32 %v930, %v377
    %v964 = vld [vmem:[#allocation7] sm:$0xff]
    %v965 = vld [vmem:[#allocation7 + $0x8] sm:$0xff]
    %v966 = vld [vmem:[#allocation7 + $0x10] sm:$0xff]
    %v967 = vld [vmem:[#allocation7 + $0x18] sm:$0xff]
    %v968 = vld [vmem:[#allocation7 + $0x20] sm:$0xff]
    %v969 = vld [vmem:[#allocation7 + $0x28] sm:$0xff]
    %v970 = vld [vmem:[#allocation7 + $0x30] sm:$0xff]
    %v971 = vld [vmem:[#allocation7 + $0x38] sm:$0xff]
    %v972 = vld [vmem:[#allocation7 + $0x40] sm:$0xff]
    %v973 = vld [vmem:[#allocation7 + $0x48] sm:$0xff]
    %v974 = vld [vmem:[#allocation7 + $0x50] sm:$0xff]
    %v975 = vld [vmem:[#allocation7 + $0x58] sm:$0xff]
    %v976 = vld [vmem:[#allocation7 + $0x60] sm:$0xff]
    %v977 = vld [vmem:[#allocation7 + $0x68] sm:$0xff]
    %v978 = vld [vmem:[#allocation7 + $0x70] sm:$0xff]
    %v979 = vld [vmem:[#allocation7 + $0x78] sm:$0xff]
    %v980 = vld [vmem:[#allocation7 + $0x80] sm:$0xff]
    %v981 = vld [vmem:[#allocation7 + $0x88] sm:$0xff]
    %v982 = vld [vmem:[#allocation7 + $0x90] sm:$0xff]
    %v983 = vld [vmem:[#allocation7 + $0x98] sm:$0xff]
    %v984 = vld [vmem:[#allocation7 + $0xa0] sm:$0xff]
    %v985 = vld [vmem:[#allocation7 + $0xa8] sm:$0xff]
    %v986 = vld [vmem:[#allocation7 + $0xb0] sm:$0xff]
    %v987 = vld [vmem:[#allocation7 + $0xb8] sm:$0xff]
    %v988 = vld [vmem:[#allocation7 + $0xc0] sm:$0xff]
    %v989 = vld [vmem:[#allocation7 + $0xc8] sm:$0xff]
    %v990 = vld [vmem:[#allocation7 + $0xd0] sm:$0xff]
    %v991 = vld [vmem:[#allocation7 + $0xd8] sm:$0xff]
    %v992 = vld [vmem:[#allocation7 + $0xe0] sm:$0xff]
    %v993 = vld [vmem:[#allocation7 + $0xe8] sm:$0xff]
    %v994 = vld [vmem:[#allocation7 + $0xf0] sm:$0xff]
    %v995 = vld [vmem:[#allocation7 + $0xf8] sm:$0xff]
    %v996 = vld [vmem:[#allocation7 + $0x100] sm:$0xff]
    %v997 = vld [vmem:[#allocation7 + $0x108] sm:$0xff]
    %v998 = vld [vmem:[#allocation7 + $0x110] sm:$0xff]
    %v999 = vld [vmem:[#allocation7 + $0x118] sm:$0xff]
    %v1000 = vld [vmem:[#allocation7 + $0x120] sm:$0xff]
    %v1001 = vld [vmem:[#allocation7 + $0x128] sm:$0xff]
    %v1002 = vld [vmem:[#allocation7 + $0x130] sm:$0xff]
    %v1003 = vld [vmem:[#allocation7 + $0x138] sm:$0xff]
    %v1004 = vld [vmem:[#allocation7 + $0x140] sm:$0xff]
    %v1005 = vld [vmem:[#allocation7 + $0x148] sm:$0xff]
    %v1006 = vld [vmem:[#allocation7 + $0x150] sm:$0xff]
    %v1007 = vld [vmem:[#allocation7 + $0x158] sm:$0xff]
    %v1008 = vld [vmem:[#allocation7 + $0x160] sm:$0xff]
    %v1009 = vld [vmem:[#allocation7 + $0x168] sm:$0xff]
    %v1010 = vld [vmem:[#allocation7 + $0x170] sm:$0xff]
    %v1011 = vld [vmem:[#allocation7 + $0x178] sm:$0xff]
    %v1012 = vld [vmem:[#allocation7 + $0x180] sm:$0xff]
    %v1013 = vld [vmem:[#allocation7 + $0x188] sm:$0xff]
    %v1014 = vld [vmem:[#allocation7 + $0x190] sm:$0xff]
    %v1015 = vld [vmem:[#allocation7 + $0x198] sm:$0xff]
    %v1016 = vld [vmem:[#allocation7 + $0x1a0] sm:$0xff]
    %v1017 = vld [vmem:[#allocation7 + $0x1a8] sm:$0xff]
    %v1018 = vld [vmem:[#allocation7 + $0x1b0] sm:$0xff]
    %v1019 = vld [vmem:[#allocation7 + $0x1b8] sm:$0xff]
    %v1020 = vld [vmem:[#allocation7 + $0x1c0] sm:$0xff]
    %v1021 = vld [vmem:[#allocation7 + $0x1c8] sm:$0xff]
    %v1022 = vld [vmem:[#allocation7 + $0x1d0] sm:$0xff]
    %v1023 = vld [vmem:[#allocation7 + $0x1d8] sm:$0xff]
    %v1024 = vld [vmem:[#allocation7 + $0x1e0] sm:$0xff]
    %v1025 = vld [vmem:[#allocation7 + $0x1e8] sm:$0xff]
    %v1026 = vld [vmem:[#allocation7 + $0x1f0] sm:$0xff]
    %v1027 = vld [vmem:[#allocation7 + $0x1f8] sm:$0xff]
    %v1028 = vld [vmem:[#allocation7 + $0x200] sm:$0xff]
    %v1029 = vld [vmem:[#allocation7 + $0x208] sm:$0xff]
    %v1030 = vld [vmem:[#allocation7 + $0x210] sm:$0xff]
    %v1031 = vld [vmem:[#allocation7 + $0x218] sm:$0xff]
    %v1032 = vld [vmem:[#allocation7 + $0x220] sm:$0xff]
    %v1033 = vld [vmem:[#allocation7 + $0x228] sm:$0xff]
    %v1034 = vld [vmem:[#allocation7 + $0x230] sm:$0xff]
    %v1035 = vld [vmem:[#allocation7 + $0x238] sm:$0xff]
    %v1036 = vld [vmem:[#allocation7 + $0x240] sm:$0xff]
    %v1037 = vld [vmem:[#allocation7 + $0x248] sm:$0xff]
    %v1038 = vld [vmem:[#allocation7 + $0x250] sm:$0xff]
    %v1039 = vld [vmem:[#allocation7 + $0x258] sm:$0xff]
    %v1040 = vld [vmem:[#allocation7 + $0x260] sm:$0xff]
    %v1041 = vld [vmem:[#allocation7 + $0x268] sm:$0xff]
    %v1042 = vld [vmem:[#allocation7 + $0x270] sm:$0xff]
    %v1043 = vld [vmem:[#allocation7 + $0x278] sm:$0xff]
    %v1044 = vld [vmem:[#allocation7 + $0x280] sm:$0xff]
    %v1045 = vld [vmem:[#allocation7 + $0x288] sm:$0xff]
    %v1046 = vld [vmem:[#allocation7 + $0x290] sm:$0xff]
    %v1047 = vld [vmem:[#allocation7 + $0x298] sm:$0xff]
    %v1048 = vld [vmem:[#allocation7 + $0x2a0] sm:$0xff]
    %v1049 = vld [vmem:[#allocation7 + $0x2a8] sm:$0xff]
    %v1050 = vld [vmem:[#allocation7 + $0x2b0] sm:$0xff]
    %v1051 = vld [vmem:[#allocation7 + $0x2b8] sm:$0xff]
    %v1052 = vld [vmem:[#allocation7 + $0x2c0] sm:$0xff]
    %v1053 = vld [vmem:[#allocation7 + $0x2c8] sm:$0xff]
    %v1054 = vld [vmem:[#allocation7 + $0x2d0] sm:$0xff]
    %v1055 = vld [vmem:[#allocation7 + $0x2d8] sm:$0xff]
    %v1056 = vld [vmem:[#allocation7 + $0x2e0] sm:$0xff]
    %v1057 = vld [vmem:[#allocation7 + $0x2e8] sm:$0xff]
    %v1058 = vld [vmem:[#allocation7 + $0x2f0] sm:$0xff]
    %v1059 = vld [vmem:[#allocation7 + $0x2f8] sm:$0xff]
    %v1060 = vld [vmem:[#allocation7 + $0x300] sm:$0xff]
    %v1061 = vld [vmem:[#allocation7 + $0x308] sm:$0xff]
    %v1062 = vld [vmem:[#allocation7 + $0x310] sm:$0xff]
    %v1063 = vld [vmem:[#allocation7 + $0x318] sm:$0xff]
    %v1064 = vld [vmem:[#allocation7 + $0x320] sm:$0xff]
    %v1065 = vld [vmem:[#allocation7 + $0x328] sm:$0xff]
    %v1066 = vld [vmem:[#allocation7 + $0x330] sm:$0xff]
    %v1067 = vld [vmem:[#allocation7 + $0x338] sm:$0xff]
    %v1068 = vld [vmem:[#allocation7 + $0x340] sm:$0xff]
    %v1069 = vld [vmem:[#allocation7 + $0x348] sm:$0xff]
    %v1070 = vld [vmem:[#allocation7 + $0x350] sm:$0xff]
    %v1071 = vld [vmem:[#allocation7 + $0x358] sm:$0xff]
    %v1072 = vld [vmem:[#allocation7 + $0x360] sm:$0xff]
    %v1073 = vld [vmem:[#allocation7 + $0x368] sm:$0xff]
    %v1074 = vld [vmem:[#allocation7 + $0x370] sm:$0xff]
    %v1075 = vld [vmem:[#allocation7 + $0x378] sm:$0xff]
    %v1076 = vld [vmem:[#allocation7 + $0x380] sm:$0xff]
    %v1077 = vld [vmem:[#allocation7 + $0x388] sm:$0xff]
    %v1078 = vld [vmem:[#allocation7 + $0x390] sm:$0xff]
    %v1079 = vld [vmem:[#allocation7 + $0x398] sm:$0xff]
    %v1080 = vld [vmem:[#allocation7 + $0x3a0] sm:$0xff]
    %v1081 = vld [vmem:[#allocation7 + $0x3a8] sm:$0xff]
    %v1082 = vld [vmem:[#allocation7 + $0x3b0] sm:$0xff]
    %v1083 = vld [vmem:[#allocation7 + $0x3b8] sm:$0xff]
    %v1084 = vld [vmem:[#allocation7 + $0x3c0] sm:$0xff]
    %v1085 = vld [vmem:[#allocation7 + $0x3c8] sm:$0xff]
    %v1086 = vld [vmem:[#allocation7 + $0x3d0] sm:$0xff]
    %v1087 = vld [vmem:[#allocation7 + $0x3d8] sm:$0xff]
    %v1088 = vld [vmem:[#allocation7 + $0x3e0] sm:$0xff]
    %v1089 = vld [vmem:[#allocation7 + $0x3e8] sm:$0xff]
    %v1090 = vld [vmem:[#allocation7 + $0x3f0] sm:$0xff]
    %v1091 = vld [vmem:[#allocation7 + $0x3f8] sm:$0xff]
    %1092 = vmatprep.subr.mxu0 %v965
    %1093 = vmatpush1.msra.mxu0 %v964
    %1094 = vmatprep.subr.mxu0 %v967
    %1095 = vmatpush1.msra.mxu0 %v966
    %1096 = vmatprep.subr.mxu0 %v969
    %1097 = vmatpush1.msra.mxu0 %v968
    %1098 = vmatprep.subr.mxu0 %v971
    %1099 = vmatpush1.msra.mxu0 %v970
    %1100 = vmatprep.subr.mxu0 %v973
    %1101 = vmatpush1.msra.mxu0 %v972
    %1102 = vmatprep.subr.mxu0 %v975
    %1103 = vmatpush1.msra.mxu0 %v974
    %1104 = vmatprep.subr.mxu0 %v977
    %1105 = vmatpush1.msra.mxu0 %v976
    %1106 = vmatprep.subr.mxu0 %v979
    %1107 = vmatpush1.msra.mxu0 %v978
    %1108 = vmatprep.subr.mxu0 %v981
    %1109 = vmatpush1.msra.mxu0 %v980
    %1110 = vmatprep.subr.mxu0 %v983
    %1111 = vmatpush1.msra.mxu0 %v982
    %1112 = vmatprep.subr.mxu0 %v985
    %1113 = vmatpush1.msra.mxu0 %v984
    %1114 = vmatprep.subr.mxu0 %v987
    %1115 = vmatpush1.msra.mxu0 %v986
    %1116 = vmatprep.subr.mxu0 %v989
    %1117 = vmatpush1.msra.mxu0 %v988
    %1118 = vmatprep.subr.mxu0 %v991
    %1119 = vmatpush1.msra.mxu0 %v990
    %1120 = vmatprep.subr.mxu0 %v993
    %1121 = vmatpush1.msra.mxu0 %v992
    %1122 = vmatprep.subr.mxu0 %v995
    %1123 = vmatpush1.msra.mxu0 %v994
    %1124 = vmatprep.subr.mxu0 %v997
    %1125 = vmatpush1.msra.mxu0 %v996
    %1126 = vmatprep.subr.mxu0 %v999
    %1127 = vmatpush1.msra.mxu0 %v998
    %1128 = vmatprep.subr.mxu0 %v1001
    %1129 = vmatpush1.msra.mxu0 %v1000
    %1130 = vmatprep.subr.mxu0 %v1003
    %1131 = vmatpush1.msra.mxu0 %v1002
    %1132 = vmatprep.subr.mxu0 %v1005
    %1133 = vmatpush1.msra.mxu0 %v1004
    %1134 = vmatprep.subr.mxu0 %v1007
    %1135 = vmatpush1.msra.mxu0 %v1006
    %1136 = vmatprep.subr.mxu0 %v1009
    %1137 = vmatpush1.msra.mxu0 %v1008
    %1138 = vmatprep.subr.mxu0 %v1011
    %1139 = vmatpush1.msra.mxu0 %v1010
    %1140 = vmatprep.subr.mxu0 %v1013
    %1141 = vmatpush1.msra.mxu0 %v1012
    %1142 = vmatprep.subr.mxu0 %v1015
    %1143 = vmatpush1.msra.mxu0 %v1014
    %1144 = vmatprep.subr.mxu0 %v1017
    %1145 = vmatpush1.msra.mxu0 %v1016
    %1146 = vmatprep.subr.mxu0 %v1019
    %1147 = vmatpush1.msra.mxu0 %v1018
    %1148 = vmatprep.subr.mxu0 %v1021
    %1149 = vmatpush1.msra.mxu0 %v1020
    %1150 = vmatprep.subr.mxu0 %v1023
    %1151 = vmatpush1.msra.mxu0 %v1022
    %1152 = vmatprep.subr.mxu0 %v1025
    %1153 = vmatpush1.msra.mxu0 %v1024
    %1154 = vmatprep.subr.mxu0 %v1027
    %1155 = vmatpush1.msra.mxu0 %v1026
    %1156 = vmatprep.mubr.f32.mxu0 %v933
    %1157 = vmatmul.mubr.f32.gmra.mrb[0].mxu0 %v932
    %v1158 = vpop.f32.mrb[0].mxu0
    %v1159 = vadd.f32 0.0, %v1158
    %v1160 = vpop.f32.mrb[0].mxu0
    %v1161 = vadd.f32 0.0, %v1160
    %1162 = vmatprep.mubr.f32.mxu0 %v937
    %1163 = vmatmul.mubr.f32.gmra.mrb[0].mxu0 %v936
    %v1164 = vpop.f32.mrb[0].mxu0
    %v1165 = vadd.f32 0.0, %v1164
    %v1166 = vpop.f32.mrb[0].mxu0
    %v1167 = vadd.f32 0.0, %v1166
    %1168 = vmatprep.mubr.f32.mxu0 %v941
    %1169 = vmatmul.mubr.f32.gmra.mrb[0].mxu0 %v940
    %v1170 = vpop.f32.mrb[0].mxu0
    %v1171 = vadd.f32 0.0, %v1170
    %v1172 = vpop.f32.mrb[0].mxu0
    %v1173 = vadd.f32 0.0, %v1172
    %1174 = vmatprep.mubr.f32.mxu0 %v945
    %1175 = vmatmul.mubr.f32.gmra.mrb[0].mxu0 %v944
    %v1176 = vpop.f32.mrb[0].mxu0
    %v1177 = vadd.f32 0.0, %v1176
    %v1178 = vpop.f32.mrb[0].mxu0
    %v1179 = vadd.f32 0.0, %v1178
    %1180 = vmatprep.mubr.f32.mxu0 %v949
    %1181 = vmatmul.mubr.f32.gmra.mrb[0].mxu0 %v948
    %v1182 = vpop.f32.mrb[0].mxu0
    %v1183 = vadd.f32 0.0, %v1182
    %v1184 = vpop.f32.mrb[0].mxu0
    %v1185 = vadd.f32 0.0, %v1184
    %1186 = vmatprep.mubr.f32.mxu0 %v953
    %1187 = vmatmul.mubr.f32.gmra.mrb[0].mxu0 %v952
    %v1188 = vpop.f32.mrb[0].mxu0
    %v1189 = vadd.f32 0.0, %v1188
    %v1190 = vpop.f32.mrb[0].mxu0
    %v1191 = vadd.f32 0.0, %v1190
    %1192 = vmatprep.mubr.f32.mxu0 %v957
    %1193 = vmatmul.mubr.f32.gmra.mrb[0].mxu0 %v956
    %v1194 = vpop.f32.mrb[0].mxu0
    %v1195 = vadd.f32 0.0, %v1194
    %v1196 = vpop.f32.mrb[0].mxu0
    %v1197 = vadd.f32 0.0, %v1196
    %1198 = vmatprep.mubr.f32.mxu0 %v961
    %1199 = vmatmul.mubr.f32.gmra.mrb[0].mxu0 %v960
    %v1200 = vpop.f32.mrb[0].mxu0
    %v1201 = vadd.f32 0.0, %v1200
    %v1202 = vpop.f32.mrb[0].mxu0
    %v1203 = vadd.f32 0.0, %v1202
    %1204 = vdwg.mxu0
    %1205 = vmatprep.subr.mxu0 %v1029
    %1206 = vmatpush1.msra.mxu0 %v1028
    %1207 = vmatprep.subr.mxu0 %v1031
    %1208 = vmatpush1.msra.mxu0 %v1030
    %1209 = vmatprep.subr.mxu0 %v1033
    %1210 = vmatpush1.msra.mxu0 %v1032
    %1211 = vmatprep.subr.mxu0 %v1035
    %1212 = vmatpush1.msra.mxu0 %v1034
    %1213 = vmatprep.subr.mxu0 %v1037
    %1214 = vmatpush1.msra.mxu0 %v1036
    %1215 = vmatprep.subr.mxu0 %v1039
    %1216 = vmatpush1.msra.mxu0 %v1038
    %1217 = vmatprep.subr.mxu0 %v1041
    %1218 = vmatpush1.msra.mxu0 %v1040
    %1219 = vmatprep.subr.mxu0 %v1043
    %1220 = vmatpush1.msra.mxu0 %v1042
    %1221 = vmatprep.subr.mxu0 %v1045
    %1222 = vmatpush1.msra.mxu0 %v1044
    %1223 = vmatprep.subr.mxu0 %v1047
    %1224 = vmatpush1.msra.mxu0 %v1046
    %1225 = vmatprep.subr.mxu0 %v1049
    %1226 = vmatpush1.msra.mxu0 %v1048
    %1227 = vmatprep.subr.mxu0 %v1051
    %1228 = vmatpush1.msra.mxu0 %v1050
    %1229 = vmatprep.subr.mxu0 %v1053
    %1230 = vmatpush1.msra.mxu0 %v1052
    %1231 = vmatprep.subr.mxu0 %v1055
    %1232 = vmatpush1.msra.mxu0 %v1054
    %1233 = vmatprep.subr.mxu0 %v1057
    %1234 = vmatpush1.msra.mxu0 %v1056
    %1235 = vmatprep.subr.mxu0 %v1059
    %1236 = vmatpush1.msra.mxu0 %v1058
    %1237 = vmatprep.subr.mxu0 %v1061
    %1238 = vmatpush1.msra.mxu0 %v1060
    %1239 = vmatprep.subr.mxu0 %v1063
    %1240 = vmatpush1.msra.mxu0 %v1062
    %1241 = vmatprep.subr.mxu0 %v1065
    %1242 = vmatpush1.msra.mxu0 %v1064
    %1243 = vmatprep.subr.mxu0 %v1067
    %1244 = vmatpush1.msra.mxu0 %v1066
    %1245 = vmatprep.subr.mxu0 %v1069
    %1246 = vmatpush1.msra.mxu0 %v1068
    %1247 = vmatprep.subr.mxu0 %v1071
    %1248 = vmatpush1.msra.mxu0 %v1070
    %1249 = vmatprep.subr.mxu0 %v1073
    %1250 = vmatpush1.msra.mxu0 %v1072
    %1251 = vmatprep.subr.mxu0 %v1075
    %1252 = vmatpush1.msra.mxu0 %v1074
    %1253 = vmatprep.subr.mxu0 %v1077
    %1254 = vmatpush1.msra.mxu0 %v1076
    %1255 = vmatprep.subr.mxu0 %v1079
    %1256 = vmatpush1.msra.mxu0 %v1078
    %1257 = vmatprep.subr.mxu0 %v1081
    %1258 = vmatpush1.msra.mxu0 %v1080
    %1259 = vmatprep.subr.mxu0 %v1083
    %1260 = vmatpush1.msra.mxu0 %v1082
    %1261 = vmatprep.subr.mxu0 %v1085
    %1262 = vmatpush1.msra.mxu0 %v1084
    %1263 = vmatprep.subr.mxu0 %v1087
    %1264 = vmatpush1.msra.mxu0 %v1086
    %1265 = vmatprep.subr.mxu0 %v1089
    %1266 = vmatpush1.msra.mxu0 %v1088
    %1267 = vmatprep.subr.mxu0 %v1091
    %1268 = vmatpush1.msra.mxu0 %v1090
    %1269 = vmatprep.mubr.f32.mxu0 %v935
    %1270 = vmatmul.mubr.f32.gmra.mrb[0].mxu0 %v934
    %v1271 = vpop.f32.mrb[0].mxu0
    %v1272 = vadd.f32 %v1159, %v1271
    %v1273 = vpop.f32.mrb[0].mxu0
    %v1274 = vadd.f32 %v1161, %v1273
    %1275 = vmatprep.mubr.f32.mxu0 %v939
    %1276 = vmatmul.mubr.f32.gmra.mrb[0].mxu0 %v938
    %v1277 = vpop.f32.mrb[0].mxu0
    %v1278 = vadd.f32 %v1165, %v1277
    %v1279 = vpop.f32.mrb[0].mxu0
    %v1280 = vadd.f32 %v1167, %v1279
    %1281 = vmatprep.mubr.f32.mxu0 %v943
    %1282 = vmatmul.mubr.f32.gmra.mrb[0].mxu0 %v942
    %v1283 = vpop.f32.mrb[0].mxu0
    %v1284 = vadd.f32 %v1171, %v1283
    %v1285 = vpop.f32.mrb[0].mxu0
    %v1286 = vadd.f32 %v1173, %v1285
    %1287 = vmatprep.mubr.f32.mxu0 %v947
    %1288 = vmatmul.mubr.f32.gmra.mrb[0].mxu0 %v946
    %v1289 = vpop.f32.mrb[0].mxu0
    %v1290 = vadd.f32 %v1177, %v1289
    %v1291 = vpop.f32.mrb[0].mxu0
    %v1292 = vadd.f32 %v1179, %v1291
    %1293 = vmatprep.mubr.f32.mxu0 %v951
    %1294 = vmatmul.mubr.f32.gmra.mrb[0].mxu0 %v950
    %v1295 = vpop.f32.mrb[0].mxu0
    %v1296 = vadd.f32 %v1183, %v1295
    %v1297 = vpop.f32.mrb[0].mxu0
    %v1298 = vadd.f32 %v1185, %v1297
    %1299 = vmatprep.mubr.f32.mxu0 %v955
    %1300 = vmatmul.mubr.f32.gmra.mrb[0].mxu0 %v954
    %v1301 = vpop.f32.mrb[0].mxu0
    %v1302 = vadd.f32 %v1189, %v1301
    %v1303 = vpop.f32.mrb[0].mxu0
    %v1304 = vadd.f32 %v1191, %v1303
    %1305 = vmatprep.mubr.f32.mxu0 %v959
    %1306 = vmatmul.mubr.f32.gmra.mrb[0].mxu0 %v958
    %v1307 = vpop.f32.mrb[0].mxu0
    %v1308 = vadd.f32 %v1195, %v1307
    %v1309 = vpop.f32.mrb[0].mxu0
    %v1310 = vadd.f32 %v1197, %v1309
    %1311 = vmatprep.mubr.f32.mxu0 %v963
    %1312 = vmatmul.mubr.f32.gmra.mrb[0].mxu0 %v962
    %v1313 = vpop.f32.mrb[0].mxu0
    %v1314 = vadd.f32 %v1201, %v1313
    %v1315 = vpop.f32.mrb[0].mxu0
    %v1316 = vadd.f32 %v1203, %v1315
    %1317 = vdwg.mxu0
    %1350 = vrot.lane.b32.xlu0 %v506, 96
    %v1351 = vpop.permute.xlu0 %1350
    %1352 = vrot.lane.b32.xlu0 %v507, 96
    %v1353 = vpop.permute.xlu0 %1352
    %1354 = vrot.lane.b32.xlu0 %v508, 96
    %v1355 = vpop.permute.xlu0 %1354
    %1356 = vrot.lane.b32.xlu0 %v509, 96
    %v1357 = vpop.permute.xlu0 %1356
    %1358 = vrot.lane.b32.xlu0 %v510, 96
    %v1359 = vpop.permute.xlu0 %1358
    %1360 = vrot.lane.b32.xlu0 %v511, 96
    %v1361 = vpop.permute.xlu0 %1360
    %1362 = vrot.lane.b32.xlu0 %v512, 96
    %v1363 = vpop.permute.xlu0 %1362
    %1364 = vrot.lane.b32.xlu0 %v513, 96
    %v1365 = vpop.permute.xlu0 %1364
    %1366 = vrot.lane.b32.xlu0 %v514, 96
    %v1367 = vpop.permute.xlu0 %1366
    %1368 = vrot.lane.b32.xlu0 %v515, 96
    %v1369 = vpop.permute.xlu0 %1368
    %1370 = vrot.lane.b32.xlu0 %v516, 96
    %v1371 = vpop.permute.xlu0 %1370
    %1372 = vrot.lane.b32.xlu0 %v517, 96
    %v1373 = vpop.permute.xlu0 %1372
    %1374 = vrot.lane.b32.xlu0 %v518, 96
    %v1375 = vpop.permute.xlu0 %1374
    %1376 = vrot.lane.b32.xlu0 %v519, 96
    %v1377 = vpop.permute.xlu0 %1376
    %1378 = vrot.lane.b32.xlu0 %v520, 96
    %v1379 = vpop.permute.xlu0 %1378
    %1380 = vrot.lane.b32.xlu0 %v521, 96
    %v1381 = vpop.permute.xlu0 %1380
    %1382 = vrot.lane.b32.xlu0 %v522, 96
    %v1383 = vpop.permute.xlu0 %1382
    %1384 = vrot.lane.b32.xlu0 %v523, 96
    %v1385 = vpop.permute.xlu0 %1384
    %1386 = vrot.lane.b32.xlu0 %v524, 96
    %v1387 = vpop.permute.xlu0 %1386
    %1388 = vrot.lane.b32.xlu0 %v525, 96
    %v1389 = vpop.permute.xlu0 %1388
    %1390 = vrot.lane.b32.xlu0 %v526, 96
    %v1391 = vpop.permute.xlu0 %1390
    %1392 = vrot.lane.b32.xlu0 %v527, 96
    %v1393 = vpop.permute.xlu0 %1392
    %1394 = vrot.lane.b32.xlu0 %v528, 96
    %v1395 = vpop.permute.xlu0 %1394
    %1396 = vrot.lane.b32.xlu0 %v529, 96
    %v1397 = vpop.permute.xlu0 %1396
    %1398 = vrot.lane.b32.xlu0 %v530, 96
    %v1399 = vpop.permute.xlu0 %1398
    %1400 = vrot.lane.b32.xlu0 %v531, 96
    %v1401 = vpop.permute.xlu0 %1400
    %1402 = vrot.lane.b32.xlu0 %v532, 96
    %v1403 = vpop.permute.xlu0 %1402
    %1404 = vrot.lane.b32.xlu0 %v533, 96
    %v1405 = vpop.permute.xlu0 %1404
    %1406 = vrot.lane.b32.xlu0 %v534, 96
    %v1407 = vpop.permute.xlu0 %1406
    %1408 = vrot.lane.b32.xlu0 %v535, 96
    %v1409 = vpop.permute.xlu0 %1408
    %1410 = vrot.lane.b32.xlu0 %v536, 96
    %v1411 = vpop.permute.xlu0 %1410
    %1412 = vrot.lane.b32.xlu0 %v537, 96
    %v1413 = vpop.permute.xlu0 %1412
    %v1414 = vsel %vm120, %v1351, 0
    %v1416 = vsel %vm120, %v1353, 0
    %v1418 = vsel %vm120, %v1355, 0
    %v1420 = vsel %vm120, %v1357, 0
    %v1422 = vsel %vm120, %v1359, 0
    %v1424 = vsel %vm120, %v1361, 0
    %v1426 = vsel %vm120, %v1363, 0
    %v1428 = vsel %vm120, %v1365, 0
    %v1430 = vsel %vm120, %v1367, 0
    %v1432 = vsel %vm120, %v1369, 0
    %v1434 = vsel %vm120, %v1371, 0
    %v1436 = vsel %vm120, %v1373, 0
    %v1438 = vsel %vm120, %v1375, 0
    %v1440 = vsel %vm120, %v1377, 0
    %v1442 = vsel %vm120, %v1379, 0
    %v1444 = vsel %vm120, %v1381, 0
    %v1446 = vsel %vm120, %v1383, 0
    %v1448 = vsel %vm120, %v1385, 0
    %v1450 = vsel %vm120, %v1387, 0
    %v1452 = vsel %vm120, %v1389, 0
    %v1454 = vsel %vm120, %v1391, 0
    %v1456 = vsel %vm120, %v1393, 0
    %v1458 = vsel %vm120, %v1395, 0
    %v1460 = vsel %vm120, %v1397, 0
    %v1462 = vsel %vm120, %v1399, 0
    %v1464 = vsel %vm120, %v1401, 0
    %v1466 = vsel %vm120, %v1403, 0
    %v1468 = vsel %vm120, %v1405, 0
    %v1470 = vsel %vm120, %v1407, 0
    %v1472 = vsel %vm120, %v1409, 0
    %v1474 = vsel %vm120, %v1411, 0
    %v1476 = vsel %vm120, %v1413, 0
    %1478 = vmatprep.subr.mxu0 0.0
    %1479 = vmatpush1.xpose.msra.mxu0 %v1414
    %1480 = vmatprep.subr.mxu0 0.0
    %1481 = vmatpush1.xpose.msra.mxu0 %v1416
    %1482 = vmatprep.subr.mxu0 0.0
    %1483 = vmatpush1.xpose.msra.mxu0 %v1418
    %1484 = vmatprep.subr.mxu0 0.0
    %1485 = vmatpush1.xpose.msra.mxu0 %v1420
    %1486 = vmatprep.subr.mxu0 0.0
    %1487 = vmatpush1.xpose.msra.mxu0 %v1422
    %1488 = vmatprep.subr.mxu0 0.0
    %1489 = vmatpush1.xpose.msra.mxu0 %v1424
    %1490 = vmatprep.subr.mxu0 0.0
    %1491 = vmatpush1.xpose.msra.mxu0 %v1426
    %1492 = vmatprep.subr.mxu0 0.0
    %1493 = vmatpush1.xpose.msra.mxu0 %v1428
    %1494 = vmatprep.subr.mxu0 0.0
    %1495 = vmatpush1.xpose.msra.mxu0 %v1430
    %1496 = vmatprep.subr.mxu0 0.0
    %1497 = vmatpush1.xpose.msra.mxu0 %v1432
    %1498 = vmatprep.subr.mxu0 0.0
    %1499 = vmatpush1.xpose.msra.mxu0 %v1434
    %1500 = vmatprep.subr.mxu0 0.0
    %1501 = vmatpush1.xpose.msra.mxu0 %v1436
    %1502 = vmatprep.subr.mxu0 0.0
    %1503 = vmatpush1.xpose.msra.mxu0 %v1438
    %1504 = vmatprep.subr.mxu0 0.0
    %1505 = vmatpush1.xpose.msra.mxu0 %v1440
    %1506 = vmatprep.subr.mxu0 0.0
    %1507 = vmatpush1.xpose.msra.mxu0 %v1442
    %1508 = vmatprep.subr.mxu0 0.0
    %1509 = vmatpush1.xpose.msra.mxu0 %v1444
    %1510 = vmatprep.subr.mxu0 0.0
    %1511 = vmatpush1.xpose.msra.mxu0 %v1446
    %1512 = vmatprep.subr.mxu0 0.0
    %1513 = vmatpush1.xpose.msra.mxu0 %v1448
    %1514 = vmatprep.subr.mxu0 0.0
    %1515 = vmatpush1.xpose.msra.mxu0 %v1450
    %1516 = vmatprep.subr.mxu0 0.0
    %1517 = vmatpush1.xpose.msra.mxu0 %v1452
    %1518 = vmatprep.subr.mxu0 0.0
    %1519 = vmatpush1.xpose.msra.mxu0 %v1454
    %1520 = vmatprep.subr.mxu0 0.0
    %1521 = vmatpush1.xpose.msra.mxu0 %v1456
    %1522 = vmatprep.subr.mxu0 0.0
    %1523 = vmatpush1.xpose.msra.mxu0 %v1458
    %1524 = vmatprep.subr.mxu0 0.0
    %1525 = vmatpush1.xpose.msra.mxu0 %v1460
    %1526 = vmatprep.subr.mxu0 0.0
    %1527 = vmatpush1.xpose.msra.mxu0 %v1462
    %1528 = vmatprep.subr.mxu0 0.0
    %1529 = vmatpush1.xpose.msra.mxu0 %v1464
    %1530 = vmatprep.subr.mxu0 0.0
    %1531 = vmatpush1.xpose.msra.mxu0 %v1466
    %1532 = vmatprep.subr.mxu0 0.0
    %1533 = vmatpush1.xpose.msra.mxu0 %v1468
    %1534 = vmatprep.subr.mxu0 0.0
    %1535 = vmatpush1.xpose.msra.mxu0 %v1470
    %1536 = vmatprep.subr.mxu0 0.0
    %1537 = vmatpush1.xpose.msra.mxu0 %v1472
    %1538 = vmatprep.subr.mxu0 0.0
    %1539 = vmatpush1.xpose.msra.mxu0 %v1474
    %1540 = vmatprep.subr.mxu0 0.0
    %1541 = vmatpush1.xpose.msra.mxu0 %v1476
    %1542 = vmatprep.mubr.f32.mxu0 0.0
    %1543 = vmatmul.mubr.f32.gmra.mrb[0].mxu0 %v683
    %v1544 = vpop.f32.mrb[0].mxu0
    %v1545 = vadd.f32 %v1272, %v1544
    %v1546 = vpop.f32.mrb[0].mxu0
    %v1547 = vadd.f32 %v1274, %v1546
    %1548 = vmatprep.mubr.f32.mxu0 0.0
    %1549 = vmatmul.mubr.f32.gmra.mrb[0].mxu0 %v686
    %v1550 = vpop.f32.mrb[0].mxu0
    %v1551 = vadd.f32 %v1278, %v1550
    %v1552 = vpop.f32.mrb[0].mxu0
    %v1553 = vadd.f32 %v1280, %v1552
    %1554 = vmatprep.mubr.f32.mxu0 0.0
    %1555 = vmatmul.mubr.f32.gmra.mrb[0].mxu0 %v689
    %v1556 = vpop.f32.mrb[0].mxu0
    %v1557 = vadd.f32 %v1284, %v1556
    %v1558 = vpop.f32.mrb[0].mxu0
    %v1559 = vadd.f32 %v1286, %v1558
    %1560 = vmatprep.mubr.f32.mxu0 0.0
    %1561 = vmatmul.mubr.f32.gmra.mrb[0].mxu0 %v692
    %v1562 = vpop.f32.mrb[0].mxu0
    %v1563 = vadd.f32 %v1290, %v1562
    %v1564 = vpop.f32.mrb[0].mxu0
    %v1565 = vadd.f32 %v1292, %v1564
    %1566 = vmatprep.mubr.f32.mxu0 0.0
    %1567 = vmatmul.mubr.f32.gmra.mrb[0].mxu0 %v695
    %v1568 = vpop.f32.mrb[0].mxu0
    %v1569 = vadd.f32 %v1296, %v1568
    %v1570 = vpop.f32.mrb[0].mxu0
    %v1571 = vadd.f32 %v1298, %v1570
    %1572 = vmatprep.mubr.f32.mxu0 0.0
    %1573 = vmatmul.mubr.f32.gmra.mrb[0].mxu0 %v698
    %v1574 = vpop.f32.mrb[0].mxu0
    %v1575 = vadd.f32 %v1302, %v1574
    %v1576 = vpop.f32.mrb[0].mxu0
    %v1577 = vadd.f32 %v1304, %v1576
    %1578 = vmatprep.mubr.f32.mxu0 0.0
    %1579 = vmatmul.mubr.f32.gmra.mrb[0].mxu0 %v701
    %v1580 = vpop.f32.mrb[0].mxu0
    %v1581 = vadd.f32 %v1308, %v1580
    %v1582 = vpop.f32.mrb[0].mxu0
    %v1583 = vadd.f32 %v1310, %v1582
    %1584 = vmatprep.mubr.f32.mxu0 0.0
    %1585 = vmatmul.mubr.f32.gmra.mrb[0].mxu0 %v704
    %v1586 = vpop.f32.mrb[0].mxu0
    %v1587 = vadd.f32 %v1314, %v1586
    %v1588 = vpop.f32.mrb[0].mxu0
    %v1589 = vadd.f32 %v1316, %v1588
    %1590 = vdwg.mxu0
    %v1591 = vmax.f32 %v1545, %v1547
    %1592 = vmax.xlane.f32.xlu0 %v1591
    %v1593 = vpop.xlane.xlu0 %1592
    %v1594 = vmax.f32 %v1551, %v1553
    %1595 = vmax.xlane.f32.xlu0 %v1594
    %v1596 = vpop.xlane.xlu0 %1595
    %v1597 = vmax.f32 %v1557, %v1559
    %1598 = vmax.xlane.f32.xlu0 %v1597
    %v1599 = vpop.xlane.xlu0 %1598
    %v1600 = vmax.f32 %v1563, %v1565
    %1601 = vmax.xlane.f32.xlu0 %v1600
    %v1602 = vpop.xlane.xlu0 %1601
    %v1603 = vmax.f32 %v1569, %v1571
    %1604 = vmax.xlane.f32.xlu0 %v1603
    %v1605 = vpop.xlane.xlu0 %1604
    %v1606 = vmax.f32 %v1575, %v1577
    %1607 = vmax.xlane.f32.xlu0 %v1606
    %v1608 = vpop.xlane.xlu0 %1607
    %v1609 = vmax.f32 %v1581, %v1583
    %1610 = vmax.xlane.f32.xlu0 %v1609
    %v1611 = vpop.xlane.xlu0 %1610
    %v1612 = vmax.f32 %v1587, %v1589
    %1613 = vmax.xlane.f32.xlu0 %v1612
    %v1614 = vpop.xlane.xlu0 %1613
    %v1615 = vsub.f32 %v1545, %v1593
    %v1616 = vsub.f32 %v1547, %v1593
    %v1617 = vsub.f32 %v1551, %v1596
    %v1618 = vsub.f32 %v1553, %v1596
    %v1619 = vsub.f32 %v1557, %v1599
    %v1620 = vsub.f32 %v1559, %v1599
    %v1621 = vsub.f32 %v1563, %v1602
    %v1622 = vsub.f32 %v1565, %v1602
    %v1623 = vsub.f32 %v1569, %v1605
    %v1624 = vsub.f32 %v1571, %v1605
    %v1625 = vsub.f32 %v1575, %v1608
    %v1626 = vsub.f32 %v1577, %v1608
    %v1627 = vsub.f32 %v1581, %v1611
    %v1628 = vsub.f32 %v1583, %v1611
    %v1629 = vsub.f32 %v1587, %v1614
    %v1630 = vsub.f32 %v1589, %v1614
    %v1631 = vmul.f32 %v1615, 1.442695
    %v1632 = vpow.pop %v1631
    %v1633 = vmul.f32 %v1616, 1.442695
    %v1634 = vpow.pop %v1633
    %v1635 = vmul.f32 %v1617, 1.442695
    %v1636 = vpow.pop %v1635
    %v1637 = vmul.f32 %v1618, 1.442695
    %v1638 = vpow.pop %v1637
    %v1639 = vmul.f32 %v1619, 1.442695
    %v1640 = vpow.pop %v1639
    %v1641 = vmul.f32 %v1620, 1.442695
    %v1642 = vpow.pop %v1641
    %v1643 = vmul.f32 %v1621, 1.442695
    %v1644 = vpow.pop %v1643
    %v1645 = vmul.f32 %v1622, 1.442695
    %v1646 = vpow.pop %v1645
    %v1647 = vmul.f32 %v1623, 1.442695
    %v1648 = vpow.pop %v1647
    %v1649 = vmul.f32 %v1624, 1.442695
    %v1650 = vpow.pop %v1649
    %v1651 = vmul.f32 %v1625, 1.442695
    %v1652 = vpow.pop %v1651
    %v1653 = vmul.f32 %v1626, 1.442695
    %v1654 = vpow.pop %v1653
    %v1655 = vmul.f32 %v1627, 1.442695
    %v1656 = vpow.pop %v1655
    %v1657 = vmul.f32 %v1628, 1.442695
    %v1658 = vpow.pop %v1657
    %v1659 = vmul.f32 %v1629, 1.442695
    %v1660 = vpow.pop %v1659
    %v1661 = vmul.f32 %v1630, 1.442695
    %v1662 = vpow.pop %v1661
    %v1663 = vld [vmem:[%s6] sm:$0xff]
    %v1664 = vld [vmem:[%s6 + $0x8] sm:$0xff]
    %v1665 = vld [vmem:[%s6 + $0x10] sm:$0xff]
    %v1666 = vld [vmem:[%s6 + $0x18] sm:$0xff]
    %v1667 = vld [vmem:[%s6 + $0x20] sm:$0xff]
    %v1668 = vld [vmem:[%s6 + $0x28] sm:$0xff]
    %v1669 = vld [vmem:[%s6 + $0x30] sm:$0xff]
    %v1670 = vld [vmem:[%s6 + $0x38] sm:$0xff]
    %v1671 = vld [vmem:[%s6 + $0x40] sm:$0xff]
    %v1672 = vld [vmem:[%s6 + $0x48] sm:$0xff]
    %v1673 = vld [vmem:[%s6 + $0x50] sm:$0xff]
    %v1674 = vld [vmem:[%s6 + $0x58] sm:$0xff]
    %v1675 = vld [vmem:[%s6 + $0x60] sm:$0xff]
    %v1676 = vld [vmem:[%s6 + $0x68] sm:$0xff]
    %v1677 = vld [vmem:[%s6 + $0x70] sm:$0xff]
    %v1678 = vld [vmem:[%s6 + $0x78] sm:$0xff]
    %v1679 = vld [vmem:[%s6 + $0x80] sm:$0xff]
    %v1680 = vld [vmem:[%s6 + $0x88] sm:$0xff]
    %v1681 = vld [vmem:[%s6 + $0x90] sm:$0xff]
    %v1682 = vld [vmem:[%s6 + $0x98] sm:$0xff]
    %v1683 = vld [vmem:[%s6 + $0xa0] sm:$0xff]
    %v1684 = vld [vmem:[%s6 + $0xa8] sm:$0xff]
    %v1685 = vld [vmem:[%s6 + $0xb0] sm:$0xff]
    %v1686 = vld [vmem:[%s6 + $0xb8] sm:$0xff]
    %v1687 = vld [vmem:[%s6 + $0xc0] sm:$0xff]
    %v1688 = vld [vmem:[%s6 + $0xc8] sm:$0xff]
    %v1689 = vld [vmem:[%s6 + $0xd0] sm:$0xff]
    %v1690 = vld [vmem:[%s6 + $0xd8] sm:$0xff]
    %v1691 = vld [vmem:[%s6 + $0xe0] sm:$0xff]
    %v1692 = vld [vmem:[%s6 + $0xe8] sm:$0xff]
    %v1693 = vld [vmem:[%s6 + $0xf0] sm:$0xff]
    %v1694 = vld [vmem:[%s6 + $0xf8] sm:$0xff]
    %v1695 = vld [vmem:[%s6 + $0x100] sm:$0xff]
    %v1696 = vld [vmem:[%s6 + $0x108] sm:$0xff]
    %v1697 = vld [vmem:[%s6 + $0x110] sm:$0xff]
    %v1698 = vld [vmem:[%s6 + $0x118] sm:$0xff]
    %v1699 = vld [vmem:[%s6 + $0x120] sm:$0xff]
    %v1700 = vld [vmem:[%s6 + $0x128] sm:$0xff]
    %v1701 = vld [vmem:[%s6 + $0x130] sm:$0xff]
    %v1702 = vld [vmem:[%s6 + $0x138] sm:$0xff]
    %v1703 = vld [vmem:[%s6 + $0x140] sm:$0xff]
    %v1704 = vld [vmem:[%s6 + $0x148] sm:$0xff]
    %v1705 = vld [vmem:[%s6 + $0x150] sm:$0xff]
    %v1706 = vld [vmem:[%s6 + $0x158] sm:$0xff]
    %v1707 = vld [vmem:[%s6 + $0x160] sm:$0xff]
    %v1708 = vld [vmem:[%s6 + $0x168] sm:$0xff]
    %v1709 = vld [vmem:[%s6 + $0x170] sm:$0xff]
    %v1710 = vld [vmem:[%s6 + $0x178] sm:$0xff]
    %v1711 = vld [vmem:[%s6 + $0x180] sm:$0xff]
    %v1712 = vld [vmem:[%s6 + $0x188] sm:$0xff]
    %v1713 = vld [vmem:[%s6 + $0x190] sm:$0xff]
    %v1714 = vld [vmem:[%s6 + $0x198] sm:$0xff]
    %v1715 = vld [vmem:[%s6 + $0x1a0] sm:$0xff]
    %v1716 = vld [vmem:[%s6 + $0x1a8] sm:$0xff]
    %v1717 = vld [vmem:[%s6 + $0x1b0] sm:$0xff]
    %v1718 = vld [vmem:[%s6 + $0x1b8] sm:$0xff]
    %v1719 = vld [vmem:[%s6 + $0x1c0] sm:$0xff]
    %v1720 = vld [vmem:[%s6 + $0x1c8] sm:$0xff]
    %v1721 = vld [vmem:[%s6 + $0x1d0] sm:$0xff]
    %v1722 = vld [vmem:[%s6 + $0x1d8] sm:$0xff]
    %v1723 = vld [vmem:[%s6 + $0x1e0] sm:$0xff]
    %v1724 = vld [vmem:[%s6 + $0x1e8] sm:$0xff]
    %v1725 = vld [vmem:[%s6 + $0x1f0] sm:$0xff]
    %v1726 = vld [vmem:[%s6 + $0x1f8] sm:$0xff]
    %1727 = vmatprep.subr.mxu0 %v1664
    %1728 = vmatpush1.msra.mxu0 %v1663
    %1729 = vmatprep.subr.mxu0 %v1666
    %1730 = vmatpush1.msra.mxu0 %v1665
    %1731 = vmatprep.subr.mxu0 %v1668
    %1732 = vmatpush1.msra.mxu0 %v1667
    %1733 = vmatprep.subr.mxu0 %v1670
    %1734 = vmatpush1.msra.mxu0 %v1669
    %1735 = vmatprep.subr.mxu0 %v1672
    %1736 = vmatpush1.msra.mxu0 %v1671
    %1737 = vmatprep.subr.mxu0 %v1674
    %1738 = vmatpush1.msra.mxu0 %v1673
    %1739 = vmatprep.subr.mxu0 %v1676
    %1740 = vmatpush1.msra.mxu0 %v1675
    %1741 = vmatprep.subr.mxu0 %v1678
    %1742 = vmatpush1.msra.mxu0 %v1677
    %1743 = vmatprep.subr.mxu0 %v1680
    %1744 = vmatpush1.msra.mxu0 %v1679
    %1745 = vmatprep.subr.mxu0 %v1682
    %1746 = vmatpush1.msra.mxu0 %v1681
    %1747 = vmatprep.subr.mxu0 %v1684
    %1748 = vmatpush1.msra.mxu0 %v1683
    %1749 = vmatprep.subr.mxu0 %v1686
    %1750 = vmatpush1.msra.mxu0 %v1685
    %1751 = vmatprep.subr.mxu0 %v1688
    %1752 = vmatpush1.msra.mxu0 %v1687
    %1753 = vmatprep.subr.mxu0 %v1690
    %1754 = vmatpush1.msra.mxu0 %v1689
    %1755 = vmatprep.subr.mxu0 %v1692
    %1756 = vmatpush1.msra.mxu0 %v1691
    %1757 = vmatprep.subr.mxu0 %v1694
    %1758 = vmatpush1.msra.mxu0 %v1693
    %1759 = vmatprep.subr.mxu0 %v1696
    %1760 = vmatpush1.msra.mxu0 %v1695
    %1761 = vmatprep.subr.mxu0 %v1698
    %1762 = vmatpush1.msra.mxu0 %v1697
    %1763 = vmatprep.subr.mxu0 %v1700
    %1764 = vmatpush1.msra.mxu0 %v1699
    %1765 = vmatprep.subr.mxu0 %v1702
    %1766 = vmatpush1.msra.mxu0 %v1701
    %1767 = vmatprep.subr.mxu0 %v1704
    %1768 = vmatpush1.msra.mxu0 %v1703
    %1769 = vmatprep.subr.mxu0 %v1706
    %1770 = vmatpush1.msra.mxu0 %v1705
    %1771 = vmatprep.subr.mxu0 %v1708
    %1772 = vmatpush1.msra.mxu0 %v1707
    %1773 = vmatprep.subr.mxu0 %v1710
    %1774 = vmatpush1.msra.mxu0 %v1709
    %1775 = vmatprep.subr.mxu0 %v1712
    %1776 = vmatpush1.msra.mxu0 %v1711
    %1777 = vmatprep.subr.mxu0 %v1714
    %1778 = vmatpush1.msra.mxu0 %v1713
    %1779 = vmatprep.subr.mxu0 %v1716
    %1780 = vmatpush1.msra.mxu0 %v1715
    %1781 = vmatprep.subr.mxu0 %v1718
    %1782 = vmatpush1.msra.mxu0 %v1717
    %1783 = vmatprep.subr.mxu0 %v1720
    %1784 = vmatpush1.msra.mxu0 %v1719
    %1785 = vmatprep.subr.mxu0 %v1722
    %1786 = vmatpush1.msra.mxu0 %v1721
    %1787 = vmatprep.subr.mxu0 %v1724
    %1788 = vmatpush1.msra.mxu0 %v1723
    %1789 = vmatprep.subr.mxu0 %v1726
    %1790 = vmatpush1.msra.mxu0 %v1725
    %1791 = vmatprep.mubr.f32.mxu0 %v1634
    %1792 = vmatmul.mubr.f32.gmra.mrb[0].mxu0 %v1632
    %v1793 = vpop.f32.mrb[0].mxu0
    %v1794 = vadd.f32 0.0, %v1793
    %v1795 = vpop.f32.mrb[0].mxu0
    %v1796 = vadd.f32 0.0, %v1795
    %1797 = vmatprep.mubr.f32.mxu0 %v1638
    %1798 = vmatmul.mubr.f32.gmra.mrb[0].mxu0 %v1636
    %v1799 = vpop.f32.mrb[0].mxu0
    %v1800 = vadd.f32 0.0, %v1799
    %v1801 = vpop.f32.mrb[0].mxu0
    %v1802 = vadd.f32 0.0, %v1801
    %1803 = vmatprep.mubr.f32.mxu0 %v1642
    %1804 = vmatmul.mubr.f32.gmra.mrb[0].mxu0 %v1640
    %v1805 = vpop.f32.mrb[0].mxu0
    %v1806 = vadd.f32 0.0, %v1805
    %v1807 = vpop.f32.mrb[0].mxu0
    %v1808 = vadd.f32 0.0, %v1807
    %1809 = vmatprep.mubr.f32.mxu0 %v1646
    %1810 = vmatmul.mubr.f32.gmra.mrb[0].mxu0 %v1644
    %v1811 = vpop.f32.mrb[0].mxu0
    %v1812 = vadd.f32 0.0, %v1811
    %v1813 = vpop.f32.mrb[0].mxu0
    %v1814 = vadd.f32 0.0, %v1813
    %1815 = vmatprep.mubr.f32.mxu0 %v1650
    %1816 = vmatmul.mubr.f32.gmra.mrb[0].mxu0 %v1648
    %v1817 = vpop.f32.mrb[0].mxu0
    %v1818 = vadd.f32 0.0, %v1817
    %v1819 = vpop.f32.mrb[0].mxu0
    %v1820 = vadd.f32 0.0, %v1819
    %1821 = vmatprep.mubr.f32.mxu0 %v1654
    %1822 = vmatmul.mubr.f32.gmra.mrb[0].mxu0 %v1652
    %v1823 = vpop.f32.mrb[0].mxu0
    %v1824 = vadd.f32 0.0, %v1823
    %v1825 = vpop.f32.mrb[0].mxu0
    %v1826 = vadd.f32 0.0, %v1825
    %1827 = vmatprep.mubr.f32.mxu0 %v1658
    %1828 = vmatmul.mubr.f32.gmra.mrb[0].mxu0 %v1656
    %v1829 = vpop.f32.mrb[0].mxu0
    %v1830 = vadd.f32 0.0, %v1829
    %v1831 = vpop.f32.mrb[0].mxu0
    %v1832 = vadd.f32 0.0, %v1831
    %1833 = vmatprep.mubr.f32.mxu0 %v1662
    %1834 = vmatmul.mubr.f32.gmra.mrb[0].mxu0 %v1660
    %v1835 = vpop.f32.mrb[0].mxu0
    %v1836 = vadd.f32 0.0, %v1835
    %v1837 = vpop.f32.mrb[0].mxu0
    %v1838 = vadd.f32 0.0, %v1837
    %1839 = vdwg.mxu0
    %v1840 = vrcp.pop %v1794
    %v1841 = vrcp.pop %v1796
    %v1842 = vrcp.pop %v1800
    %v1843 = vrcp.pop %v1802
    %v1844 = vrcp.pop %v1806
    %v1845 = vrcp.pop %v1808
    %v1846 = vrcp.pop %v1812
    %v1847 = vrcp.pop %v1814
    %v1848 = vrcp.pop %v1818
    %v1849 = vrcp.pop %v1820
    %v1850 = vrcp.pop %v1824
    %v1851 = vrcp.pop %v1826
    %v1852 = vrcp.pop %v1830
    %v1853 = vrcp.pop %v1832
    %v1854 = vrcp.pop %v1836
    %v1855 = vrcp.pop %v1838
    %v1856 = vmul.f32 %v1632, %v1840
    %v1857 = vmul.f32 %v1634, %v1841
    %v1858 = vmul.f32 %v1636, %v1842
    %v1859 = vmul.f32 %v1638, %v1843
    %v1860 = vmul.f32 %v1640, %v1844
    %v1861 = vmul.f32 %v1642, %v1845
    %v1862 = vmul.f32 %v1644, %v1846
    %v1863 = vmul.f32 %v1646, %v1847
    %v1864 = vmul.f32 %v1648, %v1848
    %v1865 = vmul.f32 %v1650, %v1849
    %v1866 = vmul.f32 %v1652, %v1850
    %v1867 = vmul.f32 %v1654, %v1851
    %v1868 = vmul.f32 %v1656, %v1852
    %v1869 = vmul.f32 %v1658, %v1853
    %v1870 = vmul.f32 %v1660, %v1854
    %v1871 = vmul.f32 %v1662, %v1855
    %1904 = vrot.lane.b32.xlu0 %v634, 64
    %v1905 = vpop.permute.xlu0 %1904
    %1906 = vrot.lane.b32.xlu0 %v635, 64
    %v1907 = vpop.permute.xlu0 %1906
    %1908 = vrot.lane.b32.xlu0 %v636, 64
    %v1909 = vpop.permute.xlu0 %1908
    %1910 = vrot.lane.b32.xlu0 %v637, 64
    %v1911 = vpop.permute.xlu0 %1910
    %1912 = vrot.lane.b32.xlu0 %v638, 64
    %v1913 = vpop.permute.xlu0 %1912
    %1914 = vrot.lane.b32.xlu0 %v639, 64
    %v1915 = vpop.permute.xlu0 %1914
    %1916 = vrot.lane.b32.xlu0 %v640, 64
    %v1917 = vpop.permute.xlu0 %1916
    %1918 = vrot.lane.b32.xlu0 %v641, 64
    %v1919 = vpop.permute.xlu0 %1918
    %1920 = vrot.lane.b32.xlu0 %v642, 64
    %v1921 = vpop.permute.xlu0 %1920
    %1922 = vrot.lane.b32.xlu0 %v643, 64
    %v1923 = vpop.permute.xlu0 %1922
    %1924 = vrot.lane.b32.xlu0 %v644, 64
    %v1925 = vpop.permute.xlu0 %1924
    %1926 = vrot.lane.b32.xlu0 %v645, 64
    %v1927 = vpop.permute.xlu0 %1926
    %1928 = vrot.lane.b32.xlu0 %v646, 64
    %v1929 = vpop.permute.xlu0 %1928
    %1930 = vrot.lane.b32.xlu0 %v647, 64
    %v1931 = vpop.permute.xlu0 %1930
    %1932 = vrot.lane.b32.xlu0 %v648, 64
    %v1933 = vpop.permute.xlu0 %1932
    %1934 = vrot.lane.b32.xlu0 %v649, 64
    %v1935 = vpop.permute.xlu0 %1934
    %1936 = vrot.lane.b32.xlu0 %v650, 64
    %v1937 = vpop.permute.xlu0 %1936
    %1938 = vrot.lane.b32.xlu0 %v651, 64
    %v1939 = vpop.permute.xlu0 %1938
    %1940 = vrot.lane.b32.xlu0 %v652, 64
    %v1941 = vpop.permute.xlu0 %1940
    %1942 = vrot.lane.b32.xlu0 %v653, 64
    %v1943 = vpop.permute.xlu0 %1942
    %1944 = vrot.lane.b32.xlu0 %v654, 64
    %v1945 = vpop.permute.xlu0 %1944
    %1946 = vrot.lane.b32.xlu0 %v655, 64
    %v1947 = vpop.permute.xlu0 %1946
    %1948 = vrot.lane.b32.xlu0 %v656, 64
    %v1949 = vpop.permute.xlu0 %1948
    %1950 = vrot.lane.b32.xlu0 %v657, 64
    %v1951 = vpop.permute.xlu0 %1950
    %1952 = vrot.lane.b32.xlu0 %v658, 64
    %v1953 = vpop.permute.xlu0 %1952
    %1954 = vrot.lane.b32.xlu0 %v659, 64
    %v1955 = vpop.permute.xlu0 %1954
    %1956 = vrot.lane.b32.xlu0 %v660, 64
    %v1957 = vpop.permute.xlu0 %1956
    %1958 = vrot.lane.b32.xlu0 %v661, 64
    %v1959 = vpop.permute.xlu0 %1958
    %1960 = vrot.lane.b32.xlu0 %v662, 64
    %v1961 = vpop.permute.xlu0 %1960
    %1962 = vrot.lane.b32.xlu0 %v663, 64
    %v1963 = vpop.permute.xlu0 %1962
    %1964 = vrot.lane.b32.xlu0 %v664, 64
    %v1965 = vpop.permute.xlu0 %1964
    %1966 = vrot.lane.b32.xlu0 %v665, 64
    %v1967 = vpop.permute.xlu0 %1966
    %2000 = vmatprep.subr.mxu0 0.0
    %2001 = vmatpush1.msra.mxu0 %v1905
    %2002 = vmatprep.subr.mxu0 0.0
    %2003 = vmatpush1.msra.mxu0 %v1907
    %2004 = vmatprep.subr.mxu0 0.0
    %2005 = vmatpush1.msra.mxu0 %v1909
    %2006 = vmatprep.subr.mxu0 0.0
    %2007 = vmatpush1.msra.mxu0 %v1911
    %2008 = vmatprep.subr.mxu0 0.0
    %2009 = vmatpush1.msra.mxu0 %v1913
    %2010 = vmatprep.subr.mxu0 0.0
    %2011 = vmatpush1.msra.mxu0 %v1915
    %2012 = vmatprep.subr.mxu0 0.0
    %2013 = vmatpush1.msra.mxu0 %v1917
    %2014 = vmatprep.subr.mxu0 0.0
    %2015 = vmatpush1.msra.mxu0 %v1919
    %2016 = vmatprep.subr.mxu0 0.0
    %2017 = vmatpush1.msra.mxu0 %v1921
    %2018 = vmatprep.subr.mxu0 0.0
    %2019 = vmatpush1.msra.mxu0 %v1923
    %2020 = vmatprep.subr.mxu0 0.0
    %2021 = vmatpush1.msra.mxu0 %v1925
    %2022 = vmatprep.subr.mxu0 0.0
    %2023 = vmatpush1.msra.mxu0 %v1927
    %2024 = vmatprep.subr.mxu0 0.0
    %2025 = vmatpush1.msra.mxu0 %v1929
    %2026 = vmatprep.subr.mxu0 0.0
    %2027 = vmatpush1.msra.mxu0 %v1931
    %2028 = vmatprep.subr.mxu0 0.0
    %2029 = vmatpush1.msra.mxu0 %v1933
    %2030 = vmatprep.subr.mxu0 0.0
    %2031 = vmatpush1.msra.mxu0 %v1935
    %2032 = vmatprep.subr.mxu0 0.0
    %2033 = vmatpush1.msra.mxu0 %v1937
    %2034 = vmatprep.subr.mxu0 0.0
    %2035 = vmatpush1.msra.mxu0 %v1939
    %2036 = vmatprep.subr.mxu0 0.0
    %2037 = vmatpush1.msra.mxu0 %v1941
    %2038 = vmatprep.subr.mxu0 0.0
    %2039 = vmatpush1.msra.mxu0 %v1943
    %2040 = vmatprep.subr.mxu0 0.0
    %2041 = vmatpush1.msra.mxu0 %v1945
    %2042 = vmatprep.subr.mxu0 0.0
    %2043 = vmatpush1.msra.mxu0 %v1947
    %2044 = vmatprep.subr.mxu0 0.0
    %2045 = vmatpush1.msra.mxu0 %v1949
    %2046 = vmatprep.subr.mxu0 0.0
    %2047 = vmatpush1.msra.mxu0 %v1951
    %2048 = vmatprep.subr.mxu0 0.0
    %2049 = vmatpush1.msra.mxu0 %v1953
    %2050 = vmatprep.subr.mxu0 0.0
    %2051 = vmatpush1.msra.mxu0 %v1955
    %2052 = vmatprep.subr.mxu0 0.0
    %2053 = vmatpush1.msra.mxu0 %v1957
    %2054 = vmatprep.subr.mxu0 0.0
    %2055 = vmatpush1.msra.mxu0 %v1959
    %2056 = vmatprep.subr.mxu0 0.0
    %2057 = vmatpush1.msra.mxu0 %v1961
    %2058 = vmatprep.subr.mxu0 0.0
    %2059 = vmatpush1.msra.mxu0 %v1963
    %2060 = vmatprep.subr.mxu0 0.0
    %2061 = vmatpush1.msra.mxu0 %v1965
    %2062 = vmatprep.subr.mxu0 0.0
    %2063 = vmatpush1.msra.mxu0 %v1967
    %2064 = vmatprep.mubr.f32.mxu0 %v1857
    %2065 = vmatmul.mubr.f32.gmra.mrb[0].mxu0 %v1856
    %v2066 = vpop.f32.mrb[0].mxu0
    %v2067 = vadd.f32 0.0, %v2066
    %v2068 = vpop.f32.mrb[0].mxu0
    %2069 = vmatprep.mubr.f32.mxu0 %v1859
    %2070 = vmatmul.mubr.f32.gmra.mrb[0].mxu0 %v1858
    %v2071 = vpop.f32.mrb[0].mxu0
    %v2072 = vadd.f32 0.0, %v2071
    %v2073 = vpop.f32.mrb[0].mxu0
    %2074 = vmatprep.mubr.f32.mxu0 %v1861
    %2075 = vmatmul.mubr.f32.gmra.mrb[0].mxu0 %v1860
    %v2076 = vpop.f32.mrb[0].mxu0
    %v2077 = vadd.f32 0.0, %v2076
    %v2078 = vpop.f32.mrb[0].mxu0
    %2079 = vmatprep.mubr.f32.mxu0 %v1863
    %2080 = vmatmul.mubr.f32.gmra.mrb[0].mxu0 %v1862
    %v2081 = vpop.f32.mrb[0].mxu0
    %v2082 = vadd.f32 0.0, %v2081
    %v2083 = vpop.f32.mrb[0].mxu0
    %2084 = vmatprep.mubr.f32.mxu0 %v1865
    %2085 = vmatmul.mubr.f32.gmra.mrb[0].mxu0 %v1864
    %v2086 = vpop.f32.mrb[0].mxu0
    %v2087 = vadd.f32 0.0, %v2086
    %v2088 = vpop.f32.mrb[0].mxu0
    %2089 = vmatprep.mubr.f32.mxu0 %v1867
    %2090 = vmatmul.mubr.f32.gmra.mrb[0].mxu0 %v1866
    %v2091 = vpop.f32.mrb[0].mxu0
    %v2092 = vadd.f32 0.0, %v2091
    %v2093 = vpop.f32.mrb[0].mxu0
    %2094 = vmatprep.mubr.f32.mxu0 %v1869
    %2095 = vmatmul.mubr.f32.gmra.mrb[0].mxu0 %v1868
    %v2096 = vpop.f32.mrb[0].mxu0
    %v2097 = vadd.f32 0.0, %v2096
    %v2098 = vpop.f32.mrb[0].mxu0
    %2099 = vmatprep.mubr.f32.mxu0 %v1871
    %2100 = vmatmul.mubr.f32.gmra.mrb[0].mxu0 %v1870
    %v2101 = vpop.f32.mrb[0].mxu0
    %v2102 = vadd.f32 0.0, %v2101
    %v2103 = vpop.f32.mrb[0].mxu0
    %2104 = vdwg.mxu0
    %v2105 = vmul.f32 %v276, %v411
    %v2106 = vmul.f32 %v281, %v413
    %v2107 = vmul.f32 %v286, %v415
    %v2108 = vmul.f32 %v291, %v417
    %v2109 = vmul.f32 %v296, %v419
    %v2110 = vmul.f32 %v301, %v421
    %v2111 = vmul.f32 %v306, %v423
    %v2112 = vmul.f32 %v311, %v425
    %v2113 = vmul.f32 %v276, %v427
    %v2114 = vmul.f32 %v281, %v429
    %v2115 = vmul.f32 %v286, %v431
    %v2116 = vmul.f32 %v291, %v433
    %v2117 = vmul.f32 %v296, %v435
    %v2118 = vmul.f32 %v301, %v437
    %v2119 = vmul.f32 %v306, %v439
    %v2120 = vmul.f32 %v311, %v441
    %v2121 = vmul.f32 %v276, %v443
    %v2122 = vmul.f32 %v281, %v445
    %v2123 = vmul.f32 %v286, %v447
    %v2124 = vmul.f32 %v291, %v449
    %v2125 = vmul.f32 %v296, %v451
    %v2126 = vmul.f32 %v301, %v453
    %v2127 = vmul.f32 %v306, %v455
    %v2128 = vmul.f32 %v311, %v457
    %v2129 = vmul.f32 %v276, %v459
    %v2130 = vmul.f32 %v281, %v461
    %v2131 = vmul.f32 %v286, %v463
    %v2132 = vmul.f32 %v291, %v465
    %v2133 = vmul.f32 %v296, %v467
    %v2134 = vmul.f32 %v301, %v469
    %v2135 = vmul.f32 %v306, %v471
    %v2136 = vmul.f32 %v311, %v473
    %v2137 = vmul.f32 %v276, %v539
    %v2138 = vmul.f32 %v281, %v541
    %v2139 = vmul.f32 %v286, %v543
    %v2140 = vmul.f32 %v291, %v545
    %v2141 = vmul.f32 %v296, %v547
    %v2142 = vmul.f32 %v301, %v549
    %v2143 = vmul.f32 %v306, %v551
    %v2144 = vmul.f32 %v311, %v553
    %v2145 = vmul.f32 %v276, %v555
    %v2146 = vmul.f32 %v281, %v557
    %v2147 = vmul.f32 %v286, %v559
    %v2148 = vmul.f32 %v291, %v561
    %v2149 = vmul.f32 %v296, %v563
    %v2150 = vmul.f32 %v301, %v565
    %v2151 = vmul.f32 %v306, %v567
    %v2152 = vmul.f32 %v311, %v569
    %v2153 = vmul.f32 %v276, %v571
    %v2154 = vmul.f32 %v281, %v573
    %v2155 = vmul.f32 %v286, %v575
    %v2156 = vmul.f32 %v291, %v577
    %v2157 = vmul.f32 %v296, %v579
    %v2158 = vmul.f32 %v301, %v581
    %v2159 = vmul.f32 %v306, %v583
    %v2160 = vmul.f32 %v311, %v585
    %v2161 = vmul.f32 %v276, %v587
    %v2162 = vmul.f32 %v281, %v589
    %v2163 = vmul.f32 %v286, %v591
    %v2164 = vmul.f32 %v291, %v593
    %v2165 = vmul.f32 %v296, %v595
    %v2166 = vmul.f32 %v301, %v597
    %v2167 = vmul.f32 %v306, %v599
    %v2168 = vmul.f32 %v311, %v601
    %v2170 = vsel %vm120, %v276, 0
    %v2173 = vsel %vm120, %v281, 0
    %v2176 = vsel %vm120, %v286, 0
    %v2179 = vsel %vm120, %v291, 0
    %v2182 = vsel %vm120, %v296, 0
    %v2185 = vsel %vm120, %v301, 0
    %v2188 = vsel %vm120, %v306, 0
    %v2191 = vsel %vm120, %v311, 0
    %2193 = vmatprep.subr.mxu0 %v667
    %2194 = vmatpush1.msra.mxu0 %v666
    %2195 = vmatprep.subr.mxu0 %v671
    %2196 = vmatpush1.msra.mxu0 %v670
    %2197 = vmatprep.subr.mxu0 %v675
    %2198 = vmatpush1.msra.mxu0 %v674
    %2199 = vmatprep.subr.mxu0 %v679
    %2200 = vmatpush1.msra.mxu0 %v678
    %2201 = vmatprep.subr.mxu0 0.0
    %2202 = vmatpush1.msra.mxu0 0.0
    %2203 = vmatprep.subr.mxu0 0.0
    %2204 = vmatpush1.msra.mxu0 0.0
    %2205 = vmatprep.subr.mxu0 0.0
    %2206 = vmatpush1.msra.mxu0 0.0
    %2207 = vmatprep.subr.mxu0 0.0
    %2208 = vmatpush1.msra.mxu0 0.0
    %2209 = vmatprep.subr.mxu0 0.0
    %2210 = vmatpush1.msra.mxu0 0.0
    %2211 = vmatprep.subr.mxu0 0.0
    %2212 = vmatpush1.msra.mxu0 0.0
    %2213 = vmatprep.subr.mxu0 0.0
    %2214 = vmatpush1.msra.mxu0 0.0
    %2215 = vmatprep.subr.mxu0 0.0
    %2216 = vmatpush1.msra.mxu0 0.0
    %2217 = vmatprep.subr.mxu0 0.0
    %2218 = vmatpush1.msra.mxu0 0.0
    %2219 = vmatprep.subr.mxu0 0.0
    %2220 = vmatpush1.msra.mxu0 0.0
    %2221 = vmatprep.subr.mxu0 0.0
    %2222 = vmatpush1.msra.mxu0 0.0
    %2223 = vmatprep.subr.mxu0 0.0
    %2224 = vmatpush1.msra.mxu0 0.0
    %2225 = vmatprep.subr.mxu0 0.0
    %2226 = vmatpush1.msra.mxu0 0.0
    %2227 = vmatprep.subr.mxu0 0.0
    %2228 = vmatpush1.msra.mxu0 0.0
    %2229 = vmatprep.subr.mxu0 0.0
    %2230 = vmatpush1.msra.mxu0 0.0
    %2231 = vmatprep.subr.mxu0 0.0
    %2232 = vmatpush1.msra.mxu0 0.0
    %2233 = vmatprep.subr.mxu0 0.0
    %2234 = vmatpush1.msra.mxu0 0.0
    %2235 = vmatprep.subr.mxu0 0.0
    %2236 = vmatpush1.msra.mxu0 0.0
    %2237 = vmatprep.subr.mxu0 0.0
    %2238 = vmatpush1.msra.mxu0 0.0
    %2239 = vmatprep.subr.mxu0 0.0
    %2240 = vmatpush1.msra.mxu0 0.0
    %2241 = vmatprep.subr.mxu0 0.0
    %2242 = vmatpush1.msra.mxu0 0.0
    %2243 = vmatprep.subr.mxu0 0.0
    %2244 = vmatpush1.msra.mxu0 0.0
    %2245 = vmatprep.subr.mxu0 0.0
    %2246 = vmatpush1.msra.mxu0 0.0
    %2247 = vmatprep.subr.mxu0 0.0
    %2248 = vmatpush1.msra.mxu0 0.0
    %2249 = vmatprep.subr.mxu0 0.0
    %2250 = vmatpush1.msra.mxu0 0.0
    %2251 = vmatprep.subr.mxu0 0.0
    %2252 = vmatpush1.msra.mxu0 0.0
    %2253 = vmatprep.subr.mxu0 0.0
    %2254 = vmatpush1.msra.mxu0 0.0
    %2255 = vmatprep.subr.mxu0 0.0
    %2256 = vmatpush1.msra.mxu0 0.0
    %2257 = vmatprep.mubr.f32.mxu0 0.0
    %2258 = vmatmul.mubr.f32.gmra.mrb[0].mxu0 %v2170
    %v2259 = vpop.f32.mrb[0].mxu0
    %v2260 = vadd.f32 0.0, %v2259
    %v2261 = vpop.f32.mrb[0].mxu0
    %v2262 = vadd.f32 0.0, %v2261
    %2263 = vmatprep.mubr.f32.mxu0 0.0
    %2264 = vmatmul.mubr.f32.gmra.mrb[0].mxu0 %v2173
    %v2265 = vpop.f32.mrb[0].mxu0
    %v2266 = vadd.f32 0.0, %v2265
    %v2267 = vpop.f32.mrb[0].mxu0
    %v2268 = vadd.f32 0.0, %v2267
    %2269 = vmatprep.mubr.f32.mxu0 0.0
    %2270 = vmatmul.mubr.f32.gmra.mrb[0].mxu0 %v2176
    %v2271 = vpop.f32.mrb[0].mxu0
    %v2272 = vadd.f32 0.0, %v2271
    %v2273 = vpop.f32.mrb[0].mxu0
    %v2274 = vadd.f32 0.0, %v2273
    %2275 = vmatprep.mubr.f32.mxu0 0.0
    %2276 = vmatmul.mubr.f32.gmra.mrb[0].mxu0 %v2179
    %v2277 = vpop.f32.mrb[0].mxu0
    %v2278 = vadd.f32 0.0, %v2277
    %v2279 = vpop.f32.mrb[0].mxu0
    %v2280 = vadd.f32 0.0, %v2279
    %2281 = vmatprep.mubr.f32.mxu0 0.0
    %2282 = vmatmul.mubr.f32.gmra.mrb[0].mxu0 %v2182
    %v2283 = vpop.f32.mrb[0].mxu0
    %v2284 = vadd.f32 0.0, %v2283
    %v2285 = vpop.f32.mrb[0].mxu0
    %v2286 = vadd.f32 0.0, %v2285
    %2287 = vmatprep.mubr.f32.mxu0 0.0
    %2288 = vmatmul.mubr.f32.gmra.mrb[0].mxu0 %v2185
    %v2289 = vpop.f32.mrb[0].mxu0
    %v2290 = vadd.f32 0.0, %v2289
    %v2291 = vpop.f32.mrb[0].mxu0
    %v2292 = vadd.f32 0.0, %v2291
    %2293 = vmatprep.mubr.f32.mxu0 0.0
    %2294 = vmatmul.mubr.f32.gmra.mrb[0].mxu0 %v2188
    %v2295 = vpop.f32.mrb[0].mxu0
    %v2296 = vadd.f32 0.0, %v2295
    %v2297 = vpop.f32.mrb[0].mxu0
    %v2298 = vadd.f32 0.0, %v2297
    %2299 = vmatprep.mubr.f32.mxu0 0.0
    %2300 = vmatmul.mubr.f32.gmra.mrb[0].mxu0 %v2191
    %v2301 = vpop.f32.mrb[0].mxu0
    %v2302 = vadd.f32 0.0, %v2301
    %v2303 = vpop.f32.mrb[0].mxu0
    %v2304 = vadd.f32 0.0, %v2303
    %2305 = vdwg.mxu0
    %2306 = vmatprep.subr.mxu0 %v669
    %2307 = vmatpush1.msra.mxu0 %v668
    %2308 = vmatprep.subr.mxu0 %v673
    %2309 = vmatpush1.msra.mxu0 %v672
    %2310 = vmatprep.subr.mxu0 %v677
    %2311 = vmatpush1.msra.mxu0 %v676
    %2312 = vmatprep.subr.mxu0 %v681
    %2313 = vmatpush1.msra.mxu0 %v680
    %2314 = vmatprep.subr.mxu0 0.0
    %2315 = vmatpush1.msra.mxu0 0.0
    %2316 = vmatprep.subr.mxu0 0.0
    %2317 = vmatpush1.msra.mxu0 0.0
    %2318 = vmatprep.subr.mxu0 0.0
    %2319 = vmatpush1.msra.mxu0 0.0
    %2320 = vmatprep.subr.mxu0 0.0
    %2321 = vmatpush1.msra.mxu0 0.0
    %2322 = vmatprep.subr.mxu0 0.0
    %2323 = vmatpush1.msra.mxu0 0.0
    %2324 = vmatprep.subr.mxu0 0.0
    %2325 = vmatpush1.msra.mxu0 0.0
    %2326 = vmatprep.subr.mxu0 0.0
    %2327 = vmatpush1.msra.mxu0 0.0
    %2328 = vmatprep.subr.mxu0 0.0
    %2329 = vmatpush1.msra.mxu0 0.0
    %2330 = vmatprep.subr.mxu0 0.0
    %2331 = vmatpush1.msra.mxu0 0.0
    %2332 = vmatprep.subr.mxu0 0.0
    %2333 = vmatpush1.msra.mxu0 0.0
    %2334 = vmatprep.subr.mxu0 0.0
    %2335 = vmatpush1.msra.mxu0 0.0
    %2336 = vmatprep.subr.mxu0 0.0
    %2337 = vmatpush1.msra.mxu0 0.0
    %2338 = vmatprep.subr.mxu0 0.0
    %2339 = vmatpush1.msra.mxu0 0.0
    %2340 = vmatprep.subr.mxu0 0.0
    %2341 = vmatpush1.msra.mxu0 0.0
    %2342 = vmatprep.subr.mxu0 0.0
    %2343 = vmatpush1.msra.mxu0 0.0
    %2344 = vmatprep.subr.mxu0 0.0
    %2345 = vmatpush1.msra.mxu0 0.0
    %2346 = vmatprep.subr.mxu0 0.0
    %2347 = vmatpush1.msra.mxu0 0.0
    %2348 = vmatprep.subr.mxu0 0.0
    %2349 = vmatpush1.msra.mxu0 0.0
    %2350 = vmatprep.subr.mxu0 0.0
    %2351 = vmatpush1.msra.mxu0 0.0
    %2352 = vmatprep.subr.mxu0 0.0
    %2353 = vmatpush1.msra.mxu0 0.0
    %2354 = vmatprep.subr.mxu0 0.0
    %2355 = vmatpush1.msra.mxu0 0.0
    %2356 = vmatprep.subr.mxu0 0.0
    %2357 = vmatpush1.msra.mxu0 0.0
    %2358 = vmatprep.subr.mxu0 0.0
    %2359 = vmatpush1.msra.mxu0 0.0
    %2360 = vmatprep.subr.mxu0 0.0
    %2361 = vmatpush1.msra.mxu0 0.0
    %2362 = vmatprep.subr.mxu0 0.0
    %2363 = vmatpush1.msra.mxu0 0.0
    %2364 = vmatprep.subr.mxu0 0.0
    %2365 = vmatpush1.msra.mxu0 0.0
    %2366 = vmatprep.subr.mxu0 0.0
    %2367 = vmatpush1.msra.mxu0 0.0
    %2368 = vmatprep.subr.mxu0 0.0
    %2369 = vmatpush1.msra.mxu0 0.0
    %2370 = vmatprep.mubr.f32.mxu0 0.0
    %2371 = vmatmul.mubr.f32.gmra.mrb[0].mxu0 %v2170
    %v2372 = vpop.f32.mrb[0].mxu0
    %v2373 = vadd.f32 0.0, %v2372
    %v2374 = vpop.f32.mrb[0].mxu0
    %v2375 = vadd.f32 0.0, %v2374
    %2376 = vmatprep.mubr.f32.mxu0 0.0
    %2377 = vmatmul.mubr.f32.gmra.mrb[0].mxu0 %v2173
    %v2378 = vpop.f32.mrb[0].mxu0
    %v2379 = vadd.f32 0.0, %v2378
    %v2380 = vpop.f32.mrb[0].mxu0
    %v2381 = vadd.f32 0.0, %v2380
    %2382 = vmatprep.mubr.f32.mxu0 0.0
    %2383 = vmatmul.mubr.f32.gmra.mrb[0].mxu0 %v2176
    %v2384 = vpop.f32.mrb[0].mxu0
    %v2385 = vadd.f32 0.0, %v2384
    %v2386 = vpop.f32.mrb[0].mxu0
    %v2387 = vadd.f32 0.0, %v2386
    %2388 = vmatprep.mubr.f32.mxu0 0.0
    %2389 = vmatmul.mubr.f32.gmra.mrb[0].mxu0 %v2179
    %v2390 = vpop.f32.mrb[0].mxu0
    %v2391 = vadd.f32 0.0, %v2390
    %v2392 = vpop.f32.mrb[0].mxu0
    %v2393 = vadd.f32 0.0, %v2392
    %2394 = vmatprep.mubr.f32.mxu0 0.0
    %2395 = vmatmul.mubr.f32.gmra.mrb[0].mxu0 %v2182
    %v2396 = vpop.f32.mrb[0].mxu0
    %v2397 = vadd.f32 0.0, %v2396
    %v2398 = vpop.f32.mrb[0].mxu0
    %v2399 = vadd.f32 0.0, %v2398
    %2400 = vmatprep.mubr.f32.mxu0 0.0
    %2401 = vmatmul.mubr.f32.gmra.mrb[0].mxu0 %v2185
    %v2402 = vpop.f32.mrb[0].mxu0
    %v2403 = vadd.f32 0.0, %v2402
    %v2404 = vpop.f32.mrb[0].mxu0
    %v2405 = vadd.f32 0.0, %v2404
    %2406 = vmatprep.mubr.f32.mxu0 0.0
    %2407 = vmatmul.mubr.f32.gmra.mrb[0].mxu0 %v2188
    %v2408 = vpop.f32.mrb[0].mxu0
    %v2409 = vadd.f32 0.0, %v2408
    %v2410 = vpop.f32.mrb[0].mxu0
    %v2411 = vadd.f32 0.0, %v2410
    %2412 = vmatprep.mubr.f32.mxu0 0.0
    %2413 = vmatmul.mubr.f32.gmra.mrb[0].mxu0 %v2191
    %v2414 = vpop.f32.mrb[0].mxu0
    %v2415 = vadd.f32 0.0, %v2414
    %v2416 = vpop.f32.mrb[0].mxu0
    %v2417 = vadd.f32 0.0, %v2416
    %2418 = vdwg.mxu0
    %v2419 = vmul.f32 %v2260, %v346
    %v2420 = vmul.f32 %v2262, %v347
    %v2421 = vmul.f32 %v2373, %v348
    %v2422 = vmul.f32 %v2375, %v349
    %v2423 = vmul.f32 %v2266, %v350
    %v2424 = vmul.f32 %v2268, %v351
    %v2425 = vmul.f32 %v2379, %v352
    %v2426 = vmul.f32 %v2381, %v353
    %v2427 = vmul.f32 %v2272, %v354
    %v2428 = vmul.f32 %v2274, %v355
    %v2429 = vmul.f32 %v2385, %v356
    %v2430 = vmul.f32 %v2387, %v357
    %v2431 = vmul.f32 %v2278, %v358
    %v2432 = vmul.f32 %v2280, %v359
    %v2433 = vmul.f32 %v2391, %v360
    %v2434 = vmul.f32 %v2393, %v361
    %v2435 = vmul.f32 %v2284, %v362
    %v2436 = vmul.f32 %v2286, %v363
    %v2437 = vmul.f32 %v2397, %v364
    %v2438 = vmul.f32 %v2399, %v365
    %v2439 = vmul.f32 %v2290, %v366
    %v2440 = vmul.f32 %v2292, %v367
    %v2441 = vmul.f32 %v2403, %v368
    %v2442 = vmul.f32 %v2405, %v369
    %v2443 = vmul.f32 %v2296, %v370
    %v2444 = vmul.f32 %v2298, %v371
    %v2445 = vmul.f32 %v2409, %v372
    %v2446 = vmul.f32 %v2411, %v373
    %v2447 = vmul.f32 %v2302, %v374
    %v2448 = vmul.f32 %v2304, %v375
    %v2449 = vmul.f32 %v2415, %v376
    %v2450 = vmul.f32 %v2417, %v377
    %2451 = vmatprep.subr.mxu0 %v965
    %2452 = vmatpush1.msra.mxu0 %v964
    %2453 = vmatprep.subr.mxu0 %v967
    %2454 = vmatpush1.msra.mxu0 %v966
    %2455 = vmatprep.subr.mxu0 %v969
    %2456 = vmatpush1.msra.mxu0 %v968
    %2457 = vmatprep.subr.mxu0 %v971
    %2458 = vmatpush1.msra.mxu0 %v970
    %2459 = vmatprep.subr.mxu0 %v973
    %2460 = vmatpush1.msra.mxu0 %v972
    %2461 = vmatprep.subr.mxu0 %v975
    %2462 = vmatpush1.msra.mxu0 %v974
    %2463 = vmatprep.subr.mxu0 %v977
    %2464 = vmatpush1.msra.mxu0 %v976
    %2465 = vmatprep.subr.mxu0 %v979
    %2466 = vmatpush1.msra.mxu0 %v978
    %2467 = vmatprep.subr.mxu0 %v981
    %2468 = vmatpush1.msra.mxu0 %v980
    %2469 = vmatprep.subr.mxu0 %v983
    %2470 = vmatpush1.msra.mxu0 %v982
    %2471 = vmatprep.subr.mxu0 %v985
    %2472 = vmatpush1.msra.mxu0 %v984
    %2473 = vmatprep.subr.mxu0 %v987
    %2474 = vmatpush1.msra.mxu0 %v986
    %2475 = vmatprep.subr.mxu0 %v989
    %2476 = vmatpush1.msra.mxu0 %v988
    %2477 = vmatprep.subr.mxu0 %v991
    %2478 = vmatpush1.msra.mxu0 %v990
    %2479 = vmatprep.subr.mxu0 %v993
    %2480 = vmatpush1.msra.mxu0 %v992
    %2481 = vmatprep.subr.mxu0 %v995
    %2482 = vmatpush1.msra.mxu0 %v994
    %2483 = vmatprep.subr.mxu0 %v997
    %2484 = vmatpush1.msra.mxu0 %v996
    %2485 = vmatprep.subr.mxu0 %v999
    %2486 = vmatpush1.msra.mxu0 %v998
    %2487 = vmatprep.subr.mxu0 %v1001
    %2488 = vmatpush1.msra.mxu0 %v1000
    %2489 = vmatprep.subr.mxu0 %v1003
    %2490 = vmatpush1.msra.mxu0 %v1002
    %2491 = vmatprep.subr.mxu0 %v1005
    %2492 = vmatpush1.msra.mxu0 %v1004
    %2493 = vmatprep.subr.mxu0 %v1007
    %2494 = vmatpush1.msra.mxu0 %v1006
    %2495 = vmatprep.subr.mxu0 %v1009
    %2496 = vmatpush1.msra.mxu0 %v1008
    %2497 = vmatprep.subr.mxu0 %v1011
    %2498 = vmatpush1.msra.mxu0 %v1010
    %2499 = vmatprep.subr.mxu0 %v1013
    %2500 = vmatpush1.msra.mxu0 %v1012
    %2501 = vmatprep.subr.mxu0 %v1015
    %2502 = vmatpush1.msra.mxu0 %v1014
    %2503 = vmatprep.subr.mxu0 %v1017
    %2504 = vmatpush1.msra.mxu0 %v1016
    %2505 = vmatprep.subr.mxu0 %v1019
    %2506 = vmatpush1.msra.mxu0 %v1018
    %2507 = vmatprep.subr.mxu0 %v1021
    %2508 = vmatpush1.msra.mxu0 %v1020
    %2509 = vmatprep.subr.mxu0 %v1023
    %2510 = vmatpush1.msra.mxu0 %v1022
    %2511 = vmatprep.subr.mxu0 %v1025
    %2512 = vmatpush1.msra.mxu0 %v1024
    %2513 = vmatprep.subr.mxu0 %v1027
    %2514 = vmatpush1.msra.mxu0 %v1026
    %2515 = vmatprep.mubr.f32.mxu0 %v2420
    %2516 = vmatmul.mubr.f32.gmra.mrb[0].mxu0 %v2419
    %v2517 = vpop.f32.mrb[0].mxu0
    %v2518 = vadd.f32 0.0, %v2517
    %v2519 = vpop.f32.mrb[0].mxu0
    %v2520 = vadd.f32 0.0, %v2519
    %2521 = vmatprep.mubr.f32.mxu0 %v2424
    %2522 = vmatmul.mubr.f32.gmra.mrb[0].mxu0 %v2423
    %v2523 = vpop.f32.mrb[0].mxu0
    %v2524 = vadd.f32 0.0, %v2523
    %v2525 = vpop.f32.mrb[0].mxu0
    %v2526 = vadd.f32 0.0, %v2525
    %2527 = vmatprep.mubr.f32.mxu0 %v2428
    %2528 = vmatmul.mubr.f32.gmra.mrb[0].mxu0 %v2427
    %v2529 = vpop.f32.mrb[0].mxu0
    %v2530 = vadd.f32 0.0, %v2529
    %v2531 = vpop.f32.mrb[0].mxu0
    %v2532 = vadd.f32 0.0, %v2531
    %2533 = vmatprep.mubr.f32.mxu0 %v2432
    %2534 = vmatmul.mubr.f32.gmra.mrb[0].mxu0 %v2431
    %v2535 = vpop.f32.mrb[0].mxu0
    %v2536 = vadd.f32 0.0, %v2535
    %v2537 = vpop.f32.mrb[0].mxu0
    %v2538 = vadd.f32 0.0, %v2537
    %2539 = vmatprep.mubr.f32.mxu0 %v2436
    %2540 = vmatmul.mubr.f32.gmra.mrb[0].mxu0 %v2435
    %v2541 = vpop.f32.mrb[0].mxu0
    %v2542 = vadd.f32 0.0, %v2541
    %v2543 = vpop.f32.mrb[0].mxu0
    %v2544 = vadd.f32 0.0, %v2543
    %2545 = vmatprep.mubr.f32.mxu0 %v2440
    %2546 = vmatmul.mubr.f32.gmra.mrb[0].mxu0 %v2439
    %v2547 = vpop.f32.mrb[0].mxu0
    %v2548 = vadd.f32 0.0, %v2547
    %v2549 = vpop.f32.mrb[0].mxu0
    %v2550 = vadd.f32 0.0, %v2549
    %2551 = vmatprep.mubr.f32.mxu0 %v2444
    %2552 = vmatmul.mubr.f32.gmra.mrb[0].mxu0 %v2443
    %v2553 = vpop.f32.mrb[0].mxu0
    %v2554 = vadd.f32 0.0, %v2553
    %v2555 = vpop.f32.mrb[0].mxu0
    %v2556 = vadd.f32 0.0, %v2555
    %2557 = vmatprep.mubr.f32.mxu0 %v2448
    %2558 = vmatmul.mubr.f32.gmra.mrb[0].mxu0 %v2447
    %v2559 = vpop.f32.mrb[0].mxu0
    %v2560 = vadd.f32 0.0, %v2559
    %v2561 = vpop.f32.mrb[0].mxu0
    %v2562 = vadd.f32 0.0, %v2561
    %2563 = vdwg.mxu0
    %2564 = vmatprep.subr.mxu0 %v1029
    %2565 = vmatpush1.msra.mxu0 %v1028
    %2566 = vmatprep.subr.mxu0 %v1031
    %2567 = vmatpush1.msra.mxu0 %v1030
    %2568 = vmatprep.subr.mxu0 %v1033
    %2569 = vmatpush1.msra.mxu0 %v1032
    %2570 = vmatprep.subr.mxu0 %v1035
    %2571 = vmatpush1.msra.mxu0 %v1034
    %2572 = vmatprep.subr.mxu0 %v1037
    %2573 = vmatpush1.msra.mxu0 %v1036
    %2574 = vmatprep.subr.mxu0 %v1039
    %2575 = vmatpush1.msra.mxu0 %v1038
    %2576 = vmatprep.subr.mxu0 %v1041
    %2577 = vmatpush1.msra.mxu0 %v1040
    %2578 = vmatprep.subr.mxu0 %v1043
    %2579 = vmatpush1.msra.mxu0 %v1042
    %2580 = vmatprep.subr.mxu0 %v1045
    %2581 = vmatpush1.msra.mxu0 %v1044
    %2582 = vmatprep.subr.mxu0 %v1047
    %2583 = vmatpush1.msra.mxu0 %v1046
    %2584 = vmatprep.subr.mxu0 %v1049
    %2585 = vmatpush1.msra.mxu0 %v1048
    %2586 = vmatprep.subr.mxu0 %v1051
    %2587 = vmatpush1.msra.mxu0 %v1050
    %2588 = vmatprep.subr.mxu0 %v1053
    %2589 = vmatpush1.msra.mxu0 %v1052
    %2590 = vmatprep.subr.mxu0 %v1055
    %2591 = vmatpush1.msra.mxu0 %v1054
    %2592 = vmatprep.subr.mxu0 %v1057
    %2593 = vmatpush1.msra.mxu0 %v1056
    %2594 = vmatprep.subr.mxu0 %v1059
    %2595 = vmatpush1.msra.mxu0 %v1058
    %2596 = vmatprep.subr.mxu0 %v1061
    %2597 = vmatpush1.msra.mxu0 %v1060
    %2598 = vmatprep.subr.mxu0 %v1063
    %2599 = vmatpush1.msra.mxu0 %v1062
    %2600 = vmatprep.subr.mxu0 %v1065
    %2601 = vmatpush1.msra.mxu0 %v1064
    %2602 = vmatprep.subr.mxu0 %v1067
    %2603 = vmatpush1.msra.mxu0 %v1066
    %2604 = vmatprep.subr.mxu0 %v1069
    %2605 = vmatpush1.msra.mxu0 %v1068
    %2606 = vmatprep.subr.mxu0 %v1071
    %2607 = vmatpush1.msra.mxu0 %v1070
    %2608 = vmatprep.subr.mxu0 %v1073
    %2609 = vmatpush1.msra.mxu0 %v1072
    %2610 = vmatprep.subr.mxu0 %v1075
    %2611 = vmatpush1.msra.mxu0 %v1074
    %2612 = vmatprep.subr.mxu0 %v1077
    %2613 = vmatpush1.msra.mxu0 %v1076
    %2614 = vmatprep.subr.mxu0 %v1079
    %2615 = vmatpush1.msra.mxu0 %v1078
    %2616 = vmatprep.subr.mxu0 %v1081
    %2617 = vmatpush1.msra.mxu0 %v1080
    %2618 = vmatprep.subr.mxu0 %v1083
    %2619 = vmatpush1.msra.mxu0 %v1082
    %2620 = vmatprep.subr.mxu0 %v1085
    %2621 = vmatpush1.msra.mxu0 %v1084
    %2622 = vmatprep.subr.mxu0 %v1087
    %2623 = vmatpush1.msra.mxu0 %v1086
    %2624 = vmatprep.subr.mxu0 %v1089
    %2625 = vmatpush1.msra.mxu0 %v1088
    %2626 = vmatprep.subr.mxu0 %v1091
    %2627 = vmatpush1.msra.mxu0 %v1090
    %2628 = vmatprep.mubr.f32.mxu0 %v2422
    %2629 = vmatmul.mubr.f32.gmra.mrb[0].mxu0 %v2421
    %v2630 = vpop.f32.mrb[0].mxu0
    %v2631 = vadd.f32 %v2518, %v2630
    %v2632 = vpop.f32.mrb[0].mxu0
    %v2633 = vadd.f32 %v2520, %v2632
    %2634 = vmatprep.mubr.f32.mxu0 %v2426
    %2635 = vmatmul.mubr.f32.gmra.mrb[0].mxu0 %v2425
    %v2636 = vpop.f32.mrb[0].mxu0
    %v2637 = vadd.f32 %v2524, %v2636
    %v2638 = vpop.f32.mrb[0].mxu0
    %v2639 = vadd.f32 %v2526, %v2638
    %2640 = vmatprep.mubr.f32.mxu0 %v2430
    %2641 = vmatmul.mubr.f32.gmra.mrb[0].mxu0 %v2429
    %v2642 = vpop.f32.mrb[0].mxu0
    %v2643 = vadd.f32 %v2530, %v2642
    %v2644 = vpop.f32.mrb[0].mxu0
    %v2645 = vadd.f32 %v2532, %v2644
    %2646 = vmatprep.mubr.f32.mxu0 %v2434
    %2647 = vmatmul.mubr.f32.gmra.mrb[0].mxu0 %v2433
    %v2648 = vpop.f32.mrb[0].mxu0
    %v2649 = vadd.f32 %v2536, %v2648
    %v2650 = vpop.f32.mrb[0].mxu0
    %v2651 = vadd.f32 %v2538, %v2650
    %2652 = vmatprep.mubr.f32.mxu0 %v2438
    %2653 = vmatmul.mubr.f32.gmra.mrb[0].mxu0 %v2437
    %v2654 = vpop.f32.mrb[0].mxu0
    %v2655 = vadd.f32 %v2542, %v2654
    %v2656 = vpop.f32.mrb[0].mxu0
    %v2657 = vadd.f32 %v2544, %v2656
    %2658 = vmatprep.mubr.f32.mxu0 %v2442
    %2659 = vmatmul.mubr.f32.gmra.mrb[0].mxu0 %v2441
    %v2660 = vpop.f32.mrb[0].mxu0
    %v2661 = vadd.f32 %v2548, %v2660
    %v2662 = vpop.f32.mrb[0].mxu0
    %v2663 = vadd.f32 %v2550, %v2662
    %2664 = vmatprep.mubr.f32.mxu0 %v2446
    %2665 = vmatmul.mubr.f32.gmra.mrb[0].mxu0 %v2445
    %v2666 = vpop.f32.mrb[0].mxu0
    %v2667 = vadd.f32 %v2554, %v2666
    %v2668 = vpop.f32.mrb[0].mxu0
    %v2669 = vadd.f32 %v2556, %v2668
    %2670 = vmatprep.mubr.f32.mxu0 %v2450
    %2671 = vmatmul.mubr.f32.gmra.mrb[0].mxu0 %v2449
    %v2672 = vpop.f32.mrb[0].mxu0
    %v2673 = vadd.f32 %v2560, %v2672
    %v2674 = vpop.f32.mrb[0].mxu0
    %v2675 = vadd.f32 %v2562, %v2674
    %2676 = vdwg.mxu0
    %2709 = vrot.lane.b32.xlu0 %v2105, 96
    %v2710 = vpop.permute.xlu0 %2709
    %2711 = vrot.lane.b32.xlu0 %v2106, 96
    %v2712 = vpop.permute.xlu0 %2711
    %2713 = vrot.lane.b32.xlu0 %v2107, 96
    %v2714 = vpop.permute.xlu0 %2713
    %2715 = vrot.lane.b32.xlu0 %v2108, 96
    %v2716 = vpop.permute.xlu0 %2715
    %2717 = vrot.lane.b32.xlu0 %v2109, 96
    %v2718 = vpop.permute.xlu0 %2717
    %2719 = vrot.lane.b32.xlu0 %v2110, 96
    %v2720 = vpop.permute.xlu0 %2719
    %2721 = vrot.lane.b32.xlu0 %v2111, 96
    %v2722 = vpop.permute.xlu0 %2721
    %2723 = vrot.lane.b32.xlu0 %v2112, 96
    %v2724 = vpop.permute.xlu0 %2723
    %2725 = vrot.lane.b32.xlu0 %v2113, 96
    %v2726 = vpop.permute.xlu0 %2725
    %2727 = vrot.lane.b32.xlu0 %v2114, 96
    %v2728 = vpop.permute.xlu0 %2727
    %2729 = vrot.lane.b32.xlu0 %v2115, 96
    %v2730 = vpop.permute.xlu0 %2729
    %2731 = vrot.lane.b32.xlu0 %v2116, 96
    %v2732 = vpop.permute.xlu0 %2731
    %2733 = vrot.lane.b32.xlu0 %v2117, 96
    %v2734 = vpop.permute.xlu0 %2733
    %2735 = vrot.lane.b32.xlu0 %v2118, 96
    %v2736 = vpop.permute.xlu0 %2735
    %2737 = vrot.lane.b32.xlu0 %v2119, 96
    %v2738 = vpop.permute.xlu0 %2737
    %2739 = vrot.lane.b32.xlu0 %v2120, 96
    %v2740 = vpop.permute.xlu0 %2739
    %2741 = vrot.lane.b32.xlu0 %v2121, 96
    %v2742 = vpop.permute.xlu0 %2741
    %2743 = vrot.lane.b32.xlu0 %v2122, 96
    %v2744 = vpop.permute.xlu0 %2743
    %2745 = vrot.lane.b32.xlu0 %v2123, 96
    %v2746 = vpop.permute.xlu0 %2745
    %2747 = vrot.lane.b32.xlu0 %v2124, 96
    %v2748 = vpop.permute.xlu0 %2747
    %2749 = vrot.lane.b32.xlu0 %v2125, 96
    %v2750 = vpop.permute.xlu0 %2749
    %2751 = vrot.lane.b32.xlu0 %v2126, 96
    %v2752 = vpop.permute.xlu0 %2751
    %2753 = vrot.lane.b32.xlu0 %v2127, 96
    %v2754 = vpop.permute.xlu0 %2753
    %2755 = vrot.lane.b32.xlu0 %v2128, 96
    %v2756 = vpop.permute.xlu0 %2755
    %2757 = vrot.lane.b32.xlu0 %v2129, 96
    %v2758 = vpop.permute.xlu0 %2757
    %2759 = vrot.lane.b32.xlu0 %v2130, 96
    %v2760 = vpop.permute.xlu0 %2759
    %2761 = vrot.lane.b32.xlu0 %v2131, 96
    %v2762 = vpop.permute.xlu0 %2761
    %2763 = vrot.lane.b32.xlu0 %v2132, 96
    %v2764 = vpop.permute.xlu0 %2763
    %2765 = vrot.lane.b32.xlu0 %v2133, 96
    %v2766 = vpop.permute.xlu0 %2765
    %2767 = vrot.lane.b32.xlu0 %v2134, 96
    %v2768 = vpop.permute.xlu0 %2767
    %2769 = vrot.lane.b32.xlu0 %v2135, 96
    %v2770 = vpop.permute.xlu0 %2769
    %2771 = vrot.lane.b32.xlu0 %v2136, 96
    %v2772 = vpop.permute.xlu0 %2771
    %v2773 = vsel %vm120, %v2710, 0
    %v2775 = vsel %vm120, %v2712, 0
    %v2777 = vsel %vm120, %v2714, 0
    %v2779 = vsel %vm120, %v2716, 0
    %v2781 = vsel %vm120, %v2718, 0
    %v2783 = vsel %vm120, %v2720, 0
    %v2785 = vsel %vm120, %v2722, 0
    %v2787 = vsel %vm120, %v2724, 0
    %v2789 = vsel %vm120, %v2726, 0
    %v2791 = vsel %vm120, %v2728, 0
    %v2793 = vsel %vm120, %v2730, 0
    %v2795 = vsel %vm120, %v2732, 0
    %v2797 = vsel %vm120, %v2734, 0
    %v2799 = vsel %vm120, %v2736, 0
    %v2801 = vsel %vm120, %v2738, 0
    %v2803 = vsel %vm120, %v2740, 0
    %v2805 = vsel %vm120, %v2742, 0
    %v2807 = vsel %vm120, %v2744, 0
    %v2809 = vsel %vm120, %v2746, 0
    %v2811 = vsel %vm120, %v2748, 0
    %v2813 = vsel %vm120, %v2750, 0
    %v2815 = vsel %vm120, %v2752, 0
    %v2817 = vsel %vm120, %v2754, 0
    %v2819 = vsel %vm120, %v2756, 0
    %v2821 = vsel %vm120, %v2758, 0
    %v2823 = vsel %vm120, %v2760, 0
    %v2825 = vsel %vm120, %v2762, 0
    %v2827 = vsel %vm120, %v2764, 0
    %v2829 = vsel %vm120, %v2766, 0
    %v2831 = vsel %vm120, %v2768, 0
    %v2833 = vsel %vm120, %v2770, 0
    %v2835 = vsel %vm120, %v2772, 0
    %2837 = vmatprep.subr.mxu0 0.0
    %2838 = vmatpush1.xpose.msra.mxu0 %v2773
    %2839 = vmatprep.subr.mxu0 0.0
    %2840 = vmatpush1.xpose.msra.mxu0 %v2775
    %2841 = vmatprep.subr.mxu0 0.0
    %2842 = vmatpush1.xpose.msra.mxu0 %v2777
    %2843 = vmatprep.subr.mxu0 0.0
    %2844 = vmatpush1.xpose.msra.mxu0 %v2779
    %2845 = vmatprep.subr.mxu0 0.0
    %2846 = vmatpush1.xpose.msra.mxu0 %v2781
    %2847 = vmatprep.subr.mxu0 0.0
    %2848 = vmatpush1.xpose.msra.mxu0 %v2783
    %2849 = vmatprep.subr.mxu0 0.0
    %2850 = vmatpush1.xpose.msra.mxu0 %v2785
    %2851 = vmatprep.subr.mxu0 0.0
    %2852 = vmatpush1.xpose.msra.mxu0 %v2787
    %2853 = vmatprep.subr.mxu0 0.0
    %2854 = vmatpush1.xpose.msra.mxu0 %v2789
    %2855 = vmatprep.subr.mxu0 0.0
    %2856 = vmatpush1.xpose.msra.mxu0 %v2791
    %2857 = vmatprep.subr.mxu0 0.0
    %2858 = vmatpush1.xpose.msra.mxu0 %v2793
    %2859 = vmatprep.subr.mxu0 0.0
    %2860 = vmatpush1.xpose.msra.mxu0 %v2795
    %2861 = vmatprep.subr.mxu0 0.0
    %2862 = vmatpush1.xpose.msra.mxu0 %v2797
    %2863 = vmatprep.subr.mxu0 0.0
    %2864 = vmatpush1.xpose.msra.mxu0 %v2799
    %2865 = vmatprep.subr.mxu0 0.0
    %2866 = vmatpush1.xpose.msra.mxu0 %v2801
    %2867 = vmatprep.subr.mxu0 0.0
    %2868 = vmatpush1.xpose.msra.mxu0 %v2803
    %2869 = vmatprep.subr.mxu0 0.0
    %2870 = vmatpush1.xpose.msra.mxu0 %v2805
    %2871 = vmatprep.subr.mxu0 0.0
    %2872 = vmatpush1.xpose.msra.mxu0 %v2807
    %2873 = vmatprep.subr.mxu0 0.0
    %2874 = vmatpush1.xpose.msra.mxu0 %v2809
    %2875 = vmatprep.subr.mxu0 0.0
    %2876 = vmatpush1.xpose.msra.mxu0 %v2811
    %2877 = vmatprep.subr.mxu0 0.0
    %2878 = vmatpush1.xpose.msra.mxu0 %v2813
    %2879 = vmatprep.subr.mxu0 0.0
    %2880 = vmatpush1.xpose.msra.mxu0 %v2815
    %2881 = vmatprep.subr.mxu0 0.0
    %2882 = vmatpush1.xpose.msra.mxu0 %v2817
    %2883 = vmatprep.subr.mxu0 0.0
    %2884 = vmatpush1.xpose.msra.mxu0 %v2819
    %2885 = vmatprep.subr.mxu0 0.0
    %2886 = vmatpush1.xpose.msra.mxu0 %v2821
    %2887 = vmatprep.subr.mxu0 0.0
    %2888 = vmatpush1.xpose.msra.mxu0 %v2823
    %2889 = vmatprep.subr.mxu0 0.0
    %2890 = vmatpush1.xpose.msra.mxu0 %v2825
    %2891 = vmatprep.subr.mxu0 0.0
    %2892 = vmatpush1.xpose.msra.mxu0 %v2827
    %2893 = vmatprep.subr.mxu0 0.0
    %2894 = vmatpush1.xpose.msra.mxu0 %v2829
    %2895 = vmatprep.subr.mxu0 0.0
    %2896 = vmatpush1.xpose.msra.mxu0 %v2831
    %2897 = vmatprep.subr.mxu0 0.0
    %2898 = vmatpush1.xpose.msra.mxu0 %v2833
    %2899 = vmatprep.subr.mxu0 0.0
    %2900 = vmatpush1.xpose.msra.mxu0 %v2835
    %2901 = vmatprep.mubr.f32.mxu0 0.0
    %2902 = vmatmul.mubr.f32.gmra.mrb[0].mxu0 %v2170
    %v2903 = vpop.f32.mrb[0].mxu0
    %v2904 = vadd.f32 %v2631, %v2903
    %v2905 = vpop.f32.mrb[0].mxu0
    %v2906 = vadd.f32 %v2633, %v2905
    %2907 = vmatprep.mubr.f32.mxu0 0.0
    %2908 = vmatmul.mubr.f32.gmra.mrb[0].mxu0 %v2173
    %v2909 = vpop.f32.mrb[0].mxu0
    %v2910 = vadd.f32 %v2637, %v2909
    %v2911 = vpop.f32.mrb[0].mxu0
    %v2912 = vadd.f32 %v2639, %v2911
    %2913 = vmatprep.mubr.f32.mxu0 0.0
    %2914 = vmatmul.mubr.f32.gmra.mrb[0].mxu0 %v2176
    %v2915 = vpop.f32.mrb[0].mxu0
    %v2916 = vadd.f32 %v2643, %v2915
    %v2917 = vpop.f32.mrb[0].mxu0
    %v2918 = vadd.f32 %v2645, %v2917
    %2919 = vmatprep.mubr.f32.mxu0 0.0
    %2920 = vmatmul.mubr.f32.gmra.mrb[0].mxu0 %v2179
    %v2921 = vpop.f32.mrb[0].mxu0
    %v2922 = vadd.f32 %v2649, %v2921
    %v2923 = vpop.f32.mrb[0].mxu0
    %v2924 = vadd.f32 %v2651, %v2923
    %2925 = vmatprep.mubr.f32.mxu0 0.0
    %2926 = vmatmul.mubr.f32.gmra.mrb[0].mxu0 %v2182
    %v2927 = vpop.f32.mrb[0].mxu0
    %v2928 = vadd.f32 %v2655, %v2927
    %v2929 = vpop.f32.mrb[0].mxu0
    %v2930 = vadd.f32 %v2657, %v2929
    %2931 = vmatprep.mubr.f32.mxu0 0.0
    %2932 = vmatmul.mubr.f32.gmra.mrb[0].mxu0 %v2185
    %v2933 = vpop.f32.mrb[0].mxu0
    %v2934 = vadd.f32 %v2661, %v2933
    %v2935 = vpop.f32.mrb[0].mxu0
    %v2936 = vadd.f32 %v2663, %v2935
    %2937 = vmatprep.mubr.f32.mxu0 0.0
    %2938 = vmatmul.mubr.f32.gmra.mrb[0].mxu0 %v2188
    %v2939 = vpop.f32.mrb[0].mxu0
    %v2940 = vadd.f32 %v2667, %v2939
    %v2941 = vpop.f32.mrb[0].mxu0
    %v2942 = vadd.f32 %v2669, %v2941
    %2943 = vmatprep.mubr.f32.mxu0 0.0
    %2944 = vmatmul.mubr.f32.gmra.mrb[0].mxu0 %v2191
    %v2945 = vpop.f32.mrb[0].mxu0
    %v2946 = vadd.f32 %v2673, %v2945
    %v2947 = vpop.f32.mrb[0].mxu0
    %v2948 = vadd.f32 %v2675, %v2947
    %2949 = vdwg.mxu0
    %v2950 = vmax.f32 %v2904, %v2906
    %2951 = vmax.xlane.f32.xlu0 %v2950
    %v2952 = vpop.xlane.xlu0 %2951
    %v2953 = vmax.f32 %v2910, %v2912
    %2954 = vmax.xlane.f32.xlu0 %v2953
    %v2955 = vpop.xlane.xlu0 %2954
    %v2956 = vmax.f32 %v2916, %v2918
    %2957 = vmax.xlane.f32.xlu0 %v2956
    %v2958 = vpop.xlane.xlu0 %2957
    %v2959 = vmax.f32 %v2922, %v2924
    %2960 = vmax.xlane.f32.xlu0 %v2959
    %v2961 = vpop.xlane.xlu0 %2960
    %v2962 = vmax.f32 %v2928, %v2930
    %2963 = vmax.xlane.f32.xlu0 %v2962
    %v2964 = vpop.xlane.xlu0 %2963
    %v2965 = vmax.f32 %v2934, %v2936
    %2966 = vmax.xlane.f32.xlu0 %v2965
    %v2967 = vpop.xlane.xlu0 %2966
    %v2968 = vmax.f32 %v2940, %v2942
    %2969 = vmax.xlane.f32.xlu0 %v2968
    %v2970 = vpop.xlane.xlu0 %2969
    %v2971 = vmax.f32 %v2946, %v2948
    %2972 = vmax.xlane.f32.xlu0 %v2971
    %v2973 = vpop.xlane.xlu0 %2972
    %v2974 = vsub.f32 %v2904, %v2952
    %v2975 = vsub.f32 %v2906, %v2952
    %v2976 = vsub.f32 %v2910, %v2955
    %v2977 = vsub.f32 %v2912, %v2955
    %v2978 = vsub.f32 %v2916, %v2958
    %v2979 = vsub.f32 %v2918, %v2958
    %v2980 = vsub.f32 %v2922, %v2961
    %v2981 = vsub.f32 %v2924, %v2961
    %v2982 = vsub.f32 %v2928, %v2964
    %v2983 = vsub.f32 %v2930, %v2964
    %v2984 = vsub.f32 %v2934, %v2967
    %v2985 = vsub.f32 %v2936, %v2967
    %v2986 = vsub.f32 %v2940, %v2970
    %v2987 = vsub.f32 %v2942, %v2970
    %v2988 = vsub.f32 %v2946, %v2973
    %v2989 = vsub.f32 %v2948, %v2973
    %v2990 = vmul.f32 %v2974, 1.442695
    %v2991 = vpow.pop %v2990
    %v2992 = vmul.f32 %v2975, 1.442695
    %v2993 = vpow.pop %v2992
    %v2994 = vmul.f32 %v2976, 1.442695
    %v2995 = vpow.pop %v2994
    %v2996 = vmul.f32 %v2977, 1.442695
    %v2997 = vpow.pop %v2996
    %v2998 = vmul.f32 %v2978, 1.442695
    %v2999 = vpow.pop %v2998
    %v3000 = vmul.f32 %v2979, 1.442695
    %v3001 = vpow.pop %v3000
    %v3002 = vmul.f32 %v2980, 1.442695
    %v3003 = vpow.pop %v3002
    %v3004 = vmul.f32 %v2981, 1.442695
    %v3005 = vpow.pop %v3004
    %v3006 = vmul.f32 %v2982, 1.442695
    %v3007 = vpow.pop %v3006
    %v3008 = vmul.f32 %v2983, 1.442695
    %v3009 = vpow.pop %v3008
    %v3010 = vmul.f32 %v2984, 1.442695
    %v3011 = vpow.pop %v3010
    %v3012 = vmul.f32 %v2985, 1.442695
    %v3013 = vpow.pop %v3012
    %v3014 = vmul.f32 %v2986, 1.442695
    %v3015 = vpow.pop %v3014
    %v3016 = vmul.f32 %v2987, 1.442695
    %v3017 = vpow.pop %v3016
    %v3018 = vmul.f32 %v2988, 1.442695
    %v3019 = vpow.pop %v3018
    %v3020 = vmul.f32 %v2989, 1.442695
    %v3021 = vpow.pop %v3020
    %3022 = vmatprep.subr.mxu0 %v1664
    %3023 = vmatpush1.msra.mxu0 %v1663
    %3024 = vmatprep.subr.mxu0 %v1666
    %3025 = vmatpush1.msra.mxu0 %v1665
    %3026 = vmatprep.subr.mxu0 %v1668
    %3027 = vmatpush1.msra.mxu0 %v1667
    %3028 = vmatprep.subr.mxu0 %v1670
    %3029 = vmatpush1.msra.mxu0 %v1669
    %3030 = vmatprep.subr.mxu0 %v1672
    %3031 = vmatpush1.msra.mxu0 %v1671
    %3032 = vmatprep.subr.mxu0 %v1674
    %3033 = vmatpush1.msra.mxu0 %v1673
    %3034 = vmatprep.subr.mxu0 %v1676
    %3035 = vmatpush1.msra.mxu0 %v1675
    %3036 = vmatprep.subr.mxu0 %v1678
    %3037 = vmatpush1.msra.mxu0 %v1677
    %3038 = vmatprep.subr.mxu0 %v1680
    %3039 = vmatpush1.msra.mxu0 %v1679
    %3040 = vmatprep.subr.mxu0 %v1682
    %3041 = vmatpush1.msra.mxu0 %v1681
    %3042 = vmatprep.subr.mxu0 %v1684
    %3043 = vmatpush1.msra.mxu0 %v1683
    %3044 = vmatprep.subr.mxu0 %v1686
    %3045 = vmatpush1.msra.mxu0 %v1685
    %3046 = vmatprep.subr.mxu0 %v1688
    %3047 = vmatpush1.msra.mxu0 %v1687
    %3048 = vmatprep.subr.mxu0 %v1690
    %3049 = vmatpush1.msra.mxu0 %v1689
    %3050 = vmatprep.subr.mxu0 %v1692
    %3051 = vmatpush1.msra.mxu0 %v1691
    %3052 = vmatprep.subr.mxu0 %v1694
    %3053 = vmatpush1.msra.mxu0 %v1693
    %3054 = vmatprep.subr.mxu0 %v1696
    %3055 = vmatpush1.msra.mxu0 %v1695
    %3056 = vmatprep.subr.mxu0 %v1698
    %3057 = vmatpush1.msra.mxu0 %v1697
    %3058 = vmatprep.subr.mxu0 %v1700
    %3059 = vmatpush1.msra.mxu0 %v1699
    %3060 = vmatprep.subr.mxu0 %v1702
    %3061 = vmatpush1.msra.mxu0 %v1701
    %3062 = vmatprep.subr.mxu0 %v1704
    %3063 = vmatpush1.msra.mxu0 %v1703
    %3064 = vmatprep.subr.mxu0 %v1706
    %3065 = vmatpush1.msra.mxu0 %v1705
    %3066 = vmatprep.subr.mxu0 %v1708
    %3067 = vmatpush1.msra.mxu0 %v1707
    %3068 = vmatprep.subr.mxu0 %v1710
    %3069 = vmatpush1.msra.mxu0 %v1709
    %3070 = vmatprep.subr.mxu0 %v1712
    %3071 = vmatpush1.msra.mxu0 %v1711
    %3072 = vmatprep.subr.mxu0 %v1714
    %3073 = vmatpush1.msra.mxu0 %v1713
    %3074 = vmatprep.subr.mxu0 %v1716
    %3075 = vmatpush1.msra.mxu0 %v1715
    %3076 = vmatprep.subr.mxu0 %v1718
    %3077 = vmatpush1.msra.mxu0 %v1717
    %3078 = vmatprep.subr.mxu0 %v1720
    %3079 = vmatpush1.msra.mxu0 %v1719
    %3080 = vmatprep.subr.mxu0 %v1722
    %3081 = vmatpush1.msra.mxu0 %v1721
    %3082 = vmatprep.subr.mxu0 %v1724
    %3083 = vmatpush1.msra.mxu0 %v1723
    %3084 = vmatprep.subr.mxu0 %v1726
    %3085 = vmatpush1.msra.mxu0 %v1725
    %3086 = vmatprep.mubr.f32.mxu0 %v2993
    %3087 = vmatmul.mubr.f32.gmra.mrb[0].mxu0 %v2991
    %v3088 = vpop.f32.mrb[0].mxu0
    %v3089 = vadd.f32 0.0, %v3088
    %v3090 = vpop.f32.mrb[0].mxu0
    %v3091 = vadd.f32 0.0, %v3090
    %3092 = vmatprep.mubr.f32.mxu0 %v2997
    %3093 = vmatmul.mubr.f32.gmra.mrb[0].mxu0 %v2995
    %v3094 = vpop.f32.mrb[0].mxu0
    %v3095 = vadd.f32 0.0, %v3094
    %v3096 = vpop.f32.mrb[0].mxu0
    %v3097 = vadd.f32 0.0, %v3096
    %3098 = vmatprep.mubr.f32.mxu0 %v3001
    %3099 = vmatmul.mubr.f32.gmra.mrb[0].mxu0 %v2999
    %v3100 = vpop.f32.mrb[0].mxu0
    %v3101 = vadd.f32 0.0, %v3100
    %v3102 = vpop.f32.mrb[0].mxu0
    %v3103 = vadd.f32 0.0, %v3102
    %3104 = vmatprep.mubr.f32.mxu0 %v3005
    %3105 = vmatmul.mubr.f32.gmra.mrb[0].mxu0 %v3003
    %v3106 = vpop.f32.mrb[0].mxu0
    %v3107 = vadd.f32 0.0, %v3106
    %v3108 = vpop.f32.mrb[0].mxu0
    %v3109 = vadd.f32 0.0, %v3108
    %3110 = vmatprep.mubr.f32.mxu0 %v3009
    %3111 = vmatmul.mubr.f32.gmra.mrb[0].mxu0 %v3007
    %v3112 = vpop.f32.mrb[0].mxu0
    %v3113 = vadd.f32 0.0, %v3112
    %v3114 = vpop.f32.mrb[0].mxu0
    %v3115 = vadd.f32 0.0, %v3114
    %3116 = vmatprep.mubr.f32.mxu0 %v3013
    %3117 = vmatmul.mubr.f32.gmra.mrb[0].mxu0 %v3011
    %v3118 = vpop.f32.mrb[0].mxu0
    %v3119 = vadd.f32 0.0, %v3118
    %v3120 = vpop.f32.mrb[0].mxu0
    %v3121 = vadd.f32 0.0, %v3120
    %3122 = vmatprep.mubr.f32.mxu0 %v3017
    %3123 = vmatmul.mubr.f32.gmra.mrb[0].mxu0 %v3015
    %v3124 = vpop.f32.mrb[0].mxu0
    %v3125 = vadd.f32 0.0, %v3124
    %v3126 = vpop.f32.mrb[0].mxu0
    %v3127 = vadd.f32 0.0, %v3126
    %3128 = vmatprep.mubr.f32.mxu0 %v3021
    %3129 = vmatmul.mubr.f32.gmra.mrb[0].mxu0 %v3019
    %v3130 = vpop.f32.mrb[0].mxu0
    %v3131 = vadd.f32 0.0, %v3130
    %v3132 = vpop.f32.mrb[0].mxu0
    %v3133 = vadd.f32 0.0, %v3132
    %3134 = vdwg.mxu0
    %v3135 = vrcp.pop %v3089
    %v3136 = vrcp.pop %v3091
    %v3137 = vrcp.pop %v3095
    %v3138 = vrcp.pop %v3097
    %v3139 = vrcp.pop %v3101
    %v3140 = vrcp.pop %v3103
    %v3141 = vrcp.pop %v3107
    %v3142 = vrcp.pop %v3109
    %v3143 = vrcp.pop %v3113
    %v3144 = vrcp.pop %v3115
    %v3145 = vrcp.pop %v3119
    %v3146 = vrcp.pop %v3121
    %v3147 = vrcp.pop %v3125
    %v3148 = vrcp.pop %v3127
    %v3149 = vrcp.pop %v3131
    %v3150 = vrcp.pop %v3133
    %v3151 = vmul.f32 %v2991, %v3135
    %v3152 = vmul.f32 %v2993, %v3136
    %v3153 = vmul.f32 %v2995, %v3137
    %v3154 = vmul.f32 %v2997, %v3138
    %v3155 = vmul.f32 %v2999, %v3139
    %v3156 = vmul.f32 %v3001, %v3140
    %v3157 = vmul.f32 %v3003, %v3141
    %v3158 = vmul.f32 %v3005, %v3142
    %v3159 = vmul.f32 %v3007, %v3143
    %v3160 = vmul.f32 %v3009, %v3144
    %v3161 = vmul.f32 %v3011, %v3145
    %v3162 = vmul.f32 %v3013, %v3146
    %v3163 = vmul.f32 %v3015, %v3147
    %v3164 = vmul.f32 %v3017, %v3148
    %v3165 = vmul.f32 %v3019, %v3149
    %v3166 = vmul.f32 %v3021, %v3150
    %3199 = vrot.lane.b32.xlu0 %v2137, 64
    %v3200 = vpop.permute.xlu0 %3199
    %3201 = vrot.lane.b32.xlu0 %v2138, 64
    %v3202 = vpop.permute.xlu0 %3201
    %3203 = vrot.lane.b32.xlu0 %v2139, 64
    %v3204 = vpop.permute.xlu0 %3203
    %3205 = vrot.lane.b32.xlu0 %v2140, 64
    %v3206 = vpop.permute.xlu0 %3205
    %3207 = vrot.lane.b32.xlu0 %v2141, 64
    %v3208 = vpop.permute.xlu0 %3207
    %3209 = vrot.lane.b32.xlu0 %v2142, 64
    %v3210 = vpop.permute.xlu0 %3209
    %3211 = vrot.lane.b32.xlu0 %v2143, 64
    %v3212 = vpop.permute.xlu0 %3211
    %3213 = vrot.lane.b32.xlu0 %v2144, 64
    %v3214 = vpop.permute.xlu0 %3213
    %3215 = vrot.lane.b32.xlu0 %v2145, 64
    %v3216 = vpop.permute.xlu0 %3215
    %3217 = vrot.lane.b32.xlu0 %v2146, 64
    %v3218 = vpop.permute.xlu0 %3217
    %3219 = vrot.lane.b32.xlu0 %v2147, 64
    %v3220 = vpop.permute.xlu0 %3219
    %3221 = vrot.lane.b32.xlu0 %v2148, 64
    %v3222 = vpop.permute.xlu0 %3221
    %3223 = vrot.lane.b32.xlu0 %v2149, 64
    %v3224 = vpop.permute.xlu0 %3223
    %3225 = vrot.lane.b32.xlu0 %v2150, 64
    %v3226 = vpop.permute.xlu0 %3225
    %3227 = vrot.lane.b32.xlu0 %v2151, 64
    %v3228 = vpop.permute.xlu0 %3227
    %3229 = vrot.lane.b32.xlu0 %v2152, 64
    %v3230 = vpop.permute.xlu0 %3229
    %3231 = vrot.lane.b32.xlu0 %v2153, 64
    %v3232 = vpop.permute.xlu0 %3231
    %3233 = vrot.lane.b32.xlu0 %v2154, 64
    %v3234 = vpop.permute.xlu0 %3233
    %3235 = vrot.lane.b32.xlu0 %v2155, 64
    %v3236 = vpop.permute.xlu0 %3235
    %3237 = vrot.lane.b32.xlu0 %v2156, 64
    %v3238 = vpop.permute.xlu0 %3237
    %3239 = vrot.lane.b32.xlu0 %v2157, 64
    %v3240 = vpop.permute.xlu0 %3239
    %3241 = vrot.lane.b32.xlu0 %v2158, 64
    %v3242 = vpop.permute.xlu0 %3241
    %3243 = vrot.lane.b32.xlu0 %v2159, 64
    %v3244 = vpop.permute.xlu0 %3243
    %3245 = vrot.lane.b32.xlu0 %v2160, 64
    %v3246 = vpop.permute.xlu0 %3245
    %3247 = vrot.lane.b32.xlu0 %v2161, 64
    %v3248 = vpop.permute.xlu0 %3247
    %3249 = vrot.lane.b32.xlu0 %v2162, 64
    %v3250 = vpop.permute.xlu0 %3249
    %3251 = vrot.lane.b32.xlu0 %v2163, 64
    %v3252 = vpop.permute.xlu0 %3251
    %3253 = vrot.lane.b32.xlu0 %v2164, 64
    %v3254 = vpop.permute.xlu0 %3253
    %3255 = vrot.lane.b32.xlu0 %v2165, 64
    %v3256 = vpop.permute.xlu0 %3255
    %3257 = vrot.lane.b32.xlu0 %v2166, 64
    %v3258 = vpop.permute.xlu0 %3257
    %3259 = vrot.lane.b32.xlu0 %v2167, 64
    %v3260 = vpop.permute.xlu0 %3259
    %3261 = vrot.lane.b32.xlu0 %v2168, 64
    %v3262 = vpop.permute.xlu0 %3261
    %3295 = vmatprep.subr.mxu0 0.0
    %3296 = vmatpush1.msra.mxu0 %v3200
    %3297 = vmatprep.subr.mxu0 0.0
    %3298 = vmatpush1.msra.mxu0 %v3202
    %3299 = vmatprep.subr.mxu0 0.0
    %3300 = vmatpush1.msra.mxu0 %v3204
    %3301 = vmatprep.subr.mxu0 0.0
    %3302 = vmatpush1.msra.mxu0 %v3206
    %3303 = vmatprep.subr.mxu0 0.0
    %3304 = vmatpush1.msra.mxu0 %v3208
    %3305 = vmatprep.subr.mxu0 0.0
    %3306 = vmatpush1.msra.mxu0 %v3210
    %3307 = vmatprep.subr.mxu0 0.0
    %3308 = vmatpush1.msra.mxu0 %v3212
    %3309 = vmatprep.subr.mxu0 0.0
    %3310 = vmatpush1.msra.mxu0 %v3214
    %3311 = vmatprep.subr.mxu0 0.0
    %3312 = vmatpush1.msra.mxu0 %v3216
    %3313 = vmatprep.subr.mxu0 0.0
    %3314 = vmatpush1.msra.mxu0 %v3218
    %3315 = vmatprep.subr.mxu0 0.0
    %3316 = vmatpush1.msra.mxu0 %v3220
    %3317 = vmatprep.subr.mxu0 0.0
    %3318 = vmatpush1.msra.mxu0 %v3222
    %3319 = vmatprep.subr.mxu0 0.0
    %3320 = vmatpush1.msra.mxu0 %v3224
    %3321 = vmatprep.subr.mxu0 0.0
    %3322 = vmatpush1.msra.mxu0 %v3226
    %3323 = vmatprep.subr.mxu0 0.0
    %3324 = vmatpush1.msra.mxu0 %v3228
    %3325 = vmatprep.subr.mxu0 0.0
    %3326 = vmatpush1.msra.mxu0 %v3230
    %3327 = vmatprep.subr.mxu0 0.0
    %3328 = vmatpush1.msra.mxu0 %v3232
    %3329 = vmatprep.subr.mxu0 0.0
    %3330 = vmatpush1.msra.mxu0 %v3234
    %3331 = vmatprep.subr.mxu0 0.0
    %3332 = vmatpush1.msra.mxu0 %v3236
    %3333 = vmatprep.subr.mxu0 0.0
    %3334 = vmatpush1.msra.mxu0 %v3238
    %3335 = vmatprep.subr.mxu0 0.0
    %3336 = vmatpush1.msra.mxu0 %v3240
    %3337 = vmatprep.subr.mxu0 0.0
    %3338 = vmatpush1.msra.mxu0 %v3242
    %3339 = vmatprep.subr.mxu0 0.0
    %3340 = vmatpush1.msra.mxu0 %v3244
    %3341 = vmatprep.subr.mxu0 0.0
    %3342 = vmatpush1.msra.mxu0 %v3246
    %3343 = vmatprep.subr.mxu0 0.0
    %3344 = vmatpush1.msra.mxu0 %v3248
    %3345 = vmatprep.subr.mxu0 0.0
    %3346 = vmatpush1.msra.mxu0 %v3250
    %3347 = vmatprep.subr.mxu0 0.0
    %3348 = vmatpush1.msra.mxu0 %v3252
    %3349 = vmatprep.subr.mxu0 0.0
    %3350 = vmatpush1.msra.mxu0 %v3254
    %3351 = vmatprep.subr.mxu0 0.0
    %3352 = vmatpush1.msra.mxu0 %v3256
    %3353 = vmatprep.subr.mxu0 0.0
    %3354 = vmatpush1.msra.mxu0 %v3258
    %3355 = vmatprep.subr.mxu0 0.0
    %3356 = vmatpush1.msra.mxu0 %v3260
    %3357 = vmatprep.subr.mxu0 0.0
    %3358 = vmatpush1.msra.mxu0 %v3262
    %3359 = vmatprep.mubr.f32.mxu0 %v3152
    %3360 = vmatmul.mubr.f32.gmra.mrb[0].mxu0 %v3151
    %v3361 = vpop.f32.mrb[0].mxu0
    %v3362 = vadd.f32 0.0, %v3361
    %v3363 = vpop.f32.mrb[0].mxu0
    %3364 = vmatprep.mubr.f32.mxu0 %v3154
    %3365 = vmatmul.mubr.f32.gmra.mrb[0].mxu0 %v3153
    %v3366 = vpop.f32.mrb[0].mxu0
    %v3367 = vadd.f32 0.0, %v3366
    %v3368 = vpop.f32.mrb[0].mxu0
    %3369 = vmatprep.mubr.f32.mxu0 %v3156
    %3370 = vmatmul.mubr.f32.gmra.mrb[0].mxu0 %v3155
    %v3371 = vpop.f32.mrb[0].mxu0
    %v3372 = vadd.f32 0.0, %v3371
    %v3373 = vpop.f32.mrb[0].mxu0
    %3374 = vmatprep.mubr.f32.mxu0 %v3158
    %3375 = vmatmul.mubr.f32.gmra.mrb[0].mxu0 %v3157
    %v3376 = vpop.f32.mrb[0].mxu0
    %v3377 = vadd.f32 0.0, %v3376
    %v3378 = vpop.f32.mrb[0].mxu0
    %3379 = vmatprep.mubr.f32.mxu0 %v3160
    %3380 = vmatmul.mubr.f32.gmra.mrb[0].mxu0 %v3159
    %v3381 = vpop.f32.mrb[0].mxu0
    %v3382 = vadd.f32 0.0, %v3381
    %v3383 = vpop.f32.mrb[0].mxu0
    %3384 = vmatprep.mubr.f32.mxu0 %v3162
    %3385 = vmatmul.mubr.f32.gmra.mrb[0].mxu0 %v3161
    %v3386 = vpop.f32.mrb[0].mxu0
    %v3387 = vadd.f32 0.0, %v3386
    %v3388 = vpop.f32.mrb[0].mxu0
    %3389 = vmatprep.mubr.f32.mxu0 %v3164
    %3390 = vmatmul.mubr.f32.gmra.mrb[0].mxu0 %v3163
    %v3391 = vpop.f32.mrb[0].mxu0
    %v3392 = vadd.f32 0.0, %v3391
    %v3393 = vpop.f32.mrb[0].mxu0
    %3394 = vmatprep.mubr.f32.mxu0 %v3166
    %3395 = vmatmul.mubr.f32.gmra.mrb[0].mxu0 %v3165
    %v3396 = vpop.f32.mrb[0].mxu0
    %v3397 = vadd.f32 0.0, %v3396
    %v3398 = vpop.f32.mrb[0].mxu0
    %3399 = vdwg.mxu0
    %v3400 = vld [vmem:[#allocation9] sm:$0xff]
    %v3401 = vld [vmem:[#allocation9 + $0x8] sm:$0xff]
    %v3402 = vld [vmem:[#allocation9 + $0x10] sm:$0xff]
    %v3403 = vld [vmem:[#allocation9 + $0x18] sm:$0xff]
    %v3404 = vld [vmem:[%s8] sm:$0x1]
    %v3406 = vlaneseq
    %v3407 = vshrl.u32 %v3406, 7
    %v3408 = vsub.s32 0, %v3407
    %v3409 = vrot.slane %v3404, %v3408
    %v3412 = vsel %vm120, %v2067, 0
    %v3415 = vsel %vm120, %v2072, 0
    %v3418 = vsel %vm120, %v2077, 0
    %v3421 = vsel %vm120, %v2082, 0
    %v3424 = vsel %vm120, %v2087, 0
    %v3427 = vsel %vm120, %v2092, 0
    %v3430 = vsel %vm120, %v2097, 0
    %v3433 = vsel %vm120, %v2102, 0
    %v3436 = vsel %vm120, %v3362, 0
    %v3439 = vsel %vm120, %v3367, 0
    %v3442 = vsel %vm120, %v3372, 0
    %v3445 = vsel %vm120, %v3377, 0
    %v3448 = vsel %vm120, %v3382, 0
    %v3451 = vsel %vm120, %v3387, 0
    %v3454 = vsel %vm120, %v3392, 0
    %v3457 = vsel %vm120, %v3397, 0
    %3459 = vmatprep.subr.mxu0 0.0
    %3460 = vmatpush1.msra.mxu0 %v3400
    %3461 = vmatprep.subr.mxu0 0.0
    %3462 = vmatpush1.msra.mxu0 %v3401
    %3463 = vmatprep.subr.mxu0 0.0
    %3464 = vmatpush1.msra.mxu0 %v3402
    %3465 = vmatprep.subr.mxu0 0.0
    %3466 = vmatpush1.msra.mxu0 %v3403
    %3467 = vmatprep.subr.mxu0 0.0
    %3468 = vmatpush1.msra.mxu0 0.0
    %3469 = vmatprep.subr.mxu0 0.0
    %3470 = vmatpush1.msra.mxu0 0.0
    %3471 = vmatprep.subr.mxu0 0.0
    %3472 = vmatpush1.msra.mxu0 0.0
    %3473 = vmatprep.subr.mxu0 0.0
    %3474 = vmatpush1.msra.mxu0 0.0
    %3475 = vmatprep.subr.mxu0 0.0
    %3476 = vmatpush1.msra.mxu0 0.0
    %3477 = vmatprep.subr.mxu0 0.0
    %3478 = vmatpush1.msra.mxu0 0.0
    %3479 = vmatprep.subr.mxu0 0.0
    %3480 = vmatpush1.msra.mxu0 0.0
    %3481 = vmatprep.subr.mxu0 0.0
    %3482 = vmatpush1.msra.mxu0 0.0
    %3483 = vmatprep.subr.mxu0 0.0
    %3484 = vmatpush1.msra.mxu0 0.0
    %3485 = vmatprep.subr.mxu0 0.0
    %3486 = vmatpush1.msra.mxu0 0.0
    %3487 = vmatprep.subr.mxu0 0.0
    %3488 = vmatpush1.msra.mxu0 0.0
    %3489 = vmatprep.subr.mxu0 0.0
    %3490 = vmatpush1.msra.mxu0 0.0
    %3491 = vmatprep.subr.mxu0 0.0
    %3492 = vmatpush1.msra.mxu0 0.0
    %3493 = vmatprep.subr.mxu0 0.0
    %3494 = vmatpush1.msra.mxu0 0.0
    %3495 = vmatprep.subr.mxu0 0.0
    %3496 = vmatpush1.msra.mxu0 0.0
    %3497 = vmatprep.subr.mxu0 0.0
    %3498 = vmatpush1.msra.mxu0 0.0
    %3499 = vmatprep.subr.mxu0 0.0
    %3500 = vmatpush1.msra.mxu0 0.0
    %3501 = vmatprep.subr.mxu0 0.0
    %3502 = vmatpush1.msra.mxu0 0.0
    %3503 = vmatprep.subr.mxu0 0.0
    %3504 = vmatpush1.msra.mxu0 0.0
    %3505 = vmatprep.subr.mxu0 0.0
    %3506 = vmatpush1.msra.mxu0 0.0
    %3507 = vmatprep.subr.mxu0 0.0
    %3508 = vmatpush1.msra.mxu0 0.0
    %3509 = vmatprep.subr.mxu0 0.0
    %3510 = vmatpush1.msra.mxu0 0.0
    %3511 = vmatprep.subr.mxu0 0.0
    %3512 = vmatpush1.msra.mxu0 0.0
    %3513 = vmatprep.subr.mxu0 0.0
    %3514 = vmatpush1.msra.mxu0 0.0
    %3515 = vmatprep.subr.mxu0 0.0
    %3516 = vmatpush1.msra.mxu0 0.0
    %3517 = vmatprep.subr.mxu0 0.0
    %3518 = vmatpush1.msra.mxu0 0.0
    %3519 = vmatprep.subr.mxu0 0.0
    %3520 = vmatpush1.msra.mxu0 0.0
    %3521 = vmatprep.subr.mxu0 0.0
    %3522 = vmatpush1.msra.mxu0 0.0
    %3523 = vmatprep.mubr.f32.mxu0 0.0
    %3524 = vmatmul.mubr.f32.gmra.mrb[0].mxu0 %v3412
    %v3525 = vpop.f32.mrb[0].mxu0
    %v3526 = vadd.f32 %v3409, %v3525
    %v3527 = vpop.f32.mrb[0].mxu0
    %3528 = vmatprep.mubr.f32.mxu0 0.0
    %3529 = vmatmul.mubr.f32.gmra.mrb[0].mxu0 %v3415
    %v3530 = vpop.f32.mrb[0].mxu0
    %v3531 = vadd.f32 %v3409, %v3530
    %v3532 = vpop.f32.mrb[0].mxu0
    %3533 = vmatprep.mubr.f32.mxu0 0.0
    %3534 = vmatmul.mubr.f32.gmra.mrb[0].mxu0 %v3418
    %v3535 = vpop.f32.mrb[0].mxu0
    %v3536 = vadd.f32 %v3409, %v3535
    %v3537 = vpop.f32.mrb[0].mxu0
    %3538 = vmatprep.mubr.f32.mxu0 0.0
    %3539 = vmatmul.mubr.f32.gmra.mrb[0].mxu0 %v3421
    %v3540 = vpop.f32.mrb[0].mxu0
    %v3541 = vadd.f32 %v3409, %v3540
    %v3542 = vpop.f32.mrb[0].mxu0
    %3543 = vmatprep.mubr.f32.mxu0 0.0
    %3544 = vmatmul.mubr.f32.gmra.mrb[0].mxu0 %v3424
    %v3545 = vpop.f32.mrb[0].mxu0
    %v3546 = vadd.f32 %v3409, %v3545
    %v3547 = vpop.f32.mrb[0].mxu0
    %3548 = vmatprep.mubr.f32.mxu0 0.0
    %3549 = vmatmul.mubr.f32.gmra.mrb[0].mxu0 %v3427
    %v3550 = vpop.f32.mrb[0].mxu0
    %v3551 = vadd.f32 %v3409, %v3550
    %v3552 = vpop.f32.mrb[0].mxu0
    %3553 = vmatprep.mubr.f32.mxu0 0.0
    %3554 = vmatmul.mubr.f32.gmra.mrb[0].mxu0 %v3430
    %v3555 = vpop.f32.mrb[0].mxu0
    %v3556 = vadd.f32 %v3409, %v3555
    %v3557 = vpop.f32.mrb[0].mxu0
    %3558 = vmatprep.mubr.f32.mxu0 0.0
    %3559 = vmatmul.mubr.f32.gmra.mrb[0].mxu0 %v3433
    %v3560 = vpop.f32.mrb[0].mxu0
    %v3561 = vadd.f32 %v3409, %v3560
    %v3562 = vpop.f32.mrb[0].mxu0
    %3563 = vmatprep.mubr.f32.mxu0 0.0
    %3564 = vmatmul.mubr.f32.gmra.mrb[0].mxu0 %v3436
    %v3565 = vpop.f32.mrb[0].mxu0
    %v3566 = vadd.f32 %v3409, %v3565
    %v3567 = vpop.f32.mrb[0].mxu0
    %3568 = vmatprep.mubr.f32.mxu0 0.0
    %3569 = vmatmul.mubr.f32.gmra.mrb[0].mxu0 %v3439
    %v3570 = vpop.f32.mrb[0].mxu0
    %v3571 = vadd.f32 %v3409, %v3570
    %v3572 = vpop.f32.mrb[0].mxu0
    %3573 = vmatprep.mubr.f32.mxu0 0.0
    %3574 = vmatmul.mubr.f32.gmra.mrb[0].mxu0 %v3442
    %v3575 = vpop.f32.mrb[0].mxu0
    %v3576 = vadd.f32 %v3409, %v3575
    %v3577 = vpop.f32.mrb[0].mxu0
    %3578 = vmatprep.mubr.f32.mxu0 0.0
    %3579 = vmatmul.mubr.f32.gmra.mrb[0].mxu0 %v3445
    %v3580 = vpop.f32.mrb[0].mxu0
    %v3581 = vadd.f32 %v3409, %v3580
    %v3582 = vpop.f32.mrb[0].mxu0
    %3583 = vmatprep.mubr.f32.mxu0 0.0
    %3584 = vmatmul.mubr.f32.gmra.mrb[0].mxu0 %v3448
    %v3585 = vpop.f32.mrb[0].mxu0
    %v3586 = vadd.f32 %v3409, %v3585
    %v3587 = vpop.f32.mrb[0].mxu0
    %3588 = vmatprep.mubr.f32.mxu0 0.0
    %3589 = vmatmul.mubr.f32.gmra.mrb[0].mxu0 %v3451
    %v3590 = vpop.f32.mrb[0].mxu0
    %v3591 = vadd.f32 %v3409, %v3590
    %v3592 = vpop.f32.mrb[0].mxu0
    %3593 = vmatprep.mubr.f32.mxu0 0.0
    %3594 = vmatmul.mubr.f32.gmra.mrb[0].mxu0 %v3454
    %v3595 = vpop.f32.mrb[0].mxu0
    %v3596 = vadd.f32 %v3409, %v3595
    %v3597 = vpop.f32.mrb[0].mxu0
    %3598 = vmatprep.mubr.f32.mxu0 0.0
    %3599 = vmatmul.mubr.f32.gmra.mrb[0].mxu0 %v3457
    %v3600 = vpop.f32.mrb[0].mxu0
    %v3601 = vadd.f32 %v3409, %v3600
    %v3602 = vpop.f32.mrb[0].mxu0
    %3603 = vdwg.mxu0
    %3604 = vst.msk [vmem:[%s9] sm:$0xff] %vm120, %v3526
    %3605 = vst.msk [vmem:[%s9 + $0x8] sm:$0xff] %vm120, %v3531
    %3606 = vst.msk [vmem:[%s9 + $0x10] sm:$0xff] %vm120, %v3536
    %3607 = vst.msk [vmem:[%s9 + $0x18] sm:$0xff] %vm120, %v3541
    %3608 = vst.msk [vmem:[%s9 + $0x20] sm:$0xff] %vm120, %v3546
    %3609 = vst.msk [vmem:[%s9 + $0x28] sm:$0xff] %vm120, %v3551
    %3610 = vst.msk [vmem:[%s9 + $0x30] sm:$0xff] %vm120, %v3556
    %3611 = vst.msk [vmem:[%s9 + $0x38] sm:$0xff] %vm120, %v3561
    %3612 = vst.msk [vmem:[%s9 + $0x40] sm:$0xff] %vm120, %v3566
    %3613 = vst.msk [vmem:[%s9 + $0x48] sm:$0xff] %vm120, %v3571
    %3614 = vst.msk [vmem:[%s9 + $0x50] sm:$0xff] %vm120, %v3576
    %3615 = vst.msk [vmem:[%s9 + $0x58] sm:$0xff] %vm120, %v3581
    %3616 = vst.msk [vmem:[%s9 + $0x60] sm:$0xff] %vm120, %v3586
    %3617 = vst.msk [vmem:[%s9 + $0x68] sm:$0xff] %vm120, %v3591
    %3618 = vst.msk [vmem:[%s9 + $0x70] sm:$0xff] %vm120, %v3596
    %3619 = vst.msk [vmem:[%s9 + $0x78] sm:$0xff] %vm120, %v3601
    // Predicated region
    $region58: #{tpu_custom_call.1} parent=1 // pred_check
      _
    $region59: #{tpu_custom_call.1} parent=1 // pred_check_branch
      %3621 = sbr.rel (0) target = $region61
    $region60: #{tpu_custom_call.1} parent=1 // pred_region
      _
    $region61: #{tpu_custom_call.1} parent=1 // pred_fallthru
      _
    // Predicated region
    $region62: #{tpu_custom_call.1} parent=1 // pred_check
      _
    $region63: #{tpu_custom_call.1} parent=1 // pred_check_branch
      %3623 = sbr.rel (0) target = $region65
    $region64: #{tpu_custom_call.1} parent=1 // pred_region
      _
    $region65: #{tpu_custom_call.1} parent=1 // pred_fallthru
      _
    %3624 = vsyncpa [#allocation3], 1
    %3625 = vsyncpa [#allocation5], 1
    %3626 = vsyncpa [#allocation8], 1

</llo_original>
